<compile_context>
chip_gen: v7x
topology: tpu7x:2x2x1
jax: 0.10.0
libtpu: 0.0.40
codegen_flags: <defaults>
</compile_context>

<pallas_src>
import math
import functools

import numpy as np
import jax
import jax.numpy as jnp
from jax import lax
from jax.experimental import pallas as pl
from jax.experimental.pallas import tpu as pltpu


_LN_EPS = 1e-5
_NEG_INF = -1e30
# <= ~48 MiB: safe on v7x (64 MiB physical per TC) and leaves headroom on v5e/v6e (128 MiB).
VMEM_LIMIT_BYTES = 48 * 1024 * 1024


# ----------------------------- helpers --------------------------------------

def _round_up(x, m):
    return ((x + m - 1) // m) * m


def _choose_tm(M):
    # Row tile for the token-parallel tag kernel: keep >=2 grid steps (v7x has 2 TCs),
    # cap tiles at 512 rows.
    return min(512, max(8, _round_up(pl.cdiv(M, 2), 8)))


def _choose_bt(B, S, nhead):
    # Batch elements per fused-layer grid step. Prefer larger Bt (lane/MXU fill on the
    # projections) but keep >=2 parallel grid steps when B >= 2 and bound the f32
    # (Bt*nhead, S, S) score slab + row count.
    best = 1
    for bt in range(1, B + 1):
        if B % bt != 0:
            continue
        if B >= 2 and B // bt < 2:
            continue
        if bt * S > 1024:
            continue
        if bt * nhead * S * S * 4 > 4 * 1024 * 1024:
            continue
        best = bt
    return best


def _full_spec(arr):
    nd = arr.ndim
    return pl.BlockSpec(arr.shape, lambda *_, _nd=nd: (0,) * _nd)


def _cparams(dim_sem):
    return pltpu.CompilerParams(dimension_semantics=dim_sem,
                                vmem_limit_bytes=VMEM_LIMIT_BYTES)


def _layernorm(z, g, b, eps):
    mean = jnp.mean(z, axis=-1, keepdims=True)
    var = jnp.mean((z - mean) ** 2, axis=-1, keepdims=True)
    return (z - mean) * lax.rsqrt(var + eps) * g + b


# ----------------------------- Pallas kernels -------------------------------

def _encoder_layer_kernel(*refs, nhead, eps, compute_dtype, approx_recip, add_pe):
    # Fused encoder layer. refs:
    #   x, (pe,) wqkv, bqkv, wout, bout, ln1_w, ln1_b, w1, b1, w2, b2, ln2_w, ln2_b,
    #   out, ctx_scratch
    if add_pe:
        (x_ref, pe_ref, wqkv_ref, bqkv_ref, wout_ref, bout_ref, g1_ref, be1_ref,
         w1_ref, b1_ref, w2_ref, b2_ref, g2_ref, be2_ref, o_ref, ctx_ref) = refs
    else:
        (x_ref, wqkv_ref, bqkv_ref, wout_ref, bout_ref, g1_ref, be1_ref,
         w1_ref, b1_ref, w2_ref, b2_ref, g2_ref, be2_ref, o_ref, ctx_ref) = refs
        pe_ref = None

    Bt, S, E = x_ref.shape
    Dh = E // nhead
    cd = compute_dtype

    x = x_ref[...].astype(jnp.float32)                      # (Bt, S, E) f32
    if add_pe:
        x = x + pe_ref[...]                                 # (S, E) broadcasts over Bt

    x2 = x.reshape(Bt * S, E)                               # leading-dim merge only

    # ---- attention block -----------------------------------------------
    # 1/sqrt(Dh) is already folded into the Q rows of wqkv / bqkv.
    qkv = jnp.dot(x2.astype(cd), wqkv_ref[...],
                  preferred_element_type=jnp.float32) + bqkv_ref[...]     # (Bt*S, 3E)

    for h in range(nhead):                                  # static loop; heads -> scratch slab
        sl = slice(h * Dh, (h + 1) * Dh)
        qh = qkv[:, sl].reshape(Bt, S, Dh).astype(cd)
        kh = qkv[:, E + h * Dh:E + (h + 1) * Dh].reshape(Bt, S, Dh).astype(cd)
        vh = qkv[:, 2 * E + h * Dh:2 * E + (h + 1) * Dh].reshape(Bt, S, Dh).astype(cd)

        s = jnp.einsum('bqd,bkd->bqk', qh, kh,
                       preferred_element_type=jnp.float32)  # (Bt, S, S) f32
        m = jnp.max(s, axis=-1, keepdims=True)
        p = jnp.exp(s - m)
        denom = jnp.sum(p, axis=-1, keepdims=True)
        if approx_recip:
            p = p * pl.reciprocal(denom, approx=True)       # EUP slot (free-ish)
        else:
            p = p / denom
        ctx_h = jnp.einsum('bqk,bkd->bqd', p.astype(cd), vh,
                           preferred_element_type=jnp.float32)            # (Bt, S, Dh)
        # write directly into the preallocated VMEM slab (no list+concat)
        ctx_ref[:, sl] = ctx_h.reshape(Bt * S, Dh)

    attn = jnp.dot(ctx_ref[...].astype(cd), wout_ref[...],
                   preferred_element_type=jnp.float32) + bout_ref[...]

    z = _layernorm(x2 + attn, g1_ref[...], be1_ref[...], eps)             # f32 epilogue

    # ---- FFN block -------------------------------------------------------
    h1 = jnp.dot(z.astype(cd), w1_ref[...],
                 preferred_element_type=jnp.float32) + b1_ref[...]
    h1 = jnp.maximum(h1, 0.0)
    ff = jnp.dot(h1.astype(cd), w2_ref[...],
                 preferred_element_type=jnp.float32) + b2_ref[...]

    out = _layernorm(z + ff, g2_ref[...], be2_ref[...], eps)
    o_ref[...] = out.reshape(Bt, S, E).astype(o_ref.dtype)


def _tag_logsoftmax_kernel(x_ref, w_ref, b_ref, o_ref, *, compute_dtype):
    # Fused hidden2tag matmul + log-softmax on a lane-dense (padded to 128) tag dim.
    # Pad columns have bias -1e30 -> exp underflows to 0, so they do not perturb the lse.
    x = x_ref[...].astype(jnp.float32)                      # (TM, E)
    y = jnp.dot(x.astype(compute_dtype), w_ref[...],
                preferred_element_type=jnp.float32) + b_ref[...]          # (TM, Np)
    m = jnp.max(y, axis=-1, keepdims=True)
    s = y - m
    lse = jnp.log(jnp.sum(jnp.exp(s), axis=-1, keepdims=True))
    o_ref[...] = (s - lse).astype(o_ref.dtype)


# ----------------------------- pallas_call wrappers --------------------------

def encoder_layer(x, layer, pe, *, nhead, compute_dtype, approx_recip, add_pe, act_dtype):
    B, S, E = x.shape
    Bt = _choose_bt(B, S, nhead)
    xblk = pl.BlockSpec((Bt, S, E), lambda b: (b, 0, 0))

    w_args = [layer["wqkv"], layer["bqkv"], layer["wout"], layer["bout"],
              layer["ln1_w"], layer["ln1_b"], layer["w1"], layer["b1"],
              layer["w2"], layer["b2"], layer["ln2_w"], layer["ln2_b"]]

    in_specs = [xblk]
    args = [x]
    if add_pe:
        in_specs.append(pl.BlockSpec((S, E), lambda b: (0, 0)))
        args.append(pe)
    in_specs += [_full_spec(w) for w in w_args]
    args += w_args

    return pl.pallas_call(
        functools.partial(_encoder_layer_kernel, nhead=nhead, eps=_LN_EPS,
                          compute_dtype=compute_dtype, approx_recip=approx_recip,
                          add_pe=add_pe),
        grid=(B // Bt,),
        in_specs=in_specs,
        out_specs=xblk,
        out_shape=jax.ShapeDtypeStruct((B, S, E), act_dtype),
        scratch_shapes=[pltpu.VMEM((Bt * S, E), jnp.float32)],
        compiler_params=_cparams(("parallel",)),
    )(*args)


def tag_logsoftmax(x, w_pad, b_pad, tagset_size, *, compute_dtype):
    M, E = x.shape
    Np = w_pad.shape[1]
    TM = _choose_tm(M)
    out = pl.pallas_call(
        functools.partial(_tag_logsoftmax_kernel, compute_dtype=compute_dtype),
        # ragged last block is handled by Pallas (no host-side pad / slice copies)
        grid=(pl.cdiv(M, TM),),
        in_specs=[pl.BlockSpec((TM, E), lambda i: (i, 0)),
                  _full_spec(w_pad), _full_spec(b_pad)],
        out_specs=pl.BlockSpec((TM, Np), lambda i: (i, 0)),
        out_shape=jax.ShapeDtypeStruct((M, Np), jnp.float32),
        compiler_params=_cparams(("parallel",)),
    )(x, w_pad, b_pad)
    return out[:, :tagset_size]


# ----------------------------- parameters -----------------------------------

def init_params(key, vocab_size, E, nhead, nhid, nlayers, tagset_size, max_len=512):
    keys = iter(jax.random.split(key, 4 + 8 * nlayers))

    def nrm(shape, scale=0.05):
        return jax.random.normal(next(keys), shape, jnp.float32) * scale

    params = {"embedding": nrm((vocab_size, E), 1.0)}

    # PositionalEncoding buffer (max_len, 1, E), same formula as the PyTorch module.
    position = np.arange(max_len, dtype=np.float32)[:, None]
    div_term = np.exp(np.arange(0, E, 2, dtype=np.float32) * (-math.log(10000.0) / E))
    pe = np.zeros((max_len, 1, E), np.float32)
    pe[:, 0, 0::2] = np.sin(position * div_term)
    pe[:, 0, 1::2] = np.cos(position * div_term)
    params["pe"] = jnp.asarray(pe)

    layers = []
    for _ in range(nlayers):
        layers.append({
            "in_proj_w": nrm((3 * E, E)),
            "in_proj_b": nrm((3 * E,)),
            "out_proj_w": nrm((E, E)),
            "out_proj_b": nrm((E,)),
            "ln1_w": jnp.ones((E,), jnp.float32),
            "ln1_b": jnp.zeros((E,), jnp.float32),
            "lin1_w": nrm((nhid, E)),
            "lin1_b": nrm((nhid,)),
            "lin2_w": nrm((E, nhid)),
            "lin2_b": nrm((E,)),
            "ln2_w": jnp.ones((E,), jnp.float32),
            "ln2_b": jnp.zeros((E,), jnp.float32),
        })
    params["layers"] = layers
    params["tag_w"] = nrm((tagset_size, E))
    params["tag_b"] = nrm((tagset_size,))
    return params


def prepare_fast_params(params, nhead, compute_dtype=jnp.float32):
    """One-time prep: pre-transpose weights (no .T in the hot path), reshape biases to
    (1, N) rows, fold sqrt(E) into the embedding table and 1/sqrt(Dh) into the Q rows of
    the in-projection (weights AND bias), lane-pad the tag head to 128 columns."""
    cd = compute_dtype
    row = lambda v: v.reshape(1, -1)
    E = params["embedding"].shape[1]
    Dh = E // nhead
    inv = 1.0 / math.sqrt(Dh)

    fp = {
        "embedding": params["embedding"] * math.sqrt(E),    # sqrt(E) folded in (free at prep)
        "pe": params["pe"][:, 0, :],                        # (max_len, E)
    }
    qkv_scale = jnp.concatenate([jnp.full((E,), inv, jnp.float32),
                                 jnp.ones((2 * E,), jnp.float32)])
    layers = []
    for l in params["layers"]:
        wqkv = l["in_proj_w"].T * qkv_scale[None, :]        # (E, 3E), Q cols pre-scaled
        bqkv = l["in_proj_b"] * qkv_scale
        layers.append({
            "wqkv": wqkv.astype(cd),
            "bqkv": row(bqkv),                              # biases / LN params stay f32
            "wout": l["out_proj_w"].T.astype(cd),           # (E, E)
            "bout": row(l["out_proj_b"]),
            "ln1_w": row(l["ln1_w"]),
            "ln1_b": row(l["ln1_b"]),
            "w1": l["lin1_w"].T.astype(cd),                 # (E, nhid)
            "b1": row(l["lin1_b"]),
            "w2": l["lin2_w"].T.astype(cd),                 # (nhid, E)
            "b2": row(l["lin2_b"]),
            "ln2_w": row(l["ln2_w"]),
            "ln2_b": row(l["ln2_b"]),
        })
    fp["layers"] = layers

    tagset, E_ = params["tag_w"].shape
    Np = max(128, _round_up(tagset, 128))
    w_pad = jnp.zeros((E_, Np), jnp.float32).at[:, :tagset].set(params["tag_w"].T)
    b_pad = jnp.full((1, Np), _NEG_INF, jnp.float32).at[0, :tagset].set(params["tag_b"])
    fp["tag_w"] = w_pad.astype(cd)
    fp["tag_b"] = b_pad
    return fp


# ----------------------------- forward (Pallas) ------------------------------

def forward(fp, tokens, *, nhead, tagset_size, compute_dtype=jnp.float32,
            approx_recip=False, act_dtype=jnp.float32):
    S, B = tokens.shape
    E = fp["embedding"].shape[1]

    # Embedding gather is glue (data-dependent); gather directly into (B, S, E).
    # sqrt(E) is already folded into the table; PE is added inside the layer-0 kernel.
    x = jnp.take(fp["embedding"], tokens.T, axis=0).astype(act_dtype)    # (B, S, E)
    pe = fp["pe"][:S]                                                    # (S, E)

    if not fp["layers"]:                                                 # degenerate case
        x = (x.astype(jnp.float32) + pe).astype(act_dtype)

    for li, layer in enumerate(fp["layers"]):
        x = encoder_layer(x, layer, pe, nhead=nhead, compute_dtype=compute_dtype,
                          approx_recip=approx_recip, add_pe=(li == 0),
                          act_dtype=act_dtype)                           # (B, S, E)

    scores = tag_logsoftmax(x.reshape(B * S, E), fp["tag_w"], fp["tag_b"],
                            tagset_size, compute_dtype=compute_dtype)
    return scores.reshape(B, S, tagset_size).transpose(1, 0, 2)          # (S, B, tagset)


# ----------------------------- pure-JAX reference ----------------------------

def _ref_linear(x, w, b):
    return x @ w.T + b


def _ref_ln(x, w, b, eps=_LN_EPS):
    m = x.mean(-1, keepdims=True)
    v = ((x - m) ** 2).mean(-1, keepdims=True)
    return (x - m) / jnp.sqrt(v + eps) * w + b


def reference_forward(params, tokens, *, nhead):
    S, B = tokens.shape
    E = params["embedding"].shape[1]
    Dh = E // nhead
    x = jnp.take(params["embedding"], tokens, axis=0) * math.sqrt(E)
    x = x + params["pe"][:S]
    for l in params["layers"]:
        x2 = x.reshape(S * B, E)
        qkv = _ref_linear(x2, l["in_proj_w"], l["in_proj_b"])
        q, k, v = jnp.split(qkv, 3, axis=-1)
        th = lambda t: t.reshape(S, B, nhead, Dh).transpose(1, 2, 0, 3)   # (B,H,S,Dh)
        qh, kh, vh = th(q), th(k), th(v)
        s = jnp.einsum("bhqd,bhkd->bhqk", qh, kh) / math.sqrt(Dh)
        p = jax.nn.softmax(s, axis=-1)
        ctx = jnp.einsum("bhqk,bhkd->bhqd", p, vh).transpose(2, 0, 1, 3).reshape(S * B, E)
        attn_out = _ref_linear(ctx, l["out_proj_w"], l["out_proj_b"])
        x2 = _ref_ln(x2 + attn_out, l["ln1_w"], l["ln1_b"])
        h = jax.nn.relu(_ref_linear(x2, l["lin1_w"], l["lin1_b"]))
        ff = _ref_linear(h, l["lin2_w"], l["lin2_b"])
        x2 = _ref_ln(x2 + ff, l["ln2_w"], l["ln2_b"])
        x = x2.reshape(S, B, E)
    tag = _ref_linear(x.reshape(S * B, E), params["tag_w"], params["tag_b"])
    return jax.nn.log_softmax(tag, axis=-1).reshape(S, B, -1)


# ----------------------------- main ------------------------------------------

if __name__ == "__main__":
    vocab_size, embedding_dim, nhead, nhid, nlayers, tagset_size = 50, 32, 4, 64, 2, 10
    S, B = 8, 2

    key = jax.random.PRNGKey(0)
    pkey, tkey = jax.random.split(key)
    params = init_params(pkey, vocab_size, embedding_dim, nhead, nhid, nlayers, tagset_size)
    tokens = jax.random.randint(tkey, (S, B), 0, vocab_size, dtype=jnp.int32)

    ref = reference_forward(params, tokens, nhead=nhead)

    # --- f32 path (exact check) ---
    fp32 = prepare_fast_params(params, nhead, compute_dtype=jnp.float32)
    fwd32 = jax.jit(functools.partial(forward, nhead=nhead, tagset_size=tagset_size,
                                      compute_dtype=jnp.float32, approx_recip=False,
                                      act_dtype=jnp.float32))
    out32 = jax.block_until_ready(fwd32(fp32, tokens))
    assert out32.shape == (S, B, tagset_size), out32.shape
    np.testing.assert_allclose(np.asarray(out32), np.asarray(ref), rtol=1e-4, atol=1e-4)

    # --- bf16-operand / bf16-activation-storage / f32-accumulate path (v6e / v7x) ---
    fpbf = prepare_fast_params(params, nhead, compute_dtype=jnp.bfloat16)
    fwdbf = jax.jit(functools.partial(forward, nhead=nhead, tagset_size=tagset_size,
                                      compute_dtype=jnp.bfloat16, approx_recip=True,
                                      act_dtype=jnp.bfloat16))
    outbf = jax.block_until_ready(fwdbf(fpbf, tokens))
    assert bool(jnp.all(jnp.isfinite(outbf)))
    np.testing.assert_allclose(np.asarray(outbf), np.asarray(ref), rtol=0.0, atol=0.25)

    print("KERNEL_OK")
</pallas_src>

<mosaic_0001>
module attributes {stable_mosaic.version = 11 : i64} {
  func.func @_tag_logsoftmax_kernel(%arg0: i32, %arg1: memref<8x32xf32, #tpu.memory_space<vmem>>, %arg2: memref<32x128xf32, #tpu.memory_space<vmem>>, %arg3: memref<1x128xf32, #tpu.memory_space<vmem>>, %arg4: memref<8x128xf32, #tpu.memory_space<vmem>>) attributes {dimension_semantics = [#tpu.dimension_semantics<parallel>], iteration_bounds = array<i64: 2>, scalar_prefetch = 0 : i64, scratch_operands = 0 : i64, tpu.core_type = #tpu.core_type<tc>, window_params = [{transform_indices = @transform_0, window_bounds = array<i64: 8, 32>}, {pipeline_mode = #tpu.pipeline_mode<synchronous>, transform_indices = @transform_1, window_bounds = array<i64: 32, 128>}, {pipeline_mode = #tpu.pipeline_mode<synchronous>, transform_indices = @transform_2, window_bounds = array<i64: 1, 128>}, {transform_indices = @transform_3, window_bounds = array<i64: 8, 128>}]} {
    %c0 = arith.constant 0 : index
    %c0_0 = arith.constant 0 : index
    %0 = vector.load %arg1[%c0, %c0_0] : memref<8x32xf32, #tpu.memory_space<vmem>>, vector<8x32xf32>
    %c0_1 = arith.constant 0 : index
    %c0_2 = arith.constant 0 : index
    %1 = vector.load %arg2[%c0_1, %c0_2] : memref<32x128xf32, #tpu.memory_space<vmem>>, vector<32x128xf32>
    %cst = arith.constant dense<0.000000e+00> : vector<8x128xf32>
    %2 = tpu.matmul %0, %1, %cst {dimension_numbers = #tpu.dot_dimension_numbers<[1], [0], [0], [1], [0, 0, 1, 1], [], []>} : vector<8x32xf32>, vector<32x128xf32>, vector<8x128xf32> -> vector<8x128xf32>
    %c0_3 = arith.constant 0 : index
    %c0_4 = arith.constant 0 : index
    %3 = vector.load %arg3[%c0_3, %c0_4] : memref<1x128xf32, #tpu.memory_space<vmem>>, vector<1x128xf32>
    %4 = vector.broadcast %3 : vector<1x128xf32> to vector<8x128xf32>
    %5 = arith.addf %2, %4 : vector<8x128xf32>
    %cst_5 = arith.constant dense<0xFF800000> : vector<8xf32>
    %6 = vector.multi_reduction <maximumf>, %5, %cst_5 [1] : vector<8x128xf32> to vector<8xf32>
    %7 = vector.shape_cast %6 : vector<8xf32> to vector<8x1xf32>
    %8 = vector.broadcast %7 : vector<8x1xf32> to vector<8x128xf32>
    %9 = arith.subf %5, %8 : vector<8x128xf32>
    %10 = math.exp %9 : vector<8x128xf32>
    %cst_6 = arith.constant dense<0.000000e+00> : vector<8xf32>
    %11 = vector.multi_reduction <add>, %10, %cst_6 [1] : vector<8x128xf32> to vector<8xf32>
    %12 = vector.shape_cast %11 : vector<8xf32> to vector<8x1xf32>
    %13 = math.log %12 : vector<8x1xf32>
    %14 = vector.broadcast %13 : vector<8x1xf32> to vector<8x128xf32>
    %15 = arith.subf %9, %14 : vector<8x128xf32>
    %c0_7 = arith.constant 0 : index
    %c0_8 = arith.constant 0 : index
    %16 = vector.load %arg4[%c0_7, %c0_8] : memref<8x128xf32, #tpu.memory_space<vmem>>, vector<8x128xf32>
    tpu.vector_store %arg4[%c0_7, %c0_8], %15 {strides = array<i32>} : memref<8x128xf32, #tpu.memory_space<vmem>>, vector<8x128xf32>,
    return
  }
  func.func @transform_0(%arg0: i32) -> (i32, i32) {
    %c0_i32 = arith.constant 0 : i32
    %c0_i32_0 = arith.constant 0 : i32
    return %arg0, %c0_i32 : i32, i32
  }
  func.func @transform_1(%arg0: i32) -> (i32, i32) {
    %c0_i32 = arith.constant 0 : i32
    %c0_i32_0 = arith.constant 0 : i32
    %c0_i32_1 = arith.constant 0 : i32
    return %c0_i32, %c0_i32_0 : i32, i32
  }
  func.func @transform_2(%arg0: i32) -> (i32, i32) {
    %c0_i32 = arith.constant 0 : i32
    %c0_i32_0 = arith.constant 0 : i32
    %c0_i32_1 = arith.constant 0 : i32
    return %c0_i32, %c0_i32_0 : i32, i32
  }
  func.func @transform_3(%arg0: i32) -> (i32, i32) {
    %c0_i32 = arith.constant 0 : i32
    %c0_i32_0 = arith.constant 0 : i32
    return %arg0, %c0_i32 : i32, i32
  }
}

module attributes {stable_mosaic.version = 11 : i64} {
  func.func @_encoder_layer_kernel(%arg0: i32, %arg1: memref<1x8x32xf32, #tpu.memory_space<vmem>>, %arg2: memref<32x96xf32, #tpu.memory_space<vmem>>, %arg3: memref<1x96xf32, #tpu.memory_space<vmem>>, %arg4: memref<32x32xf32, #tpu.memory_space<vmem>>, %arg5: memref<1x32xf32, #tpu.memory_space<vmem>>, %arg6: memref<1x32xf32, #tpu.memory_space<vmem>>, %arg7: memref<1x32xf32, #tpu.memory_space<vmem>>, %arg8: memref<32x64xf32, #tpu.memory_space<vmem>>, %arg9: memref<1x64xf32, #tpu.memory_space<vmem>>, %arg10: memref<64x32xf32, #tpu.memory_space<vmem>>, %arg11: memref<1x32xf32, #tpu.memory_space<vmem>>, %arg12: memref<1x32xf32, #tpu.memory_space<vmem>>, %arg13: memref<1x32xf32, #tpu.memory_space<vmem>>, %arg14: memref<1x8x32xf32, #tpu.memory_space<vmem>>, %arg15: memref<8x32xf32, #tpu.memory_space<vmem>>) attributes {dimension_semantics = [#tpu.dimension_semantics<parallel>], iteration_bounds = array<i64: 2>, scalar_prefetch = 0 : i64, scratch_operands = 1 : i64, tpu.core_type = #tpu.core_type<tc>, window_params = [{transform_indices = @transform_0, window_bounds = array<i64: 1, 8, 32>}, {pipeline_mode = #tpu.pipeline_mode<synchronous>, transform_indices = @transform_1, window_bounds = array<i64: 32, 96>}, {pipeline_mode = #tpu.pipeline_mode<synchronous>, transform_indices = @transform_2, window_bounds = array<i64: 1, 96>}, {pipeline_mode = #tpu.pipeline_mode<synchronous>, transform_indices = @transform_3, window_bounds = array<i64: 32, 32>}, {pipeline_mode = #tpu.pipeline_mode<synchronous>, transform_indices = @transform_4, window_bounds = array<i64: 1, 32>}, {pipeline_mode = #tpu.pipeline_mode<synchronous>, transform_indices = @transform_5, window_bounds = array<i64: 1, 32>}, {pipeline_mode = #tpu.pipeline_mode<synchronous>, transform_indices = @transform_6, window_bounds = array<i64: 1, 32>}, {pipeline_mode = #tpu.pipeline_mode<synchronous>, transform_indices = @transform_7, window_bounds = array<i64: 32, 64>}, {pipeline_mode = #tpu.pipeline_mode<synchronous>, transform_indices = @transform_8, window_bounds = array<i64: 1, 64>}, {pipeline_mode = #tpu.pipeline_mode<synchronous>, transform_indices = @transform_9, window_bounds = array<i64: 64, 32>}, {pipeline_mode = #tpu.pipeline_mode<synchronous>, transform_indices = @transform_10, window_bounds = array<i64: 1, 32>}, {pipeline_mode = #tpu.pipeline_mode<synchronous>, transform_indices = @transform_11, window_bounds = array<i64: 1, 32>}, {pipeline_mode = #tpu.pipeline_mode<synchronous>, transform_indices = @transform_12, window_bounds = array<i64: 1, 32>}, {transform_indices = @transform_13, window_bounds = array<i64: 1, 8, 32>}]} {
    %c0 = arith.constant 0 : index
    %c0_0 = arith.constant 0 : index
    %c0_1 = arith.constant 0 : index
    %0 = vector.load %arg1[%c0, %c0_0, %c0_1] : memref<1x8x32xf32, #tpu.memory_space<vmem>>, vector<1x8x32xf32>
    %1 = vector.shape_cast %0 : vector<1x8x32xf32> to vector<8x32xf32>
    %c0_2 = arith.constant 0 : index
    %c0_3 = arith.constant 0 : index
    %2 = vector.load %arg2[%c0_2, %c0_3] : memref<32x96xf32, #tpu.memory_space<vmem>>, vector<32x96xf32>
    %cst = arith.constant dense<0.000000e+00> : vector<8x96xf32>
    %3 = tpu.matmul %1, %2, %cst {dimension_numbers = #tpu.dot_dimension_numbers<[1], [0], [0], [1], [0, 0, 1, 1], [], []>} : vector<8x32xf32>, vector<32x96xf32>, vector<8x96xf32> -> vector<8x96xf32>
    %c0_4 = arith.constant 0 : index
    %c0_5 = arith.constant 0 : index
    %4 = vector.load %arg3[%c0_4, %c0_5] : memref<1x96xf32, #tpu.memory_space<vmem>>, vector<1x96xf32>
    %5 = vector.broadcast %4 : vector<1x96xf32> to vector<8x96xf32>
    %6 = arith.addf %3, %5 : vector<8x96xf32>
    %7 = vector.extract_strided_slice %6 {offsets = [0, 0], sizes = [8, 8], strides = [1, 1]} : vector<8x96xf32> to vector<8x8xf32>
    %8 = vector.shape_cast %7 : vector<8x8xf32> to vector<1x8x8xf32>
    %9 = vector.extract_strided_slice %6 {offsets = [0, 32], sizes = [8, 8], strides = [1, 1]} : vector<8x96xf32> to vector<8x8xf32>
    %10 = vector.shape_cast %9 : vector<8x8xf32> to vector<1x8x8xf32>
    %11 = vector.extract_strided_slice %6 {offsets = [0, 64], sizes = [8, 8], strides = [1, 1]} : vector<8x96xf32> to vector<8x8xf32>
    %12 = vector.shape_cast %11 : vector<8x8xf32> to vector<1x8x8xf32>
    "tpu.trace_start"() <{level = 10 : i32, message = "bqd,bkd->bqk"}> : () -> ()
    %cst_6 = arith.constant dense<0.000000e+00> : vector<1x8x8xf32>
    %13 = tpu.matmul %8, %10, %cst_6 {dimension_numbers = #tpu.dot_dimension_numbers<[2], [2], [1], [1], [0, 0, 0, 1, 1, 1], [0], [0]>} : vector<1x8x8xf32>, vector<1x8x8xf32>, vector<1x8x8xf32> -> vector<1x8x8xf32>
    "tpu.trace_stop"() : () -> ()
    %cst_7 = arith.constant dense<0xFF800000> : vector<1x8xf32>
    %14 = vector.multi_reduction <maximumf>, %13, %cst_7 [2] : vector<1x8x8xf32> to vector<1x8xf32>
    %15 = vector.shape_cast %14 : vector<1x8xf32> to vector<1x8x1xf32>
    %16 = vector.broadcast %15 : vector<1x8x1xf32> to vector<1x8x8xf32>
    %17 = arith.subf %13, %16 : vector<1x8x8xf32>
    %18 = math.exp %17 : vector<1x8x8xf32>
    %cst_8 = arith.constant dense<0.000000e+00> : vector<1x8xf32>
    %19 = vector.multi_reduction <add>, %18, %cst_8 [2] : vector<1x8x8xf32> to vector<1x8xf32>
    %20 = vector.shape_cast %19 : vector<1x8xf32> to vector<1x8x1xf32>
    %21 = vector.broadcast %20 : vector<1x8x1xf32> to vector<1x8x8xf32>
    %22 = arith.divf %18, %21 : vector<1x8x8xf32>
    "tpu.trace_start"() <{level = 10 : i32, message = "bqk,bkd->bqd"}> : () -> ()
    %cst_9 = arith.constant dense<0.000000e+00> : vector<1x8x8xf32>
    %23 = tpu.matmul %22, %12, %cst_9 {dimension_numbers = #tpu.dot_dimension_numbers<[2], [1], [1], [2], [0, 0, 0, 1, 1, 2], [0], [0]>} : vector<1x8x8xf32>, vector<1x8x8xf32>, vector<1x8x8xf32> -> vector<1x8x8xf32>
    "tpu.trace_stop"() : () -> ()
    %24 = vector.shape_cast %23 : vector<1x8x8xf32> to vector<8x8xf32>
    %c0_10 = arith.constant 0 : index
    %c0_11 = arith.constant 0 : index
    %25 = vector.load %arg15[%c0_10, %c0_11] : memref<8x32xf32, #tpu.memory_space<vmem>>, vector<8x8xf32>
    tpu.vector_store %arg15[%c0_10, %c0_11], %24 {strides = array<i32>} : memref<8x32xf32, #tpu.memory_space<vmem>>, vector<8x8xf32>,
    %26 = vector.extract_strided_slice %6 {offsets = [0, 8], sizes = [8, 8], strides = [1, 1]} : vector<8x96xf32> to vector<8x8xf32>
    %27 = vector.shape_cast %26 : vector<8x8xf32> to vector<1x8x8xf32>
    %28 = vector.extract_strided_slice %6 {offsets = [0, 40], sizes = [8, 8], strides = [1, 1]} : vector<8x96xf32> to vector<8x8xf32>
    %29 = vector.shape_cast %28 : vector<8x8xf32> to vector<1x8x8xf32>
    %30 = vector.extract_strided_slice %6 {offsets = [0, 72], sizes = [8, 8], strides = [1, 1]} : vector<8x96xf32> to vector<8x8xf32>
    %31 = vector.shape_cast %30 : vector<8x8xf32> to vector<1x8x8xf32>
    "tpu.trace_start"() <{level = 10 : i32, message = "bqd,bkd->bqk"}> : () -> ()
    %cst_12 = arith.constant dense<0.000000e+00> : vector<1x8x8xf32>
    %32 = tpu.matmul %27, %29, %cst_12 {dimension_numbers = #tpu.dot_dimension_numbers<[2], [2], [1], [1], [0, 0, 0, 1, 1, 1], [0], [0]>} : vector<1x8x8xf32>, vector<1x8x8xf32>, vector<1x8x8xf32> -> vector<1x8x8xf32>
    "tpu.trace_stop"() : () -> ()
    %cst_13 = arith.constant dense<0xFF800000> : vector<1x8xf32>
    %33 = vector.multi_reduction <maximumf>, %32, %cst_13 [2] : vector<1x8x8xf32> to vector<1x8xf32>
    %34 = vector.shape_cast %33 : vector<1x8xf32> to vector<1x8x1xf32>
    %35 = vector.broadcast %34 : vector<1x8x1xf32> to vector<1x8x8xf32>
    %36 = arith.subf %32, %35 : vector<1x8x8xf32>
    %37 = math.exp %36 : vector<1x8x8xf32>
    %cst_14 = arith.constant dense<0.000000e+00> : vector<1x8xf32>
    %38 = vector.multi_reduction <add>, %37, %cst_14 [2] : vector<1x8x8xf32> to vector<1x8xf32>
    %39 = vector.shape_cast %38 : vector<1x8xf32> to vector<1x8x1xf32>
    %40 = vector.broadcast %39 : vector<1x8x1xf32> to vector<1x8x8xf32>
    %41 = arith.divf %37, %40 : vector<1x8x8xf32>
    "tpu.trace_start"() <{level = 10 : i32, message = "bqk,bkd->bqd"}> : () -> ()
    %cst_15 = arith.constant dense<0.000000e+00> : vector<1x8x8xf32>
    %42 = tpu.matmul %41, %31, %cst_15 {dimension_numbers = #tpu.dot_dimension_numbers<[2], [1], [1], [2], [0, 0, 0, 1, 1, 2], [0], [0]>} : vector<1x8x8xf32>, vector<1x8x8xf32>, vector<1x8x8xf32> -> vector<1x8x8xf32>
    "tpu.trace_stop"() : () -> ()
    %43 = vector.shape_cast %42 : vector<1x8x8xf32> to vector<8x8xf32>
    %c0_16 = arith.constant 0 : index
    %c8 = arith.constant 8 : index
    %44 = vector.load %arg15[%c0_16, %c8] : memref<8x32xf32, #tpu.memory_space<vmem>>, vector<8x8xf32>
    tpu.vector_store %arg15[%c0_16, %c8], %43 {strides = array<i32>} : memref<8x32xf32, #tpu.memory_space<vmem>>, vector<8x8xf32>,
    %45 = vector.extract_strided_slice %6 {offsets = [0, 16], sizes = [8, 8], strides = [1, 1]} : vector<8x96xf32> to vector<8x8xf32>
    %46 = vector.shape_cast %45 : vector<8x8xf32> to vector<1x8x8xf32>
    %47 = vector.extract_strided_slice %6 {offsets = [0, 48], sizes = [8, 8], strides = [1, 1]} : vector<8x96xf32> to vector<8x8xf32>
    %48 = vector.shape_cast %47 : vector<8x8xf32> to vector<1x8x8xf32>
    %49 = vector.extract_strided_slice %6 {offsets = [0, 80], sizes = [8, 8], strides = [1, 1]} : vector<8x96xf32> to vector<8x8xf32>
    %50 = vector.shape_cast %49 : vector<8x8xf32> to vector<1x8x8xf32>
    "tpu.trace_start"() <{level = 10 : i32, message = "bqd,bkd->bqk"}> : () -> ()
    %cst_17 = arith.constant dense<0.000000e+00> : vector<1x8x8xf32>
    %51 = tpu.matmul %46, %48, %cst_17 {dimension_numbers = #tpu.dot_dimension_numbers<[2], [2], [1], [1], [0, 0, 0, 1, 1, 1], [0], [0]>} : vector<1x8x8xf32>, vector<1x8x8xf32>, vector<1x8x8xf32> -> vector<1x8x8xf32>
    "tpu.trace_stop"() : () -> ()
    %cst_18 = arith.constant dense<0xFF800000> : vector<1x8xf32>
    %52 = vector.multi_reduction <maximumf>, %51, %cst_18 [2] : vector<1x8x8xf32> to vector<1x8xf32>
    %53 = vector.shape_cast %52 : vector<1x8xf32> to vector<1x8x1xf32>
    %54 = vector.broadcast %53 : vector<1x8x1xf32> to vector<1x8x8xf32>
    %55 = arith.subf %51, %54 : vector<1x8x8xf32>
    %56 = math.exp %55 : vector<1x8x8xf32>
    %cst_19 = arith.constant dense<0.000000e+00> : vector<1x8xf32>
    %57 = vector.multi_reduction <add>, %56, %cst_19 [2] : vector<1x8x8xf32> to vector<1x8xf32>
    %58 = vector.shape_cast %57 : vector<1x8xf32> to vector<1x8x1xf32>
    %59 = vector.broadcast %58 : vector<1x8x1xf32> to vector<1x8x8xf32>
    %60 = arith.divf %56, %59 : vector<1x8x8xf32>
    "tpu.trace_start"() <{level = 10 : i32, message = "bqk,bkd->bqd"}> : () -> ()
    %cst_20 = arith.constant dense<0.000000e+00> : vector<1x8x8xf32>
    %61 = tpu.matmul %60, %50, %cst_20 {dimension_numbers = #tpu.dot_dimension_numbers<[2], [1], [1], [2], [0, 0, 0, 1, 1, 2], [0], [0]>} : vector<1x8x8xf32>, vector<1x8x8xf32>, vector<1x8x8xf32> -> vector<1x8x8xf32>
    "tpu.trace_stop"() : () -> ()
    %62 = vector.shape_cast %61 : vector<1x8x8xf32> to vector<8x8xf32>
    %c0_21 = arith.constant 0 : index
    %c16 = arith.constant 16 : index
    %63 = vector.load %arg15[%c0_21, %c16] : memref<8x32xf32, #tpu.memory_space<vmem>>, vector<8x8xf32>
    tpu.vector_store %arg15[%c0_21, %c16], %62 {strides = array<i32>} : memref<8x32xf32, #tpu.memory_space<vmem>>, vector<8x8xf32>,
    %64 = vector.extract_strided_slice %6 {offsets = [0, 24], sizes = [8, 8], strides = [1, 1]} : vector<8x96xf32> to vector<8x8xf32>
    %65 = vector.shape_cast %64 : vector<8x8xf32> to vector<1x8x8xf32>
    %66 = vector.extract_strided_slice %6 {offsets = [0, 56], sizes = [8, 8], strides = [1, 1]} : vector<8x96xf32> to vector<8x8xf32>
    %67 = vector.shape_cast %66 : vector<8x8xf32> to vector<1x8x8xf32>
    %68 = vector.extract_strided_slice %6 {offsets = [0, 88], sizes = [8, 8], strides = [1, 1]} : vector<8x96xf32> to vector<8x8xf32>
    %69 = vector.shape_cast %68 : vector<8x8xf32> to vector<1x8x8xf32>
    "tpu.trace_start"() <{level = 10 : i32, message = "bqd,bkd->bqk"}> : () -> ()
    %cst_22 = arith.constant dense<0.000000e+00> : vector<1x8x8xf32>
    %70 = tpu.matmul %65, %67, %cst_22 {dimension_numbers = #tpu.dot_dimension_numbers<[2], [2], [1], [1], [0, 0, 0, 1, 1, 1], [0], [0]>} : vector<1x8x8xf32>, vector<1x8x8xf32>, vector<1x8x8xf32> -> vector<1x8x8xf32>
    "tpu.trace_stop"() : () -> ()
    %cst_23 = arith.constant dense<0xFF800000> : vector<1x8xf32>
    %71 = vector.multi_reduction <maximumf>, %70, %cst_23 [2] : vector<1x8x8xf32> to vector<1x8xf32>
    %72 = vector.shape_cast %71 : vector<1x8xf32> to vector<1x8x1xf32>
    %73 = vector.broadcast %72 : vector<1x8x1xf32> to vector<1x8x8xf32>
    %74 = arith.subf %70, %73 : vector<1x8x8xf32>
    %75 = math.exp %74 : vector<1x8x8xf32>
    %cst_24 = arith.constant dense<0.000000e+00> : vector<1x8xf32>
    %76 = vector.multi_reduction <add>, %75, %cst_24 [2] : vector<1x8x8xf32> to vector<1x8xf32>
    %77 = vector.shape_cast %76 : vector<1x8xf32> to vector<1x8x1xf32>
    %78 = vector.broadcast %77 : vector<1x8x1xf32> to vector<1x8x8xf32>
    %79 = arith.divf %75, %78 : vector<1x8x8xf32>
    "tpu.trace_start"() <{level = 10 : i32, message = "bqk,bkd->bqd"}> : () -> ()
    %cst_25 = arith.constant dense<0.000000e+00> : vector<1x8x8xf32>
    %80 = tpu.matmul %79, %69, %cst_25 {dimension_numbers = #tpu.dot_dimension_numbers<[2], [1], [1], [2], [0, 0, 0, 1, 1, 2], [0], [0]>} : vector<1x8x8xf32>, vector<1x8x8xf32>, vector<1x8x8xf32> -> vector<1x8x8xf32>
    "tpu.trace_stop"() : () -> ()
    %81 = vector.shape_cast %80 : vector<1x8x8xf32> to vector<8x8xf32>
    %c0_26 = arith.constant 0 : index
    %c24 = arith.constant 24 : index
    %82 = vector.load %arg15[%c0_26, %c24] : memref<8x32xf32, #tpu.memory_space<vmem>>, vector<8x8xf32>
    tpu.vector_store %arg15[%c0_26, %c24], %81 {strides = array<i32>} : memref<8x32xf32, #tpu.memory_space<vmem>>, vector<8x8xf32>,
    %c0_27 = arith.constant 0 : index
    %c0_28 = arith.constant 0 : index
    %83 = vector.load %arg15[%c0_27, %c0_28] : memref<8x32xf32, #tpu.memory_space<vmem>>, vector<8x32xf32>
    %c0_29 = arith.constant 0 : index
    %c0_30 = arith.constant 0 : index
    %84 = vector.load %arg4[%c0_29, %c0_30] : memref<32x32xf32, #tpu.memory_space<vmem>>, vector<32x32xf32>
    %cst_31 = arith.constant dense<0.000000e+00> : vector<8x32xf32>
    %85 = tpu.matmul %83, %84, %cst_31 {dimension_numbers = #tpu.dot_dimension_numbers<[1], [0], [0], [1], [0, 0, 1, 1], [], []>} : vector<8x32xf32>, vector<32x32xf32>, vector<8x32xf32> -> vector<8x32xf32>
    %c0_32 = arith.constant 0 : index
    %c0_33 = arith.constant 0 : index
    %86 = vector.load %arg5[%c0_32, %c0_33] : memref<1x32xf32, #tpu.memory_space<vmem>>, vector<1x32xf32>
    %87 = vector.broadcast %86 : vector<1x32xf32> to vector<8x32xf32>
    %88 = arith.addf %85, %87 : vector<8x32xf32>
    %89 = arith.addf %1, %88 : vector<8x32xf32>
    %c0_34 = arith.constant 0 : index
    %c0_35 = arith.constant 0 : index
    %90 = vector.load %arg6[%c0_34, %c0_35] : memref<1x32xf32, #tpu.memory_space<vmem>>, vector<1x32xf32>
    %c0_36 = arith.constant 0 : index
    %c0_37 = arith.constant 0 : index
    %91 = vector.load %arg7[%c0_36, %c0_37] : memref<1x32xf32, #tpu.memory_space<vmem>>, vector<1x32xf32>
    %cst_38 = arith.constant dense<0.000000e+00> : vector<8xf32>
    %92 = vector.multi_reduction <add>, %89, %cst_38 [1] : vector<8x32xf32> to vector<8xf32>
    %93 = vector.shape_cast %92 : vector<8xf32> to vector<8x1xf32>
    %cst_39 = arith.constant 3.200000e+01 : f32
    %94 = vector.broadcast %cst_39 : f32 to vector<8x1xf32>
    %95 = arith.divf %93, %94 : vector<8x1xf32>
    %96 = vector.broadcast %95 : vector<8x1xf32> to vector<8x32xf32>
    %97 = arith.subf %89, %96 : vector<8x32xf32>
    %98 = arith.mulf %97, %97 : vector<8x32xf32>
    %cst_40 = arith.constant dense<0.000000e+00> : vector<8xf32>
    %99 = vector.multi_reduction <add>, %98, %cst_40 [1] : vector<8x32xf32> to vector<8xf32>
    %100 = vector.shape_cast %99 : vector<8xf32> to vector<8x1xf32>
    %cst_41 = arith.constant 3.200000e+01 : f32
    %101 = vector.broadcast %cst_41 : f32 to vector<8x1xf32>
    %102 = arith.divf %100, %101 : vector<8x1xf32>
    %103 = vector.broadcast %95 : vector<8x1xf32> to vector<8x32xf32>
    %104 = arith.subf %89, %103 : vector<8x32xf32>
    %cst_42 = arith.constant 9.99999974E-6 : f32
    %105 = vector.broadcast %cst_42 : f32 to vector<8x1xf32>
    %106 = arith.addf %102, %105 : vector<8x1xf32>
    %107 = math.rsqrt %106 : vector<8x1xf32>
    %108 = vector.broadcast %107 : vector<8x1xf32> to vector<8x32xf32>
    %109 = arith.mulf %104, %108 : vector<8x32xf32>
    %110 = vector.broadcast %90 : vector<1x32xf32> to vector<8x32xf32>
    %111 = arith.mulf %109, %110 : vector<8x32xf32>
    %112 = vector.broadcast %91 : vector<1x32xf32> to vector<8x32xf32>
    %113 = arith.addf %111, %112 : vector<8x32xf32>
    %c0_43 = arith.constant 0 : index
    %c0_44 = arith.constant 0 : index
    %114 = vector.load %arg8[%c0_43, %c0_44] : memref<32x64xf32, #tpu.memory_space<vmem>>, vector<32x64xf32>
    %cst_45 = arith.constant dense<0.000000e+00> : vector<8x64xf32>
    %115 = tpu.matmul %113, %114, %cst_45 {dimension_numbers = #tpu.dot_dimension_numbers<[1], [0], [0], [1], [0, 0, 1, 1], [], []>} : vector<8x32xf32>, vector<32x64xf32>, vector<8x64xf32> -> vector<8x64xf32>
    %c0_46 = arith.constant 0 : index
    %c0_47 = arith.constant 0 : index
    %116 = vector.load %arg9[%c0_46, %c0_47] : memref<1x64xf32, #tpu.memory_space<vmem>>, vector<1x64xf32>
    %117 = vector.broadcast %116 : vector<1x64xf32> to vector<8x64xf32>
    %118 = arith.addf %115, %117 : vector<8x64xf32>
    %cst_48 = arith.constant 0.000000e+00 : f32
    %119 = vector.broadcast %cst_48 : f32 to vector<8x64xf32>
    %120 = arith.maximumf %118, %119 : vector<8x64xf32>
    %c0_49 = arith.constant 0 : index
    %c0_50 = arith.constant 0 : index
    %121 = vector.load %arg10[%c0_49, %c0_50] : memref<64x32xf32, #tpu.memory_space<vmem>>, vector<64x32xf32>
    %cst_51 = arith.constant dense<0.000000e+00> : vector<8x32xf32>
    %122 = tpu.matmul %120, %121, %cst_51 {dimension_numbers = #tpu.dot_dimension_numbers<[1], [0], [0], [1], [0, 0, 1, 1], [], []>} : vector<8x64xf32>, vector<64x32xf32>, vector<8x32xf32> -> vector<8x32xf32>
    %c0_52 = arith.constant 0 : index
    %c0_53 = arith.constant 0 : index
    %123 = vector.load %arg11[%c0_52, %c0_53] : memref<1x32xf32, #tpu.memory_space<vmem>>, vector<1x32xf32>
    %124 = vector.broadcast %123 : vector<1x32xf32> to vector<8x32xf32>
    %125 = arith.addf %122, %124 : vector<8x32xf32>
    %126 = arith.addf %113, %125 : vector<8x32xf32>
    %c0_54 = arith.constant 0 : index
    %c0_55 = arith.constant 0 : index
    %127 = vector.load %arg12[%c0_54, %c0_55] : memref<1x32xf32, #tpu.memory_space<vmem>>, vector<1x32xf32>
    %c0_56 = arith.constant 0 : index
    %c0_57 = arith.constant 0 : index
    %128 = vector.load %arg13[%c0_56, %c0_57] : memref<1x32xf32, #tpu.memory_space<vmem>>, vector<1x32xf32>
    %cst_58 = arith.constant dense<0.000000e+00> : vector<8xf32>
    %129 = vector.multi_reduction <add>, %126, %cst_58 [1] : vector<8x32xf32> to vector<8xf32>
    %130 = vector.shape_cast %129 : vector<8xf32> to vector<8x1xf32>
    %cst_59 = arith.constant 3.200000e+01 : f32
    %131 = vector.broadcast %cst_59 : f32 to vector<8x1xf32>
    %132 = arith.divf %130, %131 : vector<8x1xf32>
    %133 = vector.broadcast %132 : vector<8x1xf32> to vector<8x32xf32>
    %134 = arith.subf %126, %133 : vector<8x32xf32>
    %135 = arith.mulf %134, %134 : vector<8x32xf32>
    %cst_60 = arith.constant dense<0.000000e+00> : vector<8xf32>
    %136 = vector.multi_reduction <add>, %135, %cst_60 [1] : vector<8x32xf32> to vector<8xf32>
    %137 = vector.shape_cast %136 : vector<8xf32> to vector<8x1xf32>
    %cst_61 = arith.constant 3.200000e+01 : f32
    %138 = vector.broadcast %cst_61 : f32 to vector<8x1xf32>
    %139 = arith.divf %137, %138 : vector<8x1xf32>
    %140 = vector.broadcast %132 : vector<8x1xf32> to vector<8x32xf32>
    %141 = arith.subf %126, %140 : vector<8x32xf32>
    %cst_62 = arith.constant 9.99999974E-6 : f32
    %142 = vector.broadcast %cst_62 : f32 to vector<8x1xf32>
    %143 = arith.addf %139, %142 : vector<8x1xf32>
    %144 = math.rsqrt %143 : vector<8x1xf32>
    %145 = vector.broadcast %144 : vector<8x1xf32> to vector<8x32xf32>
    %146 = arith.mulf %141, %145 : vector<8x32xf32>
    %147 = vector.broadcast %127 : vector<1x32xf32> to vector<8x32xf32>
    %148 = arith.mulf %146, %147 : vector<8x32xf32>
    %149 = vector.broadcast %128 : vector<1x32xf32> to vector<8x32xf32>
    %150 = arith.addf %148, %149 : vector<8x32xf32>
    %151 = vector.shape_cast %150 : vector<8x32xf32> to vector<1x8x32xf32>
    %c0_63 = arith.constant 0 : index
    %c0_64 = arith.constant 0 : index
    %c0_65 = arith.constant 0 : index
    %152 = vector.load %arg14[%c0_63, %c0_64, %c0_65] : memref<1x8x32xf32, #tpu.memory_space<vmem>>, vector<1x8x32xf32>
    tpu.vector_store %arg14[%c0_63, %c0_64, %c0_65], %151 {strides = array<i32>} : memref<1x8x32xf32, #tpu.memory_space<vmem>>, vector<1x8x32xf32>,
    return
  }
  func.func @transform_0(%arg0: i32) -> (i32, i32, i32) {
    %c0_i32 = arith.constant 0 : i32
    %c0_i32_0 = arith.constant 0 : i32
    %c0_i32_1 = arith.constant 0 : i32
    return %arg0, %c0_i32, %c0_i32_0 : i32, i32, i32
  }
  func.func @transform_1(%arg0: i32) -> (i32, i32) {
    %c0_i32 = arith.constant 0 : i32
    %c0_i32_0 = arith.constant 0 : i32
    %c0_i32_1 = arith.constant 0 : i32
    return %c0_i32, %c0_i32_0 : i32, i32
  }
  func.func @transform_2(%arg0: i32) -> (i32, i32) {
    %c0_i32 = arith.constant 0 : i32
    %c0_i32_0 = arith.constant 0 : i32
    %c0_i32_1 = arith.constant 0 : i32
    return %c0_i32, %c0_i32_0 : i32, i32
  }
  func.func @transform_3(%arg0: i32) -> (i32, i32) {
    %c0_i32 = arith.constant 0 : i32
    %c0_i32_0 = arith.constant 0 : i32
    %c0_i32_1 = arith.constant 0 : i32
    return %c0_i32, %c0_i32_0 : i32, i32
  }
  func.func @transform_4(%arg0: i32) -> (i32, i32) {
    %c0_i32 = arith.constant 0 : i32
    %c0_i32_0 = arith.constant 0 : i32
    %c0_i32_1 = arith.constant 0 : i32
    return %c0_i32, %c0_i32_0 : i32, i32
  }
  func.func @transform_5(%arg0: i32) -> (i32, i32) {
    %c0_i32 = arith.constant 0 : i32
    %c0_i32_0 = arith.constant 0 : i32
    %c0_i32_1 = arith.constant 0 : i32
    return %c0_i32, %c0_i32_0 : i32, i32
  }
  func.func @transform_6(%arg0: i32) -> (i32, i32) {
    %c0_i32 = arith.constant 0 : i32
    %c0_i32_0 = arith.constant 0 : i32
    %c0_i32_1 = arith.constant 0 : i32
    return %c0_i32, %c0_i32_0 : i32, i32
  }
  func.func @transform_7(%arg0: i32) -> (i32, i32) {
    %c0_i32 = arith.constant 0 : i32
    %c0_i32_0 = arith.constant 0 : i32
    %c0_i32_1 = arith.constant 0 : i32
    return %c0_i32, %c0_i32_0 : i32, i32
  }
  func.func @transform_8(%arg0: i32) -> (i32, i32) {
    %c0_i32 = arith.constant 0 : i32
    %c0_i32_0 = arith.constant 0 : i32
    %c0_i32_1 = arith.constant 0 : i32
    return %c0_i32, %c0_i32_0 : i32, i32
  }
  func.func @transform_9(%arg0: i32) -> (i32, i32) {
    %c0_i32 = arith.constant 0 : i32
    %c0_i32_0 = arith.constant 0 : i32
    %c0_i32_1 = arith.constant 0 : i32
    return %c0_i32, %c0_i32_0 : i32, i32
  }
  func.func @transform_10(%arg0: i32) -> (i32, i32) {
    %c0_i32 = arith.constant 0 : i32
    %c0_i32_0 = arith.constant 0 : i32
    %c0_i32_1 = arith.constant 0 : i32
    return %c0_i32, %c0_i32_0 : i32, i32
  }
  func.func @transform_11(%arg0: i32) -> (i32, i32) {
    %c0_i32 = arith.constant 0 : i32
    %c0_i32_0 = arith.constant 0 : i32
    %c0_i32_1 = arith.constant 0 : i32
    return %c0_i32, %c0_i32_0 : i32, i32
  }
  func.func @transform_12(%arg0: i32) -> (i32, i32) {
    %c0_i32 = arith.constant 0 : i32
    %c0_i32_0 = arith.constant 0 : i32
    %c0_i32_1 = arith.constant 0 : i32
    return %c0_i32, %c0_i32_0 : i32, i32
  }
  func.func @transform_13(%arg0: i32) -> (i32, i32, i32) {
    %c0_i32 = arith.constant 0 : i32
    %c0_i32_0 = arith.constant 0 : i32
    %c0_i32_1 = arith.constant 0 : i32
    return %arg0, %c0_i32, %c0_i32_0 : i32, i32, i32
  }
}

module attributes {stable_mosaic.version = 11 : i64} {
  func.func @_encoder_layer_kernel(%arg0: i32, %arg1: memref<1x8x32xf32, #tpu.memory_space<vmem>>, %arg2: memref<8x32xf32, #tpu.memory_space<vmem>>, %arg3: memref<32x96xf32, #tpu.memory_space<vmem>>, %arg4: memref<1x96xf32, #tpu.memory_space<vmem>>, %arg5: memref<32x32xf32, #tpu.memory_space<vmem>>, %arg6: memref<1x32xf32, #tpu.memory_space<vmem>>, %arg7: memref<1x32xf32, #tpu.memory_space<vmem>>, %arg8: memref<1x32xf32, #tpu.memory_space<vmem>>, %arg9: memref<32x64xf32, #tpu.memory_space<vmem>>, %arg10: memref<1x64xf32, #tpu.memory_space<vmem>>, %arg11: memref<64x32xf32, #tpu.memory_space<vmem>>, %arg12: memref<1x32xf32, #tpu.memory_space<vmem>>, %arg13: memref<1x32xf32, #tpu.memory_space<vmem>>, %arg14: memref<1x32xf32, #tpu.memory_space<vmem>>, %arg15: memref<1x8x32xf32, #tpu.memory_space<vmem>>, %arg16: memref<8x32xf32, #tpu.memory_space<vmem>>) attributes {dimension_semantics = [#tpu.dimension_semantics<parallel>], iteration_bounds = array<i64: 2>, scalar_prefetch = 0 : i64, scratch_operands = 1 : i64, tpu.core_type = #tpu.core_type<tc>, window_params = [{transform_indices = @transform_0, window_bounds = array<i64: 1, 8, 32>}, {pipeline_mode = #tpu.pipeline_mode<synchronous>, transform_indices = @transform_1, window_bounds = array<i64: 8, 32>}, {pipeline_mode = #tpu.pipeline_mode<synchronous>, transform_indices = @transform_2, window_bounds = array<i64: 32, 96>}, {pipeline_mode = #tpu.pipeline_mode<synchronous>, transform_indices = @transform_3, window_bounds = array<i64: 1, 96>}, {pipeline_mode = #tpu.pipeline_mode<synchronous>, transform_indices = @transform_4, window_bounds = array<i64: 32, 32>}, {pipeline_mode = #tpu.pipeline_mode<synchronous>, transform_indices = @transform_5, window_bounds = array<i64: 1, 32>}, {pipeline_mode = #tpu.pipeline_mode<synchronous>, transform_indices = @transform_6, window_bounds = array<i64: 1, 32>}, {pipeline_mode = #tpu.pipeline_mode<synchronous>, transform_indices = @transform_7, window_bounds = array<i64: 1, 32>}, {pipeline_mode = #tpu.pipeline_mode<synchronous>, transform_indices = @transform_8, window_bounds = array<i64: 32, 64>}, {pipeline_mode = #tpu.pipeline_mode<synchronous>, transform_indices = @transform_9, window_bounds = array<i64: 1, 64>}, {pipeline_mode = #tpu.pipeline_mode<synchronous>, transform_indices = @transform_10, window_bounds = array<i64: 64, 32>}, {pipeline_mode = #tpu.pipeline_mode<synchronous>, transform_indices = @transform_11, window_bounds = array<i64: 1, 32>}, {pipeline_mode = #tpu.pipeline_mode<synchronous>, transform_indices = @transform_12, window_bounds = array<i64: 1, 32>}, {pipeline_mode = #tpu.pipeline_mode<synchronous>, transform_indices = @transform_13, window_bounds = array<i64: 1, 32>}, {transform_indices = @transform_14, window_bounds = array<i64: 1, 8, 32>}]} {
    %c0 = arith.constant 0 : index
    %c0_0 = arith.constant 0 : index
    %c0_1 = arith.constant 0 : index
    %0 = vector.load %arg1[%c0, %c0_0, %c0_1] : memref<1x8x32xf32, #tpu.memory_space<vmem>>, vector<1x8x32xf32>
    %c0_2 = arith.constant 0 : index
    %c0_3 = arith.constant 0 : index
    %1 = vector.load %arg2[%c0_2, %c0_3] : memref<8x32xf32, #tpu.memory_space<vmem>>, vector<8x32xf32>
    %2 = vector.shape_cast %1 : vector<8x32xf32> to vector<1x8x32xf32>
    %3 = arith.addf %0, %2 : vector<1x8x32xf32>
    %4 = vector.shape_cast %3 : vector<1x8x32xf32> to vector<8x32xf32>
    %c0_4 = arith.constant 0 : index
    %c0_5 = arith.constant 0 : index
    %5 = vector.load %arg3[%c0_4, %c0_5] : memref<32x96xf32, #tpu.memory_space<vmem>>, vector<32x96xf32>
    %cst = arith.constant dense<0.000000e+00> : vector<8x96xf32>
    %6 = tpu.matmul %4, %5, %cst {dimension_numbers = #tpu.dot_dimension_numbers<[1], [0], [0], [1], [0, 0, 1, 1], [], []>} : vector<8x32xf32>, vector<32x96xf32>, vector<8x96xf32> -> vector<8x96xf32>
    %c0_6 = arith.constant 0 : index
    %c0_7 = arith.constant 0 : index
    %7 = vector.load %arg4[%c0_6, %c0_7] : memref<1x96xf32, #tpu.memory_space<vmem>>, vector<1x96xf32>
    %8 = vector.broadcast %7 : vector<1x96xf32> to vector<8x96xf32>
    %9 = arith.addf %6, %8 : vector<8x96xf32>
    %10 = vector.extract_strided_slice %9 {offsets = [0, 0], sizes = [8, 8], strides = [1, 1]} : vector<8x96xf32> to vector<8x8xf32>
    %11 = vector.shape_cast %10 : vector<8x8xf32> to vector<1x8x8xf32>
    %12 = vector.extract_strided_slice %9 {offsets = [0, 32], sizes = [8, 8], strides = [1, 1]} : vector<8x96xf32> to vector<8x8xf32>
    %13 = vector.shape_cast %12 : vector<8x8xf32> to vector<1x8x8xf32>
    %14 = vector.extract_strided_slice %9 {offsets = [0, 64], sizes = [8, 8], strides = [1, 1]} : vector<8x96xf32> to vector<8x8xf32>
    %15 = vector.shape_cast %14 : vector<8x8xf32> to vector<1x8x8xf32>
    "tpu.trace_start"() <{level = 10 : i32, message = "bqd,bkd->bqk"}> : () -> ()
    %cst_8 = arith.constant dense<0.000000e+00> : vector<1x8x8xf32>
    %16 = tpu.matmul %11, %13, %cst_8 {dimension_numbers = #tpu.dot_dimension_numbers<[2], [2], [1], [1], [0, 0, 0, 1, 1, 1], [0], [0]>} : vector<1x8x8xf32>, vector<1x8x8xf32>, vector<1x8x8xf32> -> vector<1x8x8xf32>
    "tpu.trace_stop"() : () -> ()
    %cst_9 = arith.constant dense<0xFF800000> : vector<1x8xf32>
    %17 = vector.multi_reduction <maximumf>, %16, %cst_9 [2] : vector<1x8x8xf32> to vector<1x8xf32>
    %18 = vector.shape_cast %17 : vector<1x8xf32> to vector<1x8x1xf32>
    %19 = vector.broadcast %18 : vector<1x8x1xf32> to vector<1x8x8xf32>
    %20 = arith.subf %16, %19 : vector<1x8x8xf32>
    %21 = math.exp %20 : vector<1x8x8xf32>
    %cst_10 = arith.constant dense<0.000000e+00> : vector<1x8xf32>
    %22 = vector.multi_reduction <add>, %21, %cst_10 [2] : vector<1x8x8xf32> to vector<1x8xf32>
    %23 = vector.shape_cast %22 : vector<1x8xf32> to vector<1x8x1xf32>
    %24 = vector.broadcast %23 : vector<1x8x1xf32> to vector<1x8x8xf32>
    %25 = arith.divf %21, %24 : vector<1x8x8xf32>
    "tpu.trace_start"() <{level = 10 : i32, message = "bqk,bkd->bqd"}> : () -> ()
    %cst_11 = arith.constant dense<0.000000e+00> : vector<1x8x8xf32>
    %26 = tpu.matmul %25, %15, %cst_11 {dimension_numbers = #tpu.dot_dimension_numbers<[2], [1], [1], [2], [0, 0, 0, 1, 1, 2], [0], [0]>} : vector<1x8x8xf32>, vector<1x8x8xf32>, vector<1x8x8xf32> -> vector<1x8x8xf32>
    "tpu.trace_stop"() : () -> ()
    %27 = vector.shape_cast %26 : vector<1x8x8xf32> to vector<8x8xf32>
    %c0_12 = arith.constant 0 : index
    %c0_13 = arith.constant 0 : index
    %28 = vector.load %arg16[%c0_12, %c0_13] : memref<8x32xf32, #tpu.memory_space<vmem>>, vector<8x8xf32>
    tpu.vector_store %arg16[%c0_12, %c0_13], %27 {strides = array<i32>} : memref<8x32xf32, #tpu.memory_space<vmem>>, vector<8x8xf32>,
    %29 = vector.extract_strided_slice %9 {offsets = [0, 8], sizes = [8, 8], strides = [1, 1]} : vector<8x96xf32> to vector<8x8xf32>
    %30 = vector.shape_cast %29 : vector<8x8xf32> to vector<1x8x8xf32>
    %31 = vector.extract_strided_slice %9 {offsets = [0, 40], sizes = [8, 8], strides = [1, 1]} : vector<8x96xf32> to vector<8x8xf32>
    %32 = vector.shape_cast %31 : vector<8x8xf32> to vector<1x8x8xf32>
    %33 = vector.extract_strided_slice %9 {offsets = [0, 72], sizes = [8, 8], strides = [1, 1]} : vector<8x96xf32> to vector<8x8xf32>
    %34 = vector.shape_cast %33 : vector<8x8xf32> to vector<1x8x8xf32>
    "tpu.trace_start"() <{level = 10 : i32, message = "bqd,bkd->bqk"}> : () -> ()
    %cst_14 = arith.constant dense<0.000000e+00> : vector<1x8x8xf32>
    %35 = tpu.matmul %30, %32, %cst_14 {dimension_numbers = #tpu.dot_dimension_numbers<[2], [2], [1], [1], [0, 0, 0, 1, 1, 1], [0], [0]>} : vector<1x8x8xf32>, vector<1x8x8xf32>, vector<1x8x8xf32> -> vector<1x8x8xf32>
    "tpu.trace_stop"() : () -> ()
    %cst_15 = arith.constant dense<0xFF800000> : vector<1x8xf32>
    %36 = vector.multi_reduction <maximumf>, %35, %cst_15 [2] : vector<1x8x8xf32> to vector<1x8xf32>
    %37 = vector.shape_cast %36 : vector<1x8xf32> to vector<1x8x1xf32>
    %38 = vector.broadcast %37 : vector<1x8x1xf32> to vector<1x8x8xf32>
    %39 = arith.subf %35, %38 : vector<1x8x8xf32>
    %40 = math.exp %39 : vector<1x8x8xf32>
    %cst_16 = arith.constant dense<0.000000e+00> : vector<1x8xf32>
    %41 = vector.multi_reduction <add>, %40, %cst_16 [2] : vector<1x8x8xf32> to vector<1x8xf32>
    %42 = vector.shape_cast %41 : vector<1x8xf32> to vector<1x8x1xf32>
    %43 = vector.broadcast %42 : vector<1x8x1xf32> to vector<1x8x8xf32>
    %44 = arith.divf %40, %43 : vector<1x8x8xf32>
    "tpu.trace_start"() <{level = 10 : i32, message = "bqk,bkd->bqd"}> : () -> ()
    %cst_17 = arith.constant dense<0.000000e+00> : vector<1x8x8xf32>
    %45 = tpu.matmul %44, %34, %cst_17 {dimension_numbers = #tpu.dot_dimension_numbers<[2], [1], [1], [2], [0, 0, 0, 1, 1, 2], [0], [0]>} : vector<1x8x8xf32>, vector<1x8x8xf32>, vector<1x8x8xf32> -> vector<1x8x8xf32>
    "tpu.trace_stop"() : () -> ()
    %46 = vector.shape_cast %45 : vector<1x8x8xf32> to vector<8x8xf32>
    %c0_18 = arith.constant 0 : index
    %c8 = arith.constant 8 : index
    %47 = vector.load %arg16[%c0_18, %c8] : memref<8x32xf32, #tpu.memory_space<vmem>>, vector<8x8xf32>
    tpu.vector_store %arg16[%c0_18, %c8], %46 {strides = array<i32>} : memref<8x32xf32, #tpu.memory_space<vmem>>, vector<8x8xf32>,
    %48 = vector.extract_strided_slice %9 {offsets = [0, 16], sizes = [8, 8], strides = [1, 1]} : vector<8x96xf32> to vector<8x8xf32>
    %49 = vector.shape_cast %48 : vector<8x8xf32> to vector<1x8x8xf32>
    %50 = vector.extract_strided_slice %9 {offsets = [0, 48], sizes = [8, 8], strides = [1, 1]} : vector<8x96xf32> to vector<8x8xf32>
    %51 = vector.shape_cast %50 : vector<8x8xf32> to vector<1x8x8xf32>
    %52 = vector.extract_strided_slice %9 {offsets = [0, 80], sizes = [8, 8], strides = [1, 1]} : vector<8x96xf32> to vector<8x8xf32>
    %53 = vector.shape_cast %52 : vector<8x8xf32> to vector<1x8x8xf32>
    "tpu.trace_start"() <{level = 10 : i32, message = "bqd,bkd->bqk"}> : () -> ()
    %cst_19 = arith.constant dense<0.000000e+00> : vector<1x8x8xf32>
    %54 = tpu.matmul %49, %51, %cst_19 {dimension_numbers = #tpu.dot_dimension_numbers<[2], [2], [1], [1], [0, 0, 0, 1, 1, 1], [0], [0]>} : vector<1x8x8xf32>, vector<1x8x8xf32>, vector<1x8x8xf32> -> vector<1x8x8xf32>
    "tpu.trace_stop"() : () -> ()
    %cst_20 = arith.constant dense<0xFF800000> : vector<1x8xf32>
    %55 = vector.multi_reduction <maximumf>, %54, %cst_20 [2] : vector<1x8x8xf32> to vector<1x8xf32>
    %56 = vector.shape_cast %55 : vector<1x8xf32> to vector<1x8x1xf32>
    %57 = vector.broadcast %56 : vector<1x8x1xf32> to vector<1x8x8xf32>
    %58 = arith.subf %54, %57 : vector<1x8x8xf32>
    %59 = math.exp %58 : vector<1x8x8xf32>
    %cst_21 = arith.constant dense<0.000000e+00> : vector<1x8xf32>
    %60 = vector.multi_reduction <add>, %59, %cst_21 [2] : vector<1x8x8xf32> to vector<1x8xf32>
    %61 = vector.shape_cast %60 : vector<1x8xf32> to vector<1x8x1xf32>
    %62 = vector.broadcast %61 : vector<1x8x1xf32> to vector<1x8x8xf32>
    %63 = arith.divf %59, %62 : vector<1x8x8xf32>
    "tpu.trace_start"() <{level = 10 : i32, message = "bqk,bkd->bqd"}> : () -> ()
    %cst_22 = arith.constant dense<0.000000e+00> : vector<1x8x8xf32>
    %64 = tpu.matmul %63, %53, %cst_22 {dimension_numbers = #tpu.dot_dimension_numbers<[2], [1], [1], [2], [0, 0, 0, 1, 1, 2], [0], [0]>} : vector<1x8x8xf32>, vector<1x8x8xf32>, vector<1x8x8xf32> -> vector<1x8x8xf32>
    "tpu.trace_stop"() : () -> ()
    %65 = vector.shape_cast %64 : vector<1x8x8xf32> to vector<8x8xf32>
    %c0_23 = arith.constant 0 : index
    %c16 = arith.constant 16 : index
    %66 = vector.load %arg16[%c0_23, %c16] : memref<8x32xf32, #tpu.memory_space<vmem>>, vector<8x8xf32>
    tpu.vector_store %arg16[%c0_23, %c16], %65 {strides = array<i32>} : memref<8x32xf32, #tpu.memory_space<vmem>>, vector<8x8xf32>,
    %67 = vector.extract_strided_slice %9 {offsets = [0, 24], sizes = [8, 8], strides = [1, 1]} : vector<8x96xf32> to vector<8x8xf32>
    %68 = vector.shape_cast %67 : vector<8x8xf32> to vector<1x8x8xf32>
    %69 = vector.extract_strided_slice %9 {offsets = [0, 56], sizes = [8, 8], strides = [1, 1]} : vector<8x96xf32> to vector<8x8xf32>
    %70 = vector.shape_cast %69 : vector<8x8xf32> to vector<1x8x8xf32>
    %71 = vector.extract_strided_slice %9 {offsets = [0, 88], sizes = [8, 8], strides = [1, 1]} : vector<8x96xf32> to vector<8x8xf32>
    %72 = vector.shape_cast %71 : vector<8x8xf32> to vector<1x8x8xf32>
    "tpu.trace_start"() <{level = 10 : i32, message = "bqd,bkd->bqk"}> : () -> ()
    %cst_24 = arith.constant dense<0.000000e+00> : vector<1x8x8xf32>
    %73 = tpu.matmul %68, %70, %cst_24 {dimension_numbers = #tpu.dot_dimension_numbers<[2], [2], [1], [1], [0, 0, 0, 1, 1, 1], [0], [0]>} : vector<1x8x8xf32>, vector<1x8x8xf32>, vector<1x8x8xf32> -> vector<1x8x8xf32>
    "tpu.trace_stop"() : () -> ()
    %cst_25 = arith.constant dense<0xFF800000> : vector<1x8xf32>
    %74 = vector.multi_reduction <maximumf>, %73, %cst_25 [2] : vector<1x8x8xf32> to vector<1x8xf32>
    %75 = vector.shape_cast %74 : vector<1x8xf32> to vector<1x8x1xf32>
    %76 = vector.broadcast %75 : vector<1x8x1xf32> to vector<1x8x8xf32>
    %77 = arith.subf %73, %76 : vector<1x8x8xf32>
    %78 = math.exp %77 : vector<1x8x8xf32>
    %cst_26 = arith.constant dense<0.000000e+00> : vector<1x8xf32>
    %79 = vector.multi_reduction <add>, %78, %cst_26 [2] : vector<1x8x8xf32> to vector<1x8xf32>
    %80 = vector.shape_cast %79 : vector<1x8xf32> to vector<1x8x1xf32>
    %81 = vector.broadcast %80 : vector<1x8x1xf32> to vector<1x8x8xf32>
    %82 = arith.divf %78, %81 : vector<1x8x8xf32>
    "tpu.trace_start"() <{level = 10 : i32, message = "bqk,bkd->bqd"}> : () -> ()
    %cst_27 = arith.constant dense<0.000000e+00> : vector<1x8x8xf32>
    %83 = tpu.matmul %82, %72, %cst_27 {dimension_numbers = #tpu.dot_dimension_numbers<[2], [1], [1], [2], [0, 0, 0, 1, 1, 2], [0], [0]>} : vector<1x8x8xf32>, vector<1x8x8xf32>, vector<1x8x8xf32> -> vector<1x8x8xf32>
    "tpu.trace_stop"() : () -> ()
    %84 = vector.shape_cast %83 : vector<1x8x8xf32> to vector<8x8xf32>
    %c0_28 = arith.constant 0 : index
    %c24 = arith.constant 24 : index
    %85 = vector.load %arg16[%c0_28, %c24] : memref<8x32xf32, #tpu.memory_space<vmem>>, vector<8x8xf32>
    tpu.vector_store %arg16[%c0_28, %c24], %84 {strides = array<i32>} : memref<8x32xf32, #tpu.memory_space<vmem>>, vector<8x8xf32>,
    %c0_29 = arith.constant 0 : index
    %c0_30 = arith.constant 0 : index
    %86 = vector.load %arg16[%c0_29, %c0_30] : memref<8x32xf32, #tpu.memory_space<vmem>>, vector<8x32xf32>
    %c0_31 = arith.constant 0 : index
    %c0_32 = arith.constant 0 : index
    %87 = vector.load %arg5[%c0_31, %c0_32] : memref<32x32xf32, #tpu.memory_space<vmem>>, vector<32x32xf32>
    %cst_33 = arith.constant dense<0.000000e+00> : vector<8x32xf32>
    %88 = tpu.matmul %86, %87, %cst_33 {dimension_numbers = #tpu.dot_dimension_numbers<[1], [0], [0], [1], [0, 0, 1, 1], [], []>} : vector<8x32xf32>, vector<32x32xf32>, vector<8x32xf32> -> vector<8x32xf32>
    %c0_34 = arith.constant 0 : index
    %c0_35 = arith.constant 0 : index
    %89 = vector.load %arg6[%c0_34, %c0_35] : memref<1x32xf32, #tpu.memory_space<vmem>>, vector<1x32xf32>
    %90 = vector.broadcast %89 : vector<1x32xf32> to vector<8x32xf32>
    %91 = arith.addf %88, %90 : vector<8x32xf32>
    %92 = arith.addf %4, %91 : vector<8x32xf32>
    %c0_36 = arith.constant 0 : index
    %c0_37 = arith.constant 0 : index
    %93 = vector.load %arg7[%c0_36, %c0_37] : memref<1x32xf32, #tpu.memory_space<vmem>>, vector<1x32xf32>
    %c0_38 = arith.constant 0 : index
    %c0_39 = arith.constant 0 : index
    %94 = vector.load %arg8[%c0_38, %c0_39] : memref<1x32xf32, #tpu.memory_space<vmem>>, vector<1x32xf32>
    %cst_40 = arith.constant dense<0.000000e+00> : vector<8xf32>
    %95 = vector.multi_reduction <add>, %92, %cst_40 [1] : vector<8x32xf32> to vector<8xf32>
    %96 = vector.shape_cast %95 : vector<8xf32> to vector<8x1xf32>
    %cst_41 = arith.constant 3.200000e+01 : f32
    %97 = vector.broadcast %cst_41 : f32 to vector<8x1xf32>
    %98 = arith.divf %96, %97 : vector<8x1xf32>
    %99 = vector.broadcast %98 : vector<8x1xf32> to vector<8x32xf32>
    %100 = arith.subf %92, %99 : vector<8x32xf32>
    %101 = arith.mulf %100, %100 : vector<8x32xf32>
    %cst_42 = arith.constant dense<0.000000e+00> : vector<8xf32>
    %102 = vector.multi_reduction <add>, %101, %cst_42 [1] : vector<8x32xf32> to vector<8xf32>
    %103 = vector.shape_cast %102 : vector<8xf32> to vector<8x1xf32>
    %cst_43 = arith.constant 3.200000e+01 : f32
    %104 = vector.broadcast %cst_43 : f32 to vector<8x1xf32>
    %105 = arith.divf %103, %104 : vector<8x1xf32>
    %106 = vector.broadcast %98 : vector<8x1xf32> to vector<8x32xf32>
    %107 = arith.subf %92, %106 : vector<8x32xf32>
    %cst_44 = arith.constant 9.99999974E-6 : f32
    %108 = vector.broadcast %cst_44 : f32 to vector<8x1xf32>
    %109 = arith.addf %105, %108 : vector<8x1xf32>
    %110 = math.rsqrt %109 : vector<8x1xf32>
    %111 = vector.broadcast %110 : vector<8x1xf32> to vector<8x32xf32>
    %112 = arith.mulf %107, %111 : vector<8x32xf32>
    %113 = vector.broadcast %93 : vector<1x32xf32> to vector<8x32xf32>
    %114 = arith.mulf %112, %113 : vector<8x32xf32>
    %115 = vector.broadcast %94 : vector<1x32xf32> to vector<8x32xf32>
    %116 = arith.addf %114, %115 : vector<8x32xf32>
    %c0_45 = arith.constant 0 : index
    %c0_46 = arith.constant 0 : index
    %117 = vector.load %arg9[%c0_45, %c0_46] : memref<32x64xf32, #tpu.memory_space<vmem>>, vector<32x64xf32>
    %cst_47 = arith.constant dense<0.000000e+00> : vector<8x64xf32>
    %118 = tpu.matmul %116, %117, %cst_47 {dimension_numbers = #tpu.dot_dimension_numbers<[1], [0], [0], [1], [0, 0, 1, 1], [], []>} : vector<8x32xf32>, vector<32x64xf32>, vector<8x64xf32> -> vector<8x64xf32>
    %c0_48 = arith.constant 0 : index
    %c0_49 = arith.constant 0 : index
    %119 = vector.load %arg10[%c0_48, %c0_49] : memref<1x64xf32, #tpu.memory_space<vmem>>, vector<1x64xf32>
    %120 = vector.broadcast %119 : vector<1x64xf32> to vector<8x64xf32>
    %121 = arith.addf %118, %120 : vector<8x64xf32>
    %cst_50 = arith.constant 0.000000e+00 : f32
    %122 = vector.broadcast %cst_50 : f32 to vector<8x64xf32>
    %123 = arith.maximumf %121, %122 : vector<8x64xf32>
    %c0_51 = arith.constant 0 : index
    %c0_52 = arith.constant 0 : index
    %124 = vector.load %arg11[%c0_51, %c0_52] : memref<64x32xf32, #tpu.memory_space<vmem>>, vector<64x32xf32>
    %cst_53 = arith.constant dense<0.000000e+00> : vector<8x32xf32>
    %125 = tpu.matmul %123, %124, %cst_53 {dimension_numbers = #tpu.dot_dimension_numbers<[1], [0], [0], [1], [0, 0, 1, 1], [], []>} : vector<8x64xf32>, vector<64x32xf32>, vector<8x32xf32> -> vector<8x32xf32>
    %c0_54 = arith.constant 0 : index
    %c0_55 = arith.constant 0 : index
    %126 = vector.load %arg12[%c0_54, %c0_55] : memref<1x32xf32, #tpu.memory_space<vmem>>, vector<1x32xf32>
    %127 = vector.broadcast %126 : vector<1x32xf32> to vector<8x32xf32>
    %128 = arith.addf %125, %127 : vector<8x32xf32>
    %129 = arith.addf %116, %128 : vector<8x32xf32>
    %c0_56 = arith.constant 0 : index
    %c0_57 = arith.constant 0 : index
    %130 = vector.load %arg13[%c0_56, %c0_57] : memref<1x32xf32, #tpu.memory_space<vmem>>, vector<1x32xf32>
    %c0_58 = arith.constant 0 : index
    %c0_59 = arith.constant 0 : index
    %131 = vector.load %arg14[%c0_58, %c0_59] : memref<1x32xf32, #tpu.memory_space<vmem>>, vector<1x32xf32>
    %cst_60 = arith.constant dense<0.000000e+00> : vector<8xf32>
    %132 = vector.multi_reduction <add>, %129, %cst_60 [1] : vector<8x32xf32> to vector<8xf32>
    %133 = vector.shape_cast %132 : vector<8xf32> to vector<8x1xf32>
    %cst_61 = arith.constant 3.200000e+01 : f32
    %134 = vector.broadcast %cst_61 : f32 to vector<8x1xf32>
    %135 = arith.divf %133, %134 : vector<8x1xf32>
    %136 = vector.broadcast %135 : vector<8x1xf32> to vector<8x32xf32>
    %137 = arith.subf %129, %136 : vector<8x32xf32>
    %138 = arith.mulf %137, %137 : vector<8x32xf32>
    %cst_62 = arith.constant dense<0.000000e+00> : vector<8xf32>
    %139 = vector.multi_reduction <add>, %138, %cst_62 [1] : vector<8x32xf32> to vector<8xf32>
    %140 = vector.shape_cast %139 : vector<8xf32> to vector<8x1xf32>
    %cst_63 = arith.constant 3.200000e+01 : f32
    %141 = vector.broadcast %cst_63 : f32 to vector<8x1xf32>
    %142 = arith.divf %140, %141 : vector<8x1xf32>
    %143 = vector.broadcast %135 : vector<8x1xf32> to vector<8x32xf32>
    %144 = arith.subf %129, %143 : vector<8x32xf32>
    %cst_64 = arith.constant 9.99999974E-6 : f32
    %145 = vector.broadcast %cst_64 : f32 to vector<8x1xf32>
    %146 = arith.addf %142, %145 : vector<8x1xf32>
    %147 = math.rsqrt %146 : vector<8x1xf32>
    %148 = vector.broadcast %147 : vector<8x1xf32> to vector<8x32xf32>
    %149 = arith.mulf %144, %148 : vector<8x32xf32>
    %150 = vector.broadcast %130 : vector<1x32xf32> to vector<8x32xf32>
    %151 = arith.mulf %149, %150 : vector<8x32xf32>
    %152 = vector.broadcast %131 : vector<1x32xf32> to vector<8x32xf32>
    %153 = arith.addf %151, %152 : vector<8x32xf32>
    %154 = vector.shape_cast %153 : vector<8x32xf32> to vector<1x8x32xf32>
    %c0_65 = arith.constant 0 : index
    %c0_66 = arith.constant 0 : index
    %c0_67 = arith.constant 0 : index
    %155 = vector.load %arg15[%c0_65, %c0_66, %c0_67] : memref<1x8x32xf32, #tpu.memory_space<vmem>>, vector<1x8x32xf32>
    tpu.vector_store %arg15[%c0_65, %c0_66, %c0_67], %154 {strides = array<i32>} : memref<1x8x32xf32, #tpu.memory_space<vmem>>, vector<1x8x32xf32>,
    return
  }
  func.func @transform_0(%arg0: i32) -> (i32, i32, i32) {
    %c0_i32 = arith.constant 0 : i32
    %c0_i32_0 = arith.constant 0 : i32
    %c0_i32_1 = arith.constant 0 : i32
    return %arg0, %c0_i32, %c0_i32_0 : i32, i32, i32
  }
  func.func @transform_1(%arg0: i32) -> (i32, i32) {
    %c0_i32 = arith.constant 0 : i32
    %c0_i32_0 = arith.constant 0 : i32
    %c0_i32_1 = arith.constant 0 : i32
    return %c0_i32, %c0_i32_0 : i32, i32
  }
  func.func @transform_2(%arg0: i32) -> (i32, i32) {
    %c0_i32 = arith.constant 0 : i32
    %c0_i32_0 = arith.constant 0 : i32
    %c0_i32_1 = arith.constant 0 : i32
    return %c0_i32, %c0_i32_0 : i32, i32
  }
  func.func @transform_3(%arg0: i32) -> (i32, i32) {
    %c0_i32 = arith.constant 0 : i32
    %c0_i32_0 = arith.constant 0 : i32
    %c0_i32_1 = arith.constant 0 : i32
    return %c0_i32, %c0_i32_0 : i32, i32
  }
  func.func @transform_4(%arg0: i32) -> (i32, i32) {
    %c0_i32 = arith.constant 0 : i32
    %c0_i32_0 = arith.constant 0 : i32
    %c0_i32_1 = arith.constant 0 : i32
    return %c0_i32, %c0_i32_0 : i32, i32
  }
  func.func @transform_5(%arg0: i32) -> (i32, i32) {
    %c0_i32 = arith.constant 0 : i32
    %c0_i32_0 = arith.constant 0 : i32
    %c0_i32_1 = arith.constant 0 : i32
    return %c0_i32, %c0_i32_0 : i32, i32
  }
  func.func @transform_6(%arg0: i32) -> (i32, i32) {
    %c0_i32 = arith.constant 0 : i32
    %c0_i32_0 = arith.constant 0 : i32
    %c0_i32_1 = arith.constant 0 : i32
    return %c0_i32, %c0_i32_0 : i32, i32
  }
  func.func @transform_7(%arg0: i32) -> (i32, i32) {
    %c0_i32 = arith.constant 0 : i32
    %c0_i32_0 = arith.constant 0 : i32
    %c0_i32_1 = arith.constant 0 : i32
    return %c0_i32, %c0_i32_0 : i32, i32
  }
  func.func @transform_8(%arg0: i32) -> (i32, i32) {
    %c0_i32 = arith.constant 0 : i32
    %c0_i32_0 = arith.constant 0 : i32
    %c0_i32_1 = arith.constant 0 : i32
    return %c0_i32, %c0_i32_0 : i32, i32
  }
  func.func @transform_9(%arg0: i32) -> (i32, i32) {
    %c0_i32 = arith.constant 0 : i32
    %c0_i32_0 = arith.constant 0 : i32
    %c0_i32_1 = arith.constant 0 : i32
    return %c0_i32, %c0_i32_0 : i32, i32
  }
  func.func @transform_10(%arg0: i32) -> (i32, i32) {
    %c0_i32 = arith.constant 0 : i32
    %c0_i32_0 = arith.constant 0 : i32
    %c0_i32_1 = arith.constant 0 : i32
    return %c0_i32, %c0_i32_0 : i32, i32
  }
  func.func @transform_11(%arg0: i32) -> (i32, i32) {
    %c0_i32 = arith.constant 0 : i32
    %c0_i32_0 = arith.constant 0 : i32
    %c0_i32_1 = arith.constant 0 : i32
    return %c0_i32, %c0_i32_0 : i32, i32
  }
  func.func @transform_12(%arg0: i32) -> (i32, i32) {
    %c0_i32 = arith.constant 0 : i32
    %c0_i32_0 = arith.constant 0 : i32
    %c0_i32_1 = arith.constant 0 : i32
    return %c0_i32, %c0_i32_0 : i32, i32
  }
  func.func @transform_13(%arg0: i32) -> (i32, i32) {
    %c0_i32 = arith.constant 0 : i32
    %c0_i32_0 = arith.constant 0 : i32
    %c0_i32_1 = arith.constant 0 : i32
    return %c0_i32, %c0_i32_0 : i32, i32
  }
  func.func @transform_14(%arg0: i32) -> (i32, i32, i32) {
    %c0_i32 = arith.constant 0 : i32
    %c0_i32_0 = arith.constant 0 : i32
    %c0_i32_1 = arith.constant 0 : i32
    return %arg0, %c0_i32, %c0_i32_0 : i32, i32, i32
  }
}

</mosaic_0001>

<llo_original>
// kernel: forward.5
$region0: #{forward.5}
  #allocation0 [shape = 'u32[]', space=smem, size = 0x4, offset = 0x4, fixed_abs, tag = 'smem constant byte address 0x4 - core index']
  #allocation1 [shape = 'u32[144,128]{1,0:T(1,128)}', space=vmem, size = 0x12000, scoped, tag = 'internal scratch']
  %s0 = inlined_call_operand.vmem [shape: f32[16,32], index: 0, kind: input, shape index: {}]
  %s1 = inlined_call_operand.vmem [shape: f32[32,128], index: 1, kind: input, shape index: {}]
  %s2 = inlined_call_operand.vmem [shape: f32[1,128], index: 2, kind: input, shape index: {}]
  %s3 = inlined_call_operand.vmem [shape: f32[16,128], index: 3, kind: output, shape index: {}]
  %s4 = sld [smem:[#allocation0]]
  $region45: #{forward.5} parent=0
    _
  %s6 = ssub.s32 1, %s4
  %s7 = scalar_select 0, %s6, %s4
  loop: start=0, step=1, limit=4
  $region2: #{forward.5} parent=0 // loop_pre_header
    _
  $region3: #{forward.5} parent=0 // loop_header
    %s9 = sphi 0, %s13
    %p10 = scmp.ge.s32.totalorder %s9, 4
    %s19 = sphi 0, %s21
    %s22 = sphi 0, %s19
    %s23 = sphi 0, %s22
    %s39 = sphi 0, %s23
    %s43 = sphi 0, %s43
    %s45 = sphi 0, %s43
    %s46 = sphi 0, %s45
    %s60 = sphi 0, %s46
    %s64 = sphi 0, %s64
    %s66 = sphi 0, %s64
    %s67 = sphi 0, %s66
    %s81 = sphi 0, %s67
    %s87 = sphi 0, %s89
    %s90 = sphi 0, %s87
    %s91 = sphi 0, %s90
    %s107 = sphi 0, %s91
  $region4: #{forward.5} parent=0 // loop_header_branch
    %12 = sbr.rel (%p10) target = $region8
  $region5: #{forward.5} parent=0 // loop_body
    %s14 = ssub.s32 %s9, 1
    %s15 = ssub.s32 %s9, 2
    %s16 = sadd.s32 %s9, 1
    %s17 = ssub.s32 %s9, %s16
    %p18 = scmp.eq.s32.totalorder %s17, 0
    %s20 = sadd.s32 %s19, 1
    %s21 = scalar_select %p18, %s19, %s20
    %p24 = pneg %p18
    %p25 = scmp.eq.s32.totalorder %s9, 1
    %p26 = por %p24, %p25
    %p27 = scmp.ne.s32.totalorder %s19, %s22
    %p28 = scmp.eq.s32.totalorder %s9, 0
    %p29 = por %p27, %p28
    %p30 = scmp.ne.s32.totalorder %s19, %s22
    %p31 = scmp.eq.s32.totalorder %s14, 1
    %p32 = por %p30, %p31
    %p33 = scmp.ne.s32.totalorder %s22, %s23
    %p34 = scmp.eq.s32.totalorder %s14, 0
    %p35 = por %p33, %p34
    %p36 = scmp.ne.s32.totalorder %s22, %s23
    %p37 = scmp.eq.s32.totalorder %s15, 1
    %p38 = por %p36, %p37
    %p40 = scmp.ne.s32.totalorder %s23, %s39
    %p41 = scmp.eq.s32.totalorder %s15, 0
    %p42 = por %p40, %p41
    %s44 = sadd.s32 %s43, 1
    %p47 = scmp.eq.s32.totalorder %s9, 1
    %p48 = scmp.ne.s32.totalorder %s43, %s45
    %p49 = scmp.eq.s32.totalorder %s9, 0
    %p50 = por %p48, %p49
    %p51 = scmp.ne.s32.totalorder %s43, %s45
    %p52 = scmp.eq.s32.totalorder %s14, 1
    %p53 = por %p51, %p52
    %p54 = scmp.ne.s32.totalorder %s45, %s46
    %p55 = scmp.eq.s32.totalorder %s14, 0
    %p56 = por %p54, %p55
    %p57 = scmp.ne.s32.totalorder %s45, %s46
    %p58 = scmp.eq.s32.totalorder %s15, 1
    %p59 = por %p57, %p58
    %p61 = scmp.ne.s32.totalorder %s46, %s60
    %p62 = scmp.eq.s32.totalorder %s15, 0
    %p63 = por %p61, %p62
    %s65 = sadd.s32 %s64, 1
    %p68 = scmp.eq.s32.totalorder %s9, 1
    %p69 = scmp.ne.s32.totalorder %s64, %s66
    %p70 = scmp.eq.s32.totalorder %s9, 0
    %p71 = por %p69, %p70
    %p72 = scmp.ne.s32.totalorder %s64, %s66
    %p73 = scmp.eq.s32.totalorder %s14, 1
    %p74 = por %p72, %p73
    %p75 = scmp.ne.s32.totalorder %s66, %s67
    %p76 = scmp.eq.s32.totalorder %s14, 0
    %p77 = por %p75, %p76
    %p78 = scmp.ne.s32.totalorder %s66, %s67
    %p79 = scmp.eq.s32.totalorder %s15, 1
    %p80 = por %p78, %p79
    %p82 = scmp.ne.s32.totalorder %s67, %s81
    %p83 = scmp.eq.s32.totalorder %s15, 0
    %p84 = por %p82, %p83
    %s85 = ssub.s32 %s9, %s16
    %p86 = scmp.eq.s32.totalorder %s85, 0
    %s88 = sadd.s32 %s87, 1
    %s89 = scalar_select %p86, %s87, %s88
    %p92 = pneg %p86
    %p93 = scmp.eq.s32.totalorder %s9, 1
    %p94 = por %p92, %p93
    %p95 = scmp.ne.s32.totalorder %s87, %s90
    %p96 = scmp.eq.s32.totalorder %s9, 0
    %p97 = por %p95, %p96
    %p98 = scmp.ne.s32.totalorder %s87, %s90
    %p99 = scmp.eq.s32.totalorder %s14, 1
    %p100 = por %p98, %p99
    %p101 = scmp.ne.s32.totalorder %s90, %s91
    %p102 = scmp.eq.s32.totalorder %s14, 0
    %p103 = por %p101, %p102
    %p104 = scmp.ne.s32.totalorder %s90, %s91
    %p105 = scmp.eq.s32.totalorder %s15, 1
    %p106 = por %p104, %p105
    %p108 = scmp.ne.s32.totalorder %s91, %s107
    %p109 = scmp.eq.s32.totalorder %s15, 0
    %p110 = por %p108, %p109
    %p111 = scmp.le.s32.totalorder 1, %s9
    %p112 = scmp.lt.s32.totalorder %s9, 3
    %p113 = pnand %p111, %p112
    %p114 = pneg %p113
    // Predicated region
    $region9: #{forward.5} parent=5 // pred_check
      _
    $region10: #{forward.5} parent=5 // pred_check_branch
      %116 = sbr.rel (%p113) target = $region12
    $region11: #{forward.5} parent=5 // pred_region
      %s117 = ssub.s32 %s9, 1
      // Predicated region
      $region13: #{forward.5} parent=11 // pred_check
        %p118 = pneg %p56
      $region14: #{forward.5} parent=11 // pred_check_branch
        %120 = sbr.rel (%p118) target = $region16
      $region15: #{forward.5} parent=11 // pred_region
        _
      $region16: #{forward.5} parent=11 // pred_fallthru
        _
      // Predicated region
      $region17: #{forward.5} parent=11 // pred_check
        %p121 = pneg %p77
      $region18: #{forward.5} parent=11 // pred_check_branch
        %123 = sbr.rel (%p121) target = $region20
      $region19: #{forward.5} parent=11 // pred_region
        _
      $region20: #{forward.5} parent=11 // pred_fallthru
        _
    $region12: #{forward.5} parent=5 // pred_fallthru
      _
    %p124 = scmp.lt.s32.totalorder %s9, 2
    // Predicated region
    $region21: #{forward.5} parent=5 // pred_check
      %p125 = pneg %p124
    $region22: #{forward.5} parent=5 // pred_check_branch
      %127 = sbr.rel (%p125) target = $region24
    $region23: #{forward.5} parent=5 // pred_region
      // Predicated region
      $region25: #{forward.5} parent=23 // pred_check
        %p128 = pneg %p29
      $region26: #{forward.5} parent=23 // pred_check_branch
        %130 = sbr.rel (%p128) target = $region28
      $region27: #{forward.5} parent=23 // pred_region
        %p131 = scmp.lt.s32.totalorder %s9, 1
        %s132 = scalar_select %p131, %s9, 1
        %s133 = smul.addr %s132, 8
        %s134 = scalar_lea.vmem %s0, %s133
      $region28: #{forward.5} parent=23 // pred_fallthru
        _
    $region24: #{forward.5} parent=5 // pred_fallthru
      _
    %p135 = scmp.le.s32.totalorder 1, %s9
    %p136 = scmp.lt.s32.totalorder %s9, 3
    %p137 = pnand %p135, %p136
    %p138 = pneg %p137
    // Predicated region
    $region29: #{forward.5} parent=5 // pred_check
      _
    $region30: #{forward.5} parent=5 // pred_check_branch
      %140 = sbr.rel (%p137) target = $region32
    $region31: #{forward.5} parent=5 // pred_region
      %s141 = ssub.s32 %s9, 1
      %p142 = scmp.lt.s32.totalorder %s14, 1
      %s143 = scalar_select %p142, %s14, 1
      %s144 = smul.addr %s143, 8
      %s145 = scalar_lea.vmem %s0, %s144
      %p146 = pneg %p35
      %p147 = pneg %p32
      %p148 = pneg %p56
      %p149 = pneg %p53
      %p150 = pneg %p77
      %p151 = pneg %p74
      %p152 = pneg %p103
      %p153 = pneg %p100
      %p154 = scmp.lt.s32.totalorder %s14, 1
      %s155 = scalar_select %p154, %s14, 1
      %s156 = smul.addr %s155, 8
      %s157 = scalar_lea.vmem %s3, %s156
      %p158 = scmp.lt.s32.totalorder %s14, 1
      %s159 = scalar_select %p158, %s14, 1
      %s160 = smul.addr %s159, 8
      %s161 = scalar_lea.vmem %s0, %s160
      %p162 = scmp.lt.s32.totalorder %s14, 1
      %s163 = scalar_select %p162, %s14, 1
      %s164 = smul.addr %s163, 8
      %s165 = scalar_lea.vmem %s3, %s164
      %v166 = vld [vmem:[%s161] sm:$0xff]
      %v167 = vld [vmem:[%s1] sm:$0xff]
      %v168 = vld [vmem:[%s1 + $0x8] sm:$0xff]
      %v169 = vld [vmem:[%s1 + $0x10] sm:$0xff]
      %v170 = vld [vmem:[%s1 + $0x18] sm:$0xff]
      %v171 = vld [vmem:[%s2] sm:$0x1]
      %v173 = vlaneseq
      %v174 = vshrl.u32 %v173, 7
      %v175 = vsub.s32 0, %v174
      %v176 = vrot.slane %v171, %v175
      %vm178 = vcmask 261120
      %v180 = vsel %vm178, %v166, 0
      %182 = vmatprep.subr.mxu0 0.0
      %183 = vmatpush1.msra.mxu0 %v167
      %184 = vmatprep.subr.mxu0 0.0
      %185 = vmatpush1.msra.mxu0 %v168
      %186 = vmatprep.subr.mxu0 0.0
      %187 = vmatpush1.msra.mxu0 %v169
      %188 = vmatprep.subr.mxu0 0.0
      %189 = vmatpush1.msra.mxu0 %v170
      %190 = vmatprep.subr.mxu0 0.0
      %191 = vmatpush1.msra.mxu0 0.0
      %192 = vmatprep.subr.mxu0 0.0
      %193 = vmatpush1.msra.mxu0 0.0
      %194 = vmatprep.subr.mxu0 0.0
      %195 = vmatpush1.msra.mxu0 0.0
      %196 = vmatprep.subr.mxu0 0.0
      %197 = vmatpush1.msra.mxu0 0.0
      %198 = vmatprep.subr.mxu0 0.0
      %199 = vmatpush1.msra.mxu0 0.0
      %200 = vmatprep.subr.mxu0 0.0
      %201 = vmatpush1.msra.mxu0 0.0
      %202 = vmatprep.subr.mxu0 0.0
      %203 = vmatpush1.msra.mxu0 0.0
      %204 = vmatprep.subr.mxu0 0.0
      %205 = vmatpush1.msra.mxu0 0.0
      %206 = vmatprep.subr.mxu0 0.0
      %207 = vmatpush1.msra.mxu0 0.0
      %208 = vmatprep.subr.mxu0 0.0
      %209 = vmatpush1.msra.mxu0 0.0
      %210 = vmatprep.subr.mxu0 0.0
      %211 = vmatpush1.msra.mxu0 0.0
      %212 = vmatprep.subr.mxu0 0.0
      %213 = vmatpush1.msra.mxu0 0.0
      %214 = vmatprep.subr.mxu0 0.0
      %215 = vmatpush1.msra.mxu0 0.0
      %216 = vmatprep.subr.mxu0 0.0
      %217 = vmatpush1.msra.mxu0 0.0
      %218 = vmatprep.subr.mxu0 0.0
      %219 = vmatpush1.msra.mxu0 0.0
      %220 = vmatprep.subr.mxu0 0.0
      %221 = vmatpush1.msra.mxu0 0.0
      %222 = vmatprep.subr.mxu0 0.0
      %223 = vmatpush1.msra.mxu0 0.0
      %224 = vmatprep.subr.mxu0 0.0
      %225 = vmatpush1.msra.mxu0 0.0
      %226 = vmatprep.subr.mxu0 0.0
      %227 = vmatpush1.msra.mxu0 0.0
      %228 = vmatprep.subr.mxu0 0.0
      %229 = vmatpush1.msra.mxu0 0.0
      %230 = vmatprep.subr.mxu0 0.0
      %231 = vmatpush1.msra.mxu0 0.0
      %232 = vmatprep.subr.mxu0 0.0
      %233 = vmatpush1.msra.mxu0 0.0
      %234 = vmatprep.subr.mxu0 0.0
      %235 = vmatpush1.msra.mxu0 0.0
      %236 = vmatprep.subr.mxu0 0.0
      %237 = vmatpush1.msra.mxu0 0.0
      %238 = vmatprep.subr.mxu0 0.0
      %239 = vmatpush1.msra.mxu0 0.0
      %240 = vmatprep.subr.mxu0 0.0
      %241 = vmatpush1.msra.mxu0 0.0
      %242 = vmatprep.subr.mxu0 0.0
      %243 = vmatpush1.msra.mxu0 0.0
      %244 = vmatprep.subr.mxu0 0.0
      %245 = vmatpush1.msra.mxu0 0.0
      %246 = vmatprep.mubr.f32.mxu0 0.0
      %247 = vmatmul.mubr.f32.gmra.mrb[0].mxu0 %v180
      %v248 = vpop.f32.mrb[0].mxu0
      %v249 = vadd.f32 %v176, %v248
      %v250 = vpop.f32.mrb[0].mxu0
      %251 = vdwg.mxu0
      %252 = vmax.xlane.f32.xlu0 %v249
      %v253 = vpop.xlane.xlu0 %252
      %v254 = vsub.f32 %v249, %v253
      %v255 = vmul.f32 %v254, 1.442695
      %v256 = vpow.pop %v255
      %257 = vadd.xlane.f32.xlu0 %v256
      %v258 = vpop.xlane.xlu0 %257
      %v259 = vlog2.pop %v258
      %v260 = vmul.f32 %v259, 0.6931472
      %v261 = vsub.f32 %v254, %v260
      %262 = vst [vmem:[%s165] sm:$0xff] %v261
      %p263 = scmp.lt.s32.totalorder %s14, 1
      %s264 = scalar_select %p263, %s14, 1
      %s265 = smul.addr %s264, 8
      %s266 = scalar_lea.vmem %s3, %s265
      // Predicated region
      $region33: #{forward.5} parent=31 // pred_check
        %p267 = pneg %p100
      $region34: #{forward.5} parent=31 // pred_check_branch
        %269 = sbr.rel (%p267) target = $region36
      $region35: #{forward.5} parent=31 // pred_region
        _
      $region36: #{forward.5} parent=31 // pred_fallthru
        _
    $region32: #{forward.5} parent=5 // pred_fallthru
      _
    %p270 = scmp.le.s32.totalorder 2, %s9
    // Predicated region
    $region37: #{forward.5} parent=5 // pred_check
      %p271 = pneg %p270
    $region38: #{forward.5} parent=5 // pred_check_branch
      %273 = sbr.rel (%p271) target = $region40
    $region39: #{forward.5} parent=5 // pred_region
      %s274 = ssub.s32 %s9, 2
      // Predicated region
      $region41: #{forward.5} parent=39 // pred_check
        %p275 = pneg %p106
      $region42: #{forward.5} parent=39 // pred_check_branch
        %277 = sbr.rel (%p275) target = $region44
      $region43: #{forward.5} parent=39 // pred_region
        %p278 = scmp.lt.s32.totalorder %s15, 1
        %s279 = scalar_select %p278, %s15, 1
        %s280 = smul.addr %s279, 8
        %s281 = scalar_lea.vmem %s3, %s280
      $region44: #{forward.5} parent=39 // pred_fallthru
        _
    $region40: #{forward.5} parent=5 // pred_fallthru
      _
  $region6: #{forward.5} parent=0 // loop_footer
    %s13 = sadd.s32 1, %s9
  $region7: #{forward.5} parent=0 // loop_footer_branch
    %8 = sbr.rel target = $region3
  $region8: #{forward.5} parent=0 // loop_exit
    _

// kernel: forward.4
$region0: #{forward.4}
  #allocation0 [shape = 'u32[]', space=smem, size = 0x4, offset = 0x4, fixed_abs, tag = 'smem constant byte address 0x4 - core index']
  #allocation1 [shape = 'u32[144,128]{1,0:T(1,128)}', space=vmem, size = 0x12000, scoped, tag = 'internal scratch']
  #allocation2 [shape = 'f32[8,32]{1,0:T(8,128)}', space=vmem, size = 0x1000, scoped, tag = 'scratch operand']
  %s0 = inlined_call_operand.vmem [shape: f32[2,8,32], index: 0, kind: input, shape index: {}]
  %s1 = inlined_call_operand.vmem [shape: f32[32,96], index: 1, kind: input, shape index: {}]
  %s2 = inlined_call_operand.vmem [shape: f32[1,96], index: 2, kind: input, shape index: {}]
  %s3 = inlined_call_operand.vmem [shape: f32[32,32], index: 3, kind: input, shape index: {}]
  %s4 = inlined_call_operand.vmem [shape: f32[1,32], index: 4, kind: input, shape index: {}]
  %s5 = inlined_call_operand.vmem [shape: f32[1,32], index: 5, kind: input, shape index: {}]
  %s6 = inlined_call_operand.vmem [shape: f32[1,32], index: 6, kind: input, shape index: {}]
  %s7 = inlined_call_operand.vmem [shape: f32[32,64], index: 7, kind: input, shape index: {}]
  %s8 = inlined_call_operand.vmem [shape: f32[1,64], index: 8, kind: input, shape index: {}]
  %s9 = inlined_call_operand.vmem [shape: f32[64,32], index: 9, kind: input, shape index: {}]
  %s10 = inlined_call_operand.vmem [shape: f32[1,32], index: 10, kind: input, shape index: {}]
  %s11 = inlined_call_operand.vmem [shape: f32[1,32], index: 11, kind: input, shape index: {}]
  %s12 = inlined_call_operand.vmem [shape: f32[1,32], index: 12, kind: input, shape index: {}]
  %s13 = inlined_call_operand.vmem [shape: f32[2,8,32], index: 13, kind: output, shape index: {}]
  %s14 = sld [smem:[#allocation0]]
  $region85: #{forward.4} parent=0
    _
  %s16 = ssub.s32 1, %s14
  %s17 = scalar_select 0, %s16, %s14
  loop: start=0, step=1, limit=4
  $region2: #{forward.4} parent=0 // loop_pre_header
    _
  $region3: #{forward.4} parent=0 // loop_header
    %s19 = sphi 0, %s23
    %p20 = scmp.ge.s32.totalorder %s19, 4
    %s29 = sphi 0, %s31
    %s32 = sphi 0, %s29
    %s33 = sphi 0, %s32
    %s49 = sphi 0, %s33
    %s53 = sphi 0, %s53
    %s55 = sphi 0, %s53
    %s56 = sphi 0, %s55
    %s70 = sphi 0, %s56
    %s74 = sphi 0, %s74
    %s76 = sphi 0, %s74
    %s77 = sphi 0, %s76
    %s91 = sphi 0, %s77
    %s95 = sphi 0, %s95
    %s97 = sphi 0, %s95
    %s98 = sphi 0, %s97
    %s112 = sphi 0, %s98
    %s116 = sphi 0, %s116
    %s118 = sphi 0, %s116
    %s119 = sphi 0, %s118
    %s133 = sphi 0, %s119
    %s137 = sphi 0, %s137
    %s139 = sphi 0, %s137
    %s140 = sphi 0, %s139
    %s154 = sphi 0, %s140
    %s158 = sphi 0, %s158
    %s160 = sphi 0, %s158
    %s161 = sphi 0, %s160
    %s175 = sphi 0, %s161
    %s179 = sphi 0, %s179
    %s181 = sphi 0, %s179
    %s182 = sphi 0, %s181
    %s196 = sphi 0, %s182
    %s200 = sphi 0, %s200
    %s202 = sphi 0, %s200
    %s203 = sphi 0, %s202
    %s217 = sphi 0, %s203
    %s221 = sphi 0, %s221
    %s223 = sphi 0, %s221
    %s224 = sphi 0, %s223
    %s238 = sphi 0, %s224
    %s242 = sphi 0, %s242
    %s244 = sphi 0, %s242
    %s245 = sphi 0, %s244
    %s259 = sphi 0, %s245
    %s263 = sphi 0, %s263
    %s265 = sphi 0, %s263
    %s266 = sphi 0, %s265
    %s280 = sphi 0, %s266
    %s284 = sphi 0, %s284
    %s286 = sphi 0, %s284
    %s287 = sphi 0, %s286
    %s301 = sphi 0, %s287
    %s307 = sphi 0, %s309
    %s310 = sphi 0, %s307
    %s311 = sphi 0, %s310
    %s327 = sphi 0, %s311
  $region4: #{forward.4} parent=0 // loop_header_branch
    %22 = sbr.rel (%p20) target = $region8
  $region5: #{forward.4} parent=0 // loop_body
    %s24 = ssub.s32 %s19, 1
    %s25 = ssub.s32 %s19, 2
    %s26 = sadd.s32 %s19, 1
    %s27 = ssub.s32 %s19, %s26
    %p28 = scmp.eq.s32.totalorder %s27, 0
    %s30 = sadd.s32 %s29, 1
    %s31 = scalar_select %p28, %s29, %s30
    %p34 = pneg %p28
    %p35 = scmp.eq.s32.totalorder %s19, 1
    %p36 = por %p34, %p35
    %p37 = scmp.ne.s32.totalorder %s29, %s32
    %p38 = scmp.eq.s32.totalorder %s19, 0
    %p39 = por %p37, %p38
    %p40 = scmp.ne.s32.totalorder %s29, %s32
    %p41 = scmp.eq.s32.totalorder %s24, 1
    %p42 = por %p40, %p41
    %p43 = scmp.ne.s32.totalorder %s32, %s33
    %p44 = scmp.eq.s32.totalorder %s24, 0
    %p45 = por %p43, %p44
    %p46 = scmp.ne.s32.totalorder %s32, %s33
    %p47 = scmp.eq.s32.totalorder %s25, 1
    %p48 = por %p46, %p47
    %p50 = scmp.ne.s32.totalorder %s33, %s49
    %p51 = scmp.eq.s32.totalorder %s25, 0
    %p52 = por %p50, %p51
    %s54 = sadd.s32 %s53, 1
    %p57 = scmp.eq.s32.totalorder %s19, 1
    %p58 = scmp.ne.s32.totalorder %s53, %s55
    %p59 = scmp.eq.s32.totalorder %s19, 0
    %p60 = por %p58, %p59
    %p61 = scmp.ne.s32.totalorder %s53, %s55
    %p62 = scmp.eq.s32.totalorder %s24, 1
    %p63 = por %p61, %p62
    %p64 = scmp.ne.s32.totalorder %s55, %s56
    %p65 = scmp.eq.s32.totalorder %s24, 0
    %p66 = por %p64, %p65
    %p67 = scmp.ne.s32.totalorder %s55, %s56
    %p68 = scmp.eq.s32.totalorder %s25, 1
    %p69 = por %p67, %p68
    %p71 = scmp.ne.s32.totalorder %s56, %s70
    %p72 = scmp.eq.s32.totalorder %s25, 0
    %p73 = por %p71, %p72
    %s75 = sadd.s32 %s74, 1
    %p78 = scmp.eq.s32.totalorder %s19, 1
    %p79 = scmp.ne.s32.totalorder %s74, %s76
    %p80 = scmp.eq.s32.totalorder %s19, 0
    %p81 = por %p79, %p80
    %p82 = scmp.ne.s32.totalorder %s74, %s76
    %p83 = scmp.eq.s32.totalorder %s24, 1
    %p84 = por %p82, %p83
    %p85 = scmp.ne.s32.totalorder %s76, %s77
    %p86 = scmp.eq.s32.totalorder %s24, 0
    %p87 = por %p85, %p86
    %p88 = scmp.ne.s32.totalorder %s76, %s77
    %p89 = scmp.eq.s32.totalorder %s25, 1
    %p90 = por %p88, %p89
    %p92 = scmp.ne.s32.totalorder %s77, %s91
    %p93 = scmp.eq.s32.totalorder %s25, 0
    %p94 = por %p92, %p93
    %s96 = sadd.s32 %s95, 1
    %p99 = scmp.eq.s32.totalorder %s19, 1
    %p100 = scmp.ne.s32.totalorder %s95, %s97
    %p101 = scmp.eq.s32.totalorder %s19, 0
    %p102 = por %p100, %p101
    %p103 = scmp.ne.s32.totalorder %s95, %s97
    %p104 = scmp.eq.s32.totalorder %s24, 1
    %p105 = por %p103, %p104
    %p106 = scmp.ne.s32.totalorder %s97, %s98
    %p107 = scmp.eq.s32.totalorder %s24, 0
    %p108 = por %p106, %p107
    %p109 = scmp.ne.s32.totalorder %s97, %s98
    %p110 = scmp.eq.s32.totalorder %s25, 1
    %p111 = por %p109, %p110
    %p113 = scmp.ne.s32.totalorder %s98, %s112
    %p114 = scmp.eq.s32.totalorder %s25, 0
    %p115 = por %p113, %p114
    %s117 = sadd.s32 %s116, 1
    %p120 = scmp.eq.s32.totalorder %s19, 1
    %p121 = scmp.ne.s32.totalorder %s116, %s118
    %p122 = scmp.eq.s32.totalorder %s19, 0
    %p123 = por %p121, %p122
    %p124 = scmp.ne.s32.totalorder %s116, %s118
    %p125 = scmp.eq.s32.totalorder %s24, 1
    %p126 = por %p124, %p125
    %p127 = scmp.ne.s32.totalorder %s118, %s119
    %p128 = scmp.eq.s32.totalorder %s24, 0
    %p129 = por %p127, %p128
    %p130 = scmp.ne.s32.totalorder %s118, %s119
    %p131 = scmp.eq.s32.totalorder %s25, 1
    %p132 = por %p130, %p131
    %p134 = scmp.ne.s32.totalorder %s119, %s133
    %p135 = scmp.eq.s32.totalorder %s25, 0
    %p136 = por %p134, %p135
    %s138 = sadd.s32 %s137, 1
    %p141 = scmp.eq.s32.totalorder %s19, 1
    %p142 = scmp.ne.s32.totalorder %s137, %s139
    %p143 = scmp.eq.s32.totalorder %s19, 0
    %p144 = por %p142, %p143
    %p145 = scmp.ne.s32.totalorder %s137, %s139
    %p146 = scmp.eq.s32.totalorder %s24, 1
    %p147 = por %p145, %p146
    %p148 = scmp.ne.s32.totalorder %s139, %s140
    %p149 = scmp.eq.s32.totalorder %s24, 0
    %p150 = por %p148, %p149
    %p151 = scmp.ne.s32.totalorder %s139, %s140
    %p152 = scmp.eq.s32.totalorder %s25, 1
    %p153 = por %p151, %p152
    %p155 = scmp.ne.s32.totalorder %s140, %s154
    %p156 = scmp.eq.s32.totalorder %s25, 0
    %p157 = por %p155, %p156
    %s159 = sadd.s32 %s158, 1
    %p162 = scmp.eq.s32.totalorder %s19, 1
    %p163 = scmp.ne.s32.totalorder %s158, %s160
    %p164 = scmp.eq.s32.totalorder %s19, 0
    %p165 = por %p163, %p164
    %p166 = scmp.ne.s32.totalorder %s158, %s160
    %p167 = scmp.eq.s32.totalorder %s24, 1
    %p168 = por %p166, %p167
    %p169 = scmp.ne.s32.totalorder %s160, %s161
    %p170 = scmp.eq.s32.totalorder %s24, 0
    %p171 = por %p169, %p170
    %p172 = scmp.ne.s32.totalorder %s160, %s161
    %p173 = scmp.eq.s32.totalorder %s25, 1
    %p174 = por %p172, %p173
    %p176 = scmp.ne.s32.totalorder %s161, %s175
    %p177 = scmp.eq.s32.totalorder %s25, 0
    %p178 = por %p176, %p177
    %s180 = sadd.s32 %s179, 1
    %p183 = scmp.eq.s32.totalorder %s19, 1
    %p184 = scmp.ne.s32.totalorder %s179, %s181
    %p185 = scmp.eq.s32.totalorder %s19, 0
    %p186 = por %p184, %p185
    %p187 = scmp.ne.s32.totalorder %s179, %s181
    %p188 = scmp.eq.s32.totalorder %s24, 1
    %p189 = por %p187, %p188
    %p190 = scmp.ne.s32.totalorder %s181, %s182
    %p191 = scmp.eq.s32.totalorder %s24, 0
    %p192 = por %p190, %p191
    %p193 = scmp.ne.s32.totalorder %s181, %s182
    %p194 = scmp.eq.s32.totalorder %s25, 1
    %p195 = por %p193, %p194
    %p197 = scmp.ne.s32.totalorder %s182, %s196
    %p198 = scmp.eq.s32.totalorder %s25, 0
    %p199 = por %p197, %p198
    %s201 = sadd.s32 %s200, 1
    %p204 = scmp.eq.s32.totalorder %s19, 1
    %p205 = scmp.ne.s32.totalorder %s200, %s202
    %p206 = scmp.eq.s32.totalorder %s19, 0
    %p207 = por %p205, %p206
    %p208 = scmp.ne.s32.totalorder %s200, %s202
    %p209 = scmp.eq.s32.totalorder %s24, 1
    %p210 = por %p208, %p209
    %p211 = scmp.ne.s32.totalorder %s202, %s203
    %p212 = scmp.eq.s32.totalorder %s24, 0
    %p213 = por %p211, %p212
    %p214 = scmp.ne.s32.totalorder %s202, %s203
    %p215 = scmp.eq.s32.totalorder %s25, 1
    %p216 = por %p214, %p215
    %p218 = scmp.ne.s32.totalorder %s203, %s217
    %p219 = scmp.eq.s32.totalorder %s25, 0
    %p220 = por %p218, %p219
    %s222 = sadd.s32 %s221, 1
    %p225 = scmp.eq.s32.totalorder %s19, 1
    %p226 = scmp.ne.s32.totalorder %s221, %s223
    %p227 = scmp.eq.s32.totalorder %s19, 0
    %p228 = por %p226, %p227
    %p229 = scmp.ne.s32.totalorder %s221, %s223
    %p230 = scmp.eq.s32.totalorder %s24, 1
    %p231 = por %p229, %p230
    %p232 = scmp.ne.s32.totalorder %s223, %s224
    %p233 = scmp.eq.s32.totalorder %s24, 0
    %p234 = por %p232, %p233
    %p235 = scmp.ne.s32.totalorder %s223, %s224
    %p236 = scmp.eq.s32.totalorder %s25, 1
    %p237 = por %p235, %p236
    %p239 = scmp.ne.s32.totalorder %s224, %s238
    %p240 = scmp.eq.s32.totalorder %s25, 0
    %p241 = por %p239, %p240
    %s243 = sadd.s32 %s242, 1
    %p246 = scmp.eq.s32.totalorder %s19, 1
    %p247 = scmp.ne.s32.totalorder %s242, %s244
    %p248 = scmp.eq.s32.totalorder %s19, 0
    %p249 = por %p247, %p248
    %p250 = scmp.ne.s32.totalorder %s242, %s244
    %p251 = scmp.eq.s32.totalorder %s24, 1
    %p252 = por %p250, %p251
    %p253 = scmp.ne.s32.totalorder %s244, %s245
    %p254 = scmp.eq.s32.totalorder %s24, 0
    %p255 = por %p253, %p254
    %p256 = scmp.ne.s32.totalorder %s244, %s245
    %p257 = scmp.eq.s32.totalorder %s25, 1
    %p258 = por %p256, %p257
    %p260 = scmp.ne.s32.totalorder %s245, %s259
    %p261 = scmp.eq.s32.totalorder %s25, 0
    %p262 = por %p260, %p261
    %s264 = sadd.s32 %s263, 1
    %p267 = scmp.eq.s32.totalorder %s19, 1
    %p268 = scmp.ne.s32.totalorder %s263, %s265
    %p269 = scmp.eq.s32.totalorder %s19, 0
    %p270 = por %p268, %p269
    %p271 = scmp.ne.s32.totalorder %s263, %s265
    %p272 = scmp.eq.s32.totalorder %s24, 1
    %p273 = por %p271, %p272
    %p274 = scmp.ne.s32.totalorder %s265, %s266
    %p275 = scmp.eq.s32.totalorder %s24, 0
    %p276 = por %p274, %p275
    %p277 = scmp.ne.s32.totalorder %s265, %s266
    %p278 = scmp.eq.s32.totalorder %s25, 1
    %p279 = por %p277, %p278
    %p281 = scmp.ne.s32.totalorder %s266, %s280
    %p282 = scmp.eq.s32.totalorder %s25, 0
    %p283 = por %p281, %p282
    %s285 = sadd.s32 %s284, 1
    %p288 = scmp.eq.s32.totalorder %s19, 1
    %p289 = scmp.ne.s32.totalorder %s284, %s286
    %p290 = scmp.eq.s32.totalorder %s19, 0
    %p291 = por %p289, %p290
    %p292 = scmp.ne.s32.totalorder %s284, %s286
    %p293 = scmp.eq.s32.totalorder %s24, 1
    %p294 = por %p292, %p293
    %p295 = scmp.ne.s32.totalorder %s286, %s287
    %p296 = scmp.eq.s32.totalorder %s24, 0
    %p297 = por %p295, %p296
    %p298 = scmp.ne.s32.totalorder %s286, %s287
    %p299 = scmp.eq.s32.totalorder %s25, 1
    %p300 = por %p298, %p299
    %p302 = scmp.ne.s32.totalorder %s287, %s301
    %p303 = scmp.eq.s32.totalorder %s25, 0
    %p304 = por %p302, %p303
    %s305 = ssub.s32 %s19, %s26
    %p306 = scmp.eq.s32.totalorder %s305, 0
    %s308 = sadd.s32 %s307, 1
    %s309 = scalar_select %p306, %s307, %s308
    %p312 = pneg %p306
    %p313 = scmp.eq.s32.totalorder %s19, 1
    %p314 = por %p312, %p313
    %p315 = scmp.ne.s32.totalorder %s307, %s310
    %p316 = scmp.eq.s32.totalorder %s19, 0
    %p317 = por %p315, %p316
    %p318 = scmp.ne.s32.totalorder %s307, %s310
    %p319 = scmp.eq.s32.totalorder %s24, 1
    %p320 = por %p318, %p319
    %p321 = scmp.ne.s32.totalorder %s310, %s311
    %p322 = scmp.eq.s32.totalorder %s24, 0
    %p323 = por %p321, %p322
    %p324 = scmp.ne.s32.totalorder %s310, %s311
    %p325 = scmp.eq.s32.totalorder %s25, 1
    %p326 = por %p324, %p325
    %p328 = scmp.ne.s32.totalorder %s311, %s327
    %p329 = scmp.eq.s32.totalorder %s25, 0
    %p330 = por %p328, %p329
    %p331 = scmp.le.s32.totalorder 1, %s19
    %p332 = scmp.lt.s32.totalorder %s19, 3
    %p333 = pnand %p331, %p332
    %p334 = pneg %p333
    // Predicated region
    $region9: #{forward.4} parent=5 // pred_check
      _
    $region10: #{forward.4} parent=5 // pred_check_branch
      %336 = sbr.rel (%p333) target = $region12
    $region11: #{forward.4} parent=5 // pred_region
      %s337 = ssub.s32 %s19, 1
      // Predicated region
      $region13: #{forward.4} parent=11 // pred_check
        %p338 = pneg %p66
      $region14: #{forward.4} parent=11 // pred_check_branch
        %340 = sbr.rel (%p338) target = $region16
      $region15: #{forward.4} parent=11 // pred_region
        _
      $region16: #{forward.4} parent=11 // pred_fallthru
        _
      // Predicated region
      $region17: #{forward.4} parent=11 // pred_check
        %p341 = pneg %p87
      $region18: #{forward.4} parent=11 // pred_check_branch
        %343 = sbr.rel (%p341) target = $region20
      $region19: #{forward.4} parent=11 // pred_region
        _
      $region20: #{forward.4} parent=11 // pred_fallthru
        _
      // Predicated region
      $region21: #{forward.4} parent=11 // pred_check
        %p344 = pneg %p108
      $region22: #{forward.4} parent=11 // pred_check_branch
        %346 = sbr.rel (%p344) target = $region24
      $region23: #{forward.4} parent=11 // pred_region
        _
      $region24: #{forward.4} parent=11 // pred_fallthru
        _
      // Predicated region
      $region25: #{forward.4} parent=11 // pred_check
        %p347 = pneg %p129
      $region26: #{forward.4} parent=11 // pred_check_branch
        %349 = sbr.rel (%p347) target = $region28
      $region27: #{forward.4} parent=11 // pred_region
        _
      $region28: #{forward.4} parent=11 // pred_fallthru
        _
      // Predicated region
      $region29: #{forward.4} parent=11 // pred_check
        %p350 = pneg %p150
      $region30: #{forward.4} parent=11 // pred_check_branch
        %352 = sbr.rel (%p350) target = $region32
      $region31: #{forward.4} parent=11 // pred_region
        _
      $region32: #{forward.4} parent=11 // pred_fallthru
        _
      // Predicated region
      $region33: #{forward.4} parent=11 // pred_check
        %p353 = pneg %p171
      $region34: #{forward.4} parent=11 // pred_check_branch
        %355 = sbr.rel (%p353) target = $region36
      $region35: #{forward.4} parent=11 // pred_region
        _
      $region36: #{forward.4} parent=11 // pred_fallthru
        _
      // Predicated region
      $region37: #{forward.4} parent=11 // pred_check
        %p356 = pneg %p192
      $region38: #{forward.4} parent=11 // pred_check_branch
        %358 = sbr.rel (%p356) target = $region40
      $region39: #{forward.4} parent=11 // pred_region
        _
      $region40: #{forward.4} parent=11 // pred_fallthru
        _
      // Predicated region
      $region41: #{forward.4} parent=11 // pred_check
        %p359 = pneg %p213
      $region42: #{forward.4} parent=11 // pred_check_branch
        %361 = sbr.rel (%p359) target = $region44
      $region43: #{forward.4} parent=11 // pred_region
        _
      $region44: #{forward.4} parent=11 // pred_fallthru
        _
      // Predicated region
      $region45: #{forward.4} parent=11 // pred_check
        %p362 = pneg %p234
      $region46: #{forward.4} parent=11 // pred_check_branch
        %364 = sbr.rel (%p362) target = $region48
      $region47: #{forward.4} parent=11 // pred_region
        _
      $region48: #{forward.4} parent=11 // pred_fallthru
        _
      // Predicated region
      $region49: #{forward.4} parent=11 // pred_check
        %p365 = pneg %p255
      $region50: #{forward.4} parent=11 // pred_check_branch
        %367 = sbr.rel (%p365) target = $region52
      $region51: #{forward.4} parent=11 // pred_region
        _
      $region52: #{forward.4} parent=11 // pred_fallthru
        _
      // Predicated region
      $region53: #{forward.4} parent=11 // pred_check
        %p368 = pneg %p276
      $region54: #{forward.4} parent=11 // pred_check_branch
        %370 = sbr.rel (%p368) target = $region56
      $region55: #{forward.4} parent=11 // pred_region
        _
      $region56: #{forward.4} parent=11 // pred_fallthru
        _
      // Predicated region
      $region57: #{forward.4} parent=11 // pred_check
        %p371 = pneg %p297
      $region58: #{forward.4} parent=11 // pred_check_branch
        %373 = sbr.rel (%p371) target = $region60
      $region59: #{forward.4} parent=11 // pred_region
        _
      $region60: #{forward.4} parent=11 // pred_fallthru
        _
    $region12: #{forward.4} parent=5 // pred_fallthru
      _
    %p374 = scmp.lt.s32.totalorder %s19, 2
    // Predicated region
    $region61: #{forward.4} parent=5 // pred_check
      %p375 = pneg %p374
    $region62: #{forward.4} parent=5 // pred_check_branch
      %377 = sbr.rel (%p375) target = $region64
    $region63: #{forward.4} parent=5 // pred_region
      // Predicated region
      $region65: #{forward.4} parent=63 // pred_check
        %p378 = pneg %p39
      $region66: #{forward.4} parent=63 // pred_check_branch
        %380 = sbr.rel (%p378) target = $region68
      $region67: #{forward.4} parent=63 // pred_region
        %p381 = scmp.lt.s32.totalorder %s19, 1
        %s382 = scalar_select %p381, %s19, 1
        %s383 = smul.addr %s382, 8
        %s384 = scalar_lea.vmem %s0, %s383
      $region68: #{forward.4} parent=63 // pred_fallthru
        _
    $region64: #{forward.4} parent=5 // pred_fallthru
      _
    %p385 = scmp.le.s32.totalorder 1, %s19
    %p386 = scmp.lt.s32.totalorder %s19, 3
    %p387 = pnand %p385, %p386
    %p388 = pneg %p387
    // Predicated region
    $region69: #{forward.4} parent=5 // pred_check
      _
    $region70: #{forward.4} parent=5 // pred_check_branch
      %390 = sbr.rel (%p387) target = $region72
    $region71: #{forward.4} parent=5 // pred_region
      %s391 = ssub.s32 %s19, 1
      %p392 = scmp.lt.s32.totalorder %s24, 1
      %s393 = scalar_select %p392, %s24, 1
      %s394 = smul.addr %s393, 8
      %s395 = scalar_lea.vmem %s0, %s394
      %p396 = pneg %p45
      %p397 = pneg %p42
      %p398 = pneg %p66
      %p399 = pneg %p63
      %p400 = pneg %p87
      %p401 = pneg %p84
      %p402 = pneg %p108
      %p403 = pneg %p105
      %p404 = pneg %p129
      %p405 = pneg %p126
      %p406 = pneg %p150
      %p407 = pneg %p147
      %p408 = pneg %p171
      %p409 = pneg %p168
      %p410 = pneg %p192
      %p411 = pneg %p189
      %p412 = pneg %p213
      %p413 = pneg %p210
      %p414 = pneg %p234
      %p415 = pneg %p231
      %p416 = pneg %p255
      %p417 = pneg %p252
      %p418 = pneg %p276
      %p419 = pneg %p273
      %p420 = pneg %p297
      %p421 = pneg %p294
      %p422 = pneg %p323
      %p423 = pneg %p320
      %p424 = scmp.lt.s32.totalorder %s24, 1
      %s425 = scalar_select %p424, %s24, 1
      %s426 = smul.addr %s425, 8
      %s427 = scalar_lea.vmem %s13, %s426
      %p428 = scmp.lt.s32.totalorder %s24, 1
      %s429 = scalar_select %p428, %s24, 1
      %s430 = smul.addr %s429, 8
      %s431 = scalar_lea.vmem %s0, %s430
      %p432 = scmp.lt.s32.totalorder %s24, 1
      %s433 = scalar_select %p432, %s24, 1
      %s434 = smul.addr %s433, 8
      %s435 = scalar_lea.vmem %s13, %s434
      %v436 = vld [vmem:[%s431] sm:$0xff]
      %v437 = vld [vmem:[%s1] sm:$0xff]
      %v438 = vld [vmem:[%s1 + $0x8] sm:$0xff]
      %v439 = vld [vmem:[%s1 + $0x10] sm:$0xff]
      %v440 = vld [vmem:[%s1 + $0x18] sm:$0xff]
      %v441 = vld [vmem:[%s2] sm:$0x1]
      %v443 = vlaneseq
      %v444 = vshrl.u32 %v443, 7
      %v445 = vsub.s32 0, %v444
      %v446 = vrot.slane %v441, %v445
      %vm448 = vcmask 261120
      %v450 = vsel %vm448, %v436, 0
      %452 = vmatprep.subr.mxu0 0.0
      %453 = vmatpush1.msra.mxu0 %v437
      %454 = vmatprep.subr.mxu0 0.0
      %455 = vmatpush1.msra.mxu0 %v438
      %456 = vmatprep.subr.mxu0 0.0
      %457 = vmatpush1.msra.mxu0 %v439
      %458 = vmatprep.subr.mxu0 0.0
      %459 = vmatpush1.msra.mxu0 %v440
      %460 = vmatprep.subr.mxu0 0.0
      %461 = vmatpush1.msra.mxu0 0.0
      %462 = vmatprep.subr.mxu0 0.0
      %463 = vmatpush1.msra.mxu0 0.0
      %464 = vmatprep.subr.mxu0 0.0
      %465 = vmatpush1.msra.mxu0 0.0
      %466 = vmatprep.subr.mxu0 0.0
      %467 = vmatpush1.msra.mxu0 0.0
      %468 = vmatprep.subr.mxu0 0.0
      %469 = vmatpush1.msra.mxu0 0.0
      %470 = vmatprep.subr.mxu0 0.0
      %471 = vmatpush1.msra.mxu0 0.0
      %472 = vmatprep.subr.mxu0 0.0
      %473 = vmatpush1.msra.mxu0 0.0
      %474 = vmatprep.subr.mxu0 0.0
      %475 = vmatpush1.msra.mxu0 0.0
      %476 = vmatprep.subr.mxu0 0.0
      %477 = vmatpush1.msra.mxu0 0.0
      %478 = vmatprep.subr.mxu0 0.0
      %479 = vmatpush1.msra.mxu0 0.0
      %480 = vmatprep.subr.mxu0 0.0
      %481 = vmatpush1.msra.mxu0 0.0
      %482 = vmatprep.subr.mxu0 0.0
      %483 = vmatpush1.msra.mxu0 0.0
      %484 = vmatprep.subr.mxu0 0.0
      %485 = vmatpush1.msra.mxu0 0.0
      %486 = vmatprep.subr.mxu0 0.0
      %487 = vmatpush1.msra.mxu0 0.0
      %488 = vmatprep.subr.mxu0 0.0
      %489 = vmatpush1.msra.mxu0 0.0
      %490 = vmatprep.subr.mxu0 0.0
      %491 = vmatpush1.msra.mxu0 0.0
      %492 = vmatprep.subr.mxu0 0.0
      %493 = vmatpush1.msra.mxu0 0.0
      %494 = vmatprep.subr.mxu0 0.0
      %495 = vmatpush1.msra.mxu0 0.0
      %496 = vmatprep.subr.mxu0 0.0
      %497 = vmatpush1.msra.mxu0 0.0
      %498 = vmatprep.subr.mxu0 0.0
      %499 = vmatpush1.msra.mxu0 0.0
      %500 = vmatprep.subr.mxu0 0.0
      %501 = vmatpush1.msra.mxu0 0.0
      %502 = vmatprep.subr.mxu0 0.0
      %503 = vmatpush1.msra.mxu0 0.0
      %504 = vmatprep.subr.mxu0 0.0
      %505 = vmatpush1.msra.mxu0 0.0
      %506 = vmatprep.subr.mxu0 0.0
      %507 = vmatpush1.msra.mxu0 0.0
      %508 = vmatprep.subr.mxu0 0.0
      %509 = vmatpush1.msra.mxu0 0.0
      %510 = vmatprep.subr.mxu0 0.0
      %511 = vmatpush1.msra.mxu0 0.0
      %512 = vmatprep.subr.mxu0 0.0
      %513 = vmatpush1.msra.mxu0 0.0
      %514 = vmatprep.subr.mxu0 0.0
      %515 = vmatpush1.msra.mxu0 0.0
      %516 = vmatprep.mubr.f32.mxu0 0.0
      %517 = vmatmul.mubr.f32.gmra.mrb[0].mxu0 %v450
      %v518 = vpop.f32.mrb[0].mxu0
      %v519 = vadd.f32 %v446, %v518
      %v520 = vpop.f32.mrb[0].mxu0
      %521 = vdwg.mxu0
      %523 = vrot.lane.b32.xlu0 %v519, 96
      %v524 = vpop.permute.xlu0 %523
      %vm525 = vcmask 64512
      %v526 = vsel %vm525, %v519, 0
      %v528 = vsel %vm525, %v524, 0
      %530 = vmatprep.subr.mxu0 0.0
      %531 = vmatpush1.xpose.msra.mxu0 %v528
      %532 = vmatprep.subr.mxu0 0.0
      %533 = vmatpush1.xpose.msra.mxu0 0.0
      %534 = vmatprep.subr.mxu0 0.0
      %535 = vmatpush1.xpose.msra.mxu0 0.0
      %536 = vmatprep.subr.mxu0 0.0
      %537 = vmatpush1.xpose.msra.mxu0 0.0
      %538 = vmatprep.subr.mxu0 0.0
      %539 = vmatpush1.xpose.msra.mxu0 0.0
      %540 = vmatprep.subr.mxu0 0.0
      %541 = vmatpush1.xpose.msra.mxu0 0.0
      %542 = vmatprep.subr.mxu0 0.0
      %543 = vmatpush1.xpose.msra.mxu0 0.0
      %544 = vmatprep.subr.mxu0 0.0
      %545 = vmatpush1.xpose.msra.mxu0 0.0
      %546 = vmatprep.subr.mxu0 0.0
      %547 = vmatpush1.xpose.msra.mxu0 0.0
      %548 = vmatprep.subr.mxu0 0.0
      %549 = vmatpush1.xpose.msra.mxu0 0.0
      %550 = vmatprep.subr.mxu0 0.0
      %551 = vmatpush1.xpose.msra.mxu0 0.0
      %552 = vmatprep.subr.mxu0 0.0
      %553 = vmatpush1.xpose.msra.mxu0 0.0
      %554 = vmatprep.subr.mxu0 0.0
      %555 = vmatpush1.xpose.msra.mxu0 0.0
      %556 = vmatprep.subr.mxu0 0.0
      %557 = vmatpush1.xpose.msra.mxu0 0.0
      %558 = vmatprep.subr.mxu0 0.0
      %559 = vmatpush1.xpose.msra.mxu0 0.0
      %560 = vmatprep.subr.mxu0 0.0
      %561 = vmatpush1.xpose.msra.mxu0 0.0
      %562 = vmatprep.subr.mxu0 0.0
      %563 = vmatpush1.xpose.msra.mxu0 0.0
      %564 = vmatprep.subr.mxu0 0.0
      %565 = vmatpush1.xpose.msra.mxu0 0.0
      %566 = vmatprep.subr.mxu0 0.0
      %567 = vmatpush1.xpose.msra.mxu0 0.0
      %568 = vmatprep.subr.mxu0 0.0
      %569 = vmatpush1.xpose.msra.mxu0 0.0
      %570 = vmatprep.subr.mxu0 0.0
      %571 = vmatpush1.xpose.msra.mxu0 0.0
      %572 = vmatprep.subr.mxu0 0.0
      %573 = vmatpush1.xpose.msra.mxu0 0.0
      %574 = vmatprep.subr.mxu0 0.0
      %575 = vmatpush1.xpose.msra.mxu0 0.0
      %576 = vmatprep.subr.mxu0 0.0
      %577 = vmatpush1.xpose.msra.mxu0 0.0
      %578 = vmatprep.subr.mxu0 0.0
      %579 = vmatpush1.xpose.msra.mxu0 0.0
      %580 = vmatprep.subr.mxu0 0.0
      %581 = vmatpush1.xpose.msra.mxu0 0.0
      %582 = vmatprep.subr.mxu0 0.0
      %583 = vmatpush1.xpose.msra.mxu0 0.0
      %584 = vmatprep.subr.mxu0 0.0
      %585 = vmatpush1.xpose.msra.mxu0 0.0
      %586 = vmatprep.subr.mxu0 0.0
      %587 = vmatpush1.xpose.msra.mxu0 0.0
      %588 = vmatprep.subr.mxu0 0.0
      %589 = vmatpush1.xpose.msra.mxu0 0.0
      %590 = vmatprep.subr.mxu0 0.0
      %591 = vmatpush1.xpose.msra.mxu0 0.0
      %592 = vmatprep.subr.mxu0 0.0
      %593 = vmatpush1.xpose.msra.mxu0 0.0
      %594 = vmatprep.mubr.f32.mxu0 0.0
      %595 = vmatmul.mubr.f32.gmra.mrb[0].mxu0 %v526
      %v596 = vpop.f32.mrb[0].mxu0
      %v597 = vadd.f32 0.0, %v596
      %v598 = vpop.f32.mrb[0].mxu0
      %599 = vdwg.mxu0
      %v600 = vsel %vm525, %v597, -inf
      %601 = vmax.xlane.f32.xlu0 %v600
      %v602 = vpop.xlane.xlu0 %601
      %v603 = vsub.f32 %v597, %v602
      %v604 = vmul.f32 %v603, 1.442695
      %v605 = vpow.pop %v604
      %v606 = vsel %vm525, %v605, 0.0
      %607 = vadd.xlane.f32.xlu0 %v606
      %v608 = vpop.xlane.xlu0 %607
      %v609 = vrcp.pop %v608
      %v610 = vmul.f32 %v605, %v609
      %611 = vrot.lane.b32.xlu0 %v519, 64
      %v612 = vpop.permute.xlu0 %611
      %v615 = vsel %vm525, %v610, 0
      %617 = vmatprep.subr.mxu0 0.0
      %618 = vmatpush1.msra.mxu0 %v612
      %619 = vmatprep.subr.mxu0 0.0
      %620 = vmatpush1.msra.mxu0 0.0
      %621 = vmatprep.subr.mxu0 0.0
      %622 = vmatpush1.msra.mxu0 0.0
      %623 = vmatprep.subr.mxu0 0.0
      %624 = vmatpush1.msra.mxu0 0.0
      %625 = vmatprep.subr.mxu0 0.0
      %626 = vmatpush1.msra.mxu0 0.0
      %627 = vmatprep.subr.mxu0 0.0
      %628 = vmatpush1.msra.mxu0 0.0
      %629 = vmatprep.subr.mxu0 0.0
      %630 = vmatpush1.msra.mxu0 0.0
      %631 = vmatprep.subr.mxu0 0.0
      %632 = vmatpush1.msra.mxu0 0.0
      %633 = vmatprep.subr.mxu0 0.0
      %634 = vmatpush1.msra.mxu0 0.0
      %635 = vmatprep.subr.mxu0 0.0
      %636 = vmatpush1.msra.mxu0 0.0
      %637 = vmatprep.subr.mxu0 0.0
      %638 = vmatpush1.msra.mxu0 0.0
      %639 = vmatprep.subr.mxu0 0.0
      %640 = vmatpush1.msra.mxu0 0.0
      %641 = vmatprep.subr.mxu0 0.0
      %642 = vmatpush1.msra.mxu0 0.0
      %643 = vmatprep.subr.mxu0 0.0
      %644 = vmatpush1.msra.mxu0 0.0
      %645 = vmatprep.subr.mxu0 0.0
      %646 = vmatpush1.msra.mxu0 0.0
      %647 = vmatprep.subr.mxu0 0.0
      %648 = vmatpush1.msra.mxu0 0.0
      %649 = vmatprep.subr.mxu0 0.0
      %650 = vmatpush1.msra.mxu0 0.0
      %651 = vmatprep.subr.mxu0 0.0
      %652 = vmatpush1.msra.mxu0 0.0
      %653 = vmatprep.subr.mxu0 0.0
      %654 = vmatpush1.msra.mxu0 0.0
      %655 = vmatprep.subr.mxu0 0.0
      %656 = vmatpush1.msra.mxu0 0.0
      %657 = vmatprep.subr.mxu0 0.0
      %658 = vmatpush1.msra.mxu0 0.0
      %659 = vmatprep.subr.mxu0 0.0
      %660 = vmatpush1.msra.mxu0 0.0
      %661 = vmatprep.subr.mxu0 0.0
      %662 = vmatpush1.msra.mxu0 0.0
      %663 = vmatprep.subr.mxu0 0.0
      %664 = vmatpush1.msra.mxu0 0.0
      %665 = vmatprep.subr.mxu0 0.0
      %666 = vmatpush1.msra.mxu0 0.0
      %667 = vmatprep.subr.mxu0 0.0
      %668 = vmatpush1.msra.mxu0 0.0
      %669 = vmatprep.subr.mxu0 0.0
      %670 = vmatpush1.msra.mxu0 0.0
      %671 = vmatprep.subr.mxu0 0.0
      %672 = vmatpush1.msra.mxu0 0.0
      %673 = vmatprep.subr.mxu0 0.0
      %674 = vmatpush1.msra.mxu0 0.0
      %675 = vmatprep.subr.mxu0 0.0
      %676 = vmatpush1.msra.mxu0 0.0
      %677 = vmatprep.subr.mxu0 0.0
      %678 = vmatpush1.msra.mxu0 0.0
      %679 = vmatprep.subr.mxu0 0.0
      %680 = vmatpush1.msra.mxu0 0.0
      %681 = vmatprep.mubr.f32.mxu0 0.0
      %682 = vmatmul.mubr.f32.gmra.mrb[0].mxu0 %v615
      %v683 = vpop.f32.mrb[0].mxu0
      %v684 = vadd.f32 0.0, %v683
      %v685 = vpop.f32.mrb[0].mxu0
      %686 = vdwg.mxu0
      %687 = vst.msk [vmem:[#allocation2] sm:$0xff] %vm525, %v684
      %688 = vrot.lane.b32.xlu0 %v519, 120
      %v689 = vpop.permute.xlu0 %688
      %690 = vrot.lane.b32.xlu0 %v519, 88
      %v691 = vpop.permute.xlu0 %690
      %v692 = vsel %vm525, %v689, 0
      %v694 = vsel %vm525, %v691, 0
      %696 = vmatprep.subr.mxu0 0.0
      %697 = vmatpush1.xpose.msra.mxu0 %v694
      %698 = vmatprep.subr.mxu0 0.0
      %699 = vmatpush1.xpose.msra.mxu0 0.0
      %700 = vmatprep.subr.mxu0 0.0
      %701 = vmatpush1.xpose.msra.mxu0 0.0
      %702 = vmatprep.subr.mxu0 0.0
      %703 = vmatpush1.xpose.msra.mxu0 0.0
      %704 = vmatprep.subr.mxu0 0.0
      %705 = vmatpush1.xpose.msra.mxu0 0.0
      %706 = vmatprep.subr.mxu0 0.0
      %707 = vmatpush1.xpose.msra.mxu0 0.0
      %708 = vmatprep.subr.mxu0 0.0
      %709 = vmatpush1.xpose.msra.mxu0 0.0
      %710 = vmatprep.subr.mxu0 0.0
      %711 = vmatpush1.xpose.msra.mxu0 0.0
      %712 = vmatprep.subr.mxu0 0.0
      %713 = vmatpush1.xpose.msra.mxu0 0.0
      %714 = vmatprep.subr.mxu0 0.0
      %715 = vmatpush1.xpose.msra.mxu0 0.0
      %716 = vmatprep.subr.mxu0 0.0
      %717 = vmatpush1.xpose.msra.mxu0 0.0
      %718 = vmatprep.subr.mxu0 0.0
      %719 = vmatpush1.xpose.msra.mxu0 0.0
      %720 = vmatprep.subr.mxu0 0.0
      %721 = vmatpush1.xpose.msra.mxu0 0.0
      %722 = vmatprep.subr.mxu0 0.0
      %723 = vmatpush1.xpose.msra.mxu0 0.0
      %724 = vmatprep.subr.mxu0 0.0
      %725 = vmatpush1.xpose.msra.mxu0 0.0
      %726 = vmatprep.subr.mxu0 0.0
      %727 = vmatpush1.xpose.msra.mxu0 0.0
      %728 = vmatprep.subr.mxu0 0.0
      %729 = vmatpush1.xpose.msra.mxu0 0.0
      %730 = vmatprep.subr.mxu0 0.0
      %731 = vmatpush1.xpose.msra.mxu0 0.0
      %732 = vmatprep.subr.mxu0 0.0
      %733 = vmatpush1.xpose.msra.mxu0 0.0
      %734 = vmatprep.subr.mxu0 0.0
      %735 = vmatpush1.xpose.msra.mxu0 0.0
      %736 = vmatprep.subr.mxu0 0.0
      %737 = vmatpush1.xpose.msra.mxu0 0.0
      %738 = vmatprep.subr.mxu0 0.0
      %739 = vmatpush1.xpose.msra.mxu0 0.0
      %740 = vmatprep.subr.mxu0 0.0
      %741 = vmatpush1.xpose.msra.mxu0 0.0
      %742 = vmatprep.subr.mxu0 0.0
      %743 = vmatpush1.xpose.msra.mxu0 0.0
      %744 = vmatprep.subr.mxu0 0.0
      %745 = vmatpush1.xpose.msra.mxu0 0.0
      %746 = vmatprep.subr.mxu0 0.0
      %747 = vmatpush1.xpose.msra.mxu0 0.0
      %748 = vmatprep.subr.mxu0 0.0
      %749 = vmatpush1.xpose.msra.mxu0 0.0
      %750 = vmatprep.subr.mxu0 0.0
      %751 = vmatpush1.xpose.msra.mxu0 0.0
      %752 = vmatprep.subr.mxu0 0.0
      %753 = vmatpush1.xpose.msra.mxu0 0.0
      %754 = vmatprep.subr.mxu0 0.0
      %755 = vmatpush1.xpose.msra.mxu0 0.0
      %756 = vmatprep.subr.mxu0 0.0
      %757 = vmatpush1.xpose.msra.mxu0 0.0
      %758 = vmatprep.subr.mxu0 0.0
      %759 = vmatpush1.xpose.msra.mxu0 0.0
      %760 = vmatprep.mubr.f32.mxu0 0.0
      %761 = vmatmul.mubr.f32.gmra.mrb[0].mxu0 %v692
      %v762 = vpop.f32.mrb[0].mxu0
      %v763 = vadd.f32 0.0, %v762
      %v764 = vpop.f32.mrb[0].mxu0
      %765 = vdwg.mxu0
      %v766 = vsel %vm525, %v763, -inf
      %767 = vmax.xlane.f32.xlu0 %v766
      %v768 = vpop.xlane.xlu0 %767
      %v769 = vsub.f32 %v763, %v768
      %v770 = vmul.f32 %v769, 1.442695
      %v771 = vpow.pop %v770
      %v772 = vsel %vm525, %v771, 0.0
      %773 = vadd.xlane.f32.xlu0 %v772
      %v774 = vpop.xlane.xlu0 %773
      %v775 = vrcp.pop %v774
      %v776 = vmul.f32 %v771, %v775
      %777 = vrot.lane.b32.xlu0 %v519, 56
      %v778 = vpop.permute.xlu0 %777
      %v781 = vsel %vm525, %v776, 0
      %783 = vmatprep.subr.mxu0 0.0
      %784 = vmatpush1.msra.mxu0 %v778
      %785 = vmatprep.subr.mxu0 0.0
      %786 = vmatpush1.msra.mxu0 0.0
      %787 = vmatprep.subr.mxu0 0.0
      %788 = vmatpush1.msra.mxu0 0.0
      %789 = vmatprep.subr.mxu0 0.0
      %790 = vmatpush1.msra.mxu0 0.0
      %791 = vmatprep.subr.mxu0 0.0
      %792 = vmatpush1.msra.mxu0 0.0
      %793 = vmatprep.subr.mxu0 0.0
      %794 = vmatpush1.msra.mxu0 0.0
      %795 = vmatprep.subr.mxu0 0.0
      %796 = vmatpush1.msra.mxu0 0.0
      %797 = vmatprep.subr.mxu0 0.0
      %798 = vmatpush1.msra.mxu0 0.0
      %799 = vmatprep.subr.mxu0 0.0
      %800 = vmatpush1.msra.mxu0 0.0
      %801 = vmatprep.subr.mxu0 0.0
      %802 = vmatpush1.msra.mxu0 0.0
      %803 = vmatprep.subr.mxu0 0.0
      %804 = vmatpush1.msra.mxu0 0.0
      %805 = vmatprep.subr.mxu0 0.0
      %806 = vmatpush1.msra.mxu0 0.0
      %807 = vmatprep.subr.mxu0 0.0
      %808 = vmatpush1.msra.mxu0 0.0
      %809 = vmatprep.subr.mxu0 0.0
      %810 = vmatpush1.msra.mxu0 0.0
      %811 = vmatprep.subr.mxu0 0.0
      %812 = vmatpush1.msra.mxu0 0.0
      %813 = vmatprep.subr.mxu0 0.0
      %814 = vmatpush1.msra.mxu0 0.0
      %815 = vmatprep.subr.mxu0 0.0
      %816 = vmatpush1.msra.mxu0 0.0
      %817 = vmatprep.subr.mxu0 0.0
      %818 = vmatpush1.msra.mxu0 0.0
      %819 = vmatprep.subr.mxu0 0.0
      %820 = vmatpush1.msra.mxu0 0.0
      %821 = vmatprep.subr.mxu0 0.0
      %822 = vmatpush1.msra.mxu0 0.0
      %823 = vmatprep.subr.mxu0 0.0
      %824 = vmatpush1.msra.mxu0 0.0
      %825 = vmatprep.subr.mxu0 0.0
      %826 = vmatpush1.msra.mxu0 0.0
      %827 = vmatprep.subr.mxu0 0.0
      %828 = vmatpush1.msra.mxu0 0.0
      %829 = vmatprep.subr.mxu0 0.0
      %830 = vmatpush1.msra.mxu0 0.0
      %831 = vmatprep.subr.mxu0 0.0
      %832 = vmatpush1.msra.mxu0 0.0
      %833 = vmatprep.subr.mxu0 0.0
      %834 = vmatpush1.msra.mxu0 0.0
      %835 = vmatprep.subr.mxu0 0.0
      %836 = vmatpush1.msra.mxu0 0.0
      %837 = vmatprep.subr.mxu0 0.0
      %838 = vmatpush1.msra.mxu0 0.0
      %839 = vmatprep.subr.mxu0 0.0
      %840 = vmatpush1.msra.mxu0 0.0
      %841 = vmatprep.subr.mxu0 0.0
      %842 = vmatpush1.msra.mxu0 0.0
      %843 = vmatprep.subr.mxu0 0.0
      %844 = vmatpush1.msra.mxu0 0.0
      %845 = vmatprep.subr.mxu0 0.0
      %846 = vmatpush1.msra.mxu0 0.0
      %847 = vmatprep.mubr.f32.mxu0 0.0
      %848 = vmatmul.mubr.f32.gmra.mrb[0].mxu0 %v781
      %v849 = vpop.f32.mrb[0].mxu0
      %v850 = vadd.f32 0.0, %v849
      %v851 = vpop.f32.mrb[0].mxu0
      %852 = vdwg.mxu0
      %854 = vrot.lane.b32.xlu0 %v850, 8
      %v855 = vpop.permute.xlu0 %854
      %vm857 = vcmask 130112
      %858 = vst.msk [vmem:[#allocation2] sm:$0xff] %vm857, %v855
      %859 = vrot.lane.b32.xlu0 %v519, 112
      %v860 = vpop.permute.xlu0 %859
      %861 = vrot.lane.b32.xlu0 %v519, 80
      %v862 = vpop.permute.xlu0 %861
      %v863 = vsel %vm525, %v860, 0
      %v865 = vsel %vm525, %v862, 0
      %867 = vmatprep.subr.mxu0 0.0
      %868 = vmatpush1.xpose.msra.mxu0 %v865
      %869 = vmatprep.subr.mxu0 0.0
      %870 = vmatpush1.xpose.msra.mxu0 0.0
      %871 = vmatprep.subr.mxu0 0.0
      %872 = vmatpush1.xpose.msra.mxu0 0.0
      %873 = vmatprep.subr.mxu0 0.0
      %874 = vmatpush1.xpose.msra.mxu0 0.0
      %875 = vmatprep.subr.mxu0 0.0
      %876 = vmatpush1.xpose.msra.mxu0 0.0
      %877 = vmatprep.subr.mxu0 0.0
      %878 = vmatpush1.xpose.msra.mxu0 0.0
      %879 = vmatprep.subr.mxu0 0.0
      %880 = vmatpush1.xpose.msra.mxu0 0.0
      %881 = vmatprep.subr.mxu0 0.0
      %882 = vmatpush1.xpose.msra.mxu0 0.0
      %883 = vmatprep.subr.mxu0 0.0
      %884 = vmatpush1.xpose.msra.mxu0 0.0
      %885 = vmatprep.subr.mxu0 0.0
      %886 = vmatpush1.xpose.msra.mxu0 0.0
      %887 = vmatprep.subr.mxu0 0.0
      %888 = vmatpush1.xpose.msra.mxu0 0.0
      %889 = vmatprep.subr.mxu0 0.0
      %890 = vmatpush1.xpose.msra.mxu0 0.0
      %891 = vmatprep.subr.mxu0 0.0
      %892 = vmatpush1.xpose.msra.mxu0 0.0
      %893 = vmatprep.subr.mxu0 0.0
      %894 = vmatpush1.xpose.msra.mxu0 0.0
      %895 = vmatprep.subr.mxu0 0.0
      %896 = vmatpush1.xpose.msra.mxu0 0.0
      %897 = vmatprep.subr.mxu0 0.0
      %898 = vmatpush1.xpose.msra.mxu0 0.0
      %899 = vmatprep.subr.mxu0 0.0
      %900 = vmatpush1.xpose.msra.mxu0 0.0
      %901 = vmatprep.subr.mxu0 0.0
      %902 = vmatpush1.xpose.msra.mxu0 0.0
      %903 = vmatprep.subr.mxu0 0.0
      %904 = vmatpush1.xpose.msra.mxu0 0.0
      %905 = vmatprep.subr.mxu0 0.0
      %906 = vmatpush1.xpose.msra.mxu0 0.0
      %907 = vmatprep.subr.mxu0 0.0
      %908 = vmatpush1.xpose.msra.mxu0 0.0
      %909 = vmatprep.subr.mxu0 0.0
      %910 = vmatpush1.xpose.msra.mxu0 0.0
      %911 = vmatprep.subr.mxu0 0.0
      %912 = vmatpush1.xpose.msra.mxu0 0.0
      %913 = vmatprep.subr.mxu0 0.0
      %914 = vmatpush1.xpose.msra.mxu0 0.0
      %915 = vmatprep.subr.mxu0 0.0
      %916 = vmatpush1.xpose.msra.mxu0 0.0
      %917 = vmatprep.subr.mxu0 0.0
      %918 = vmatpush1.xpose.msra.mxu0 0.0
      %919 = vmatprep.subr.mxu0 0.0
      %920 = vmatpush1.xpose.msra.mxu0 0.0
      %921 = vmatprep.subr.mxu0 0.0
      %922 = vmatpush1.xpose.msra.mxu0 0.0
      %923 = vmatprep.subr.mxu0 0.0
      %924 = vmatpush1.xpose.msra.mxu0 0.0
      %925 = vmatprep.subr.mxu0 0.0
      %926 = vmatpush1.xpose.msra.mxu0 0.0
      %927 = vmatprep.subr.mxu0 0.0
      %928 = vmatpush1.xpose.msra.mxu0 0.0
      %929 = vmatprep.subr.mxu0 0.0
      %930 = vmatpush1.xpose.msra.mxu0 0.0
      %931 = vmatprep.mubr.f32.mxu0 0.0
      %932 = vmatmul.mubr.f32.gmra.mrb[0].mxu0 %v863
      %v933 = vpop.f32.mrb[0].mxu0
      %v934 = vadd.f32 0.0, %v933
      %v935 = vpop.f32.mrb[0].mxu0
      %936 = vdwg.mxu0
      %v937 = vsel %vm525, %v934, -inf
      %938 = vmax.xlane.f32.xlu0 %v937
      %v939 = vpop.xlane.xlu0 %938
      %v940 = vsub.f32 %v934, %v939
      %v941 = vmul.f32 %v940, 1.442695
      %v942 = vpow.pop %v941
      %v943 = vsel %vm525, %v942, 0.0
      %944 = vadd.xlane.f32.xlu0 %v943
      %v945 = vpop.xlane.xlu0 %944
      %v946 = vrcp.pop %v945
      %v947 = vmul.f32 %v942, %v946
      %948 = vrot.lane.b32.xlu0 %v519, 48
      %v949 = vpop.permute.xlu0 %948
      %v952 = vsel %vm525, %v947, 0
      %954 = vmatprep.subr.mxu0 0.0
      %955 = vmatpush1.msra.mxu0 %v949
      %956 = vmatprep.subr.mxu0 0.0
      %957 = vmatpush1.msra.mxu0 0.0
      %958 = vmatprep.subr.mxu0 0.0
      %959 = vmatpush1.msra.mxu0 0.0
      %960 = vmatprep.subr.mxu0 0.0
      %961 = vmatpush1.msra.mxu0 0.0
      %962 = vmatprep.subr.mxu0 0.0
      %963 = vmatpush1.msra.mxu0 0.0
      %964 = vmatprep.subr.mxu0 0.0
      %965 = vmatpush1.msra.mxu0 0.0
      %966 = vmatprep.subr.mxu0 0.0
      %967 = vmatpush1.msra.mxu0 0.0
      %968 = vmatprep.subr.mxu0 0.0
      %969 = vmatpush1.msra.mxu0 0.0
      %970 = vmatprep.subr.mxu0 0.0
      %971 = vmatpush1.msra.mxu0 0.0
      %972 = vmatprep.subr.mxu0 0.0
      %973 = vmatpush1.msra.mxu0 0.0
      %974 = vmatprep.subr.mxu0 0.0
      %975 = vmatpush1.msra.mxu0 0.0
      %976 = vmatprep.subr.mxu0 0.0
      %977 = vmatpush1.msra.mxu0 0.0
      %978 = vmatprep.subr.mxu0 0.0
      %979 = vmatpush1.msra.mxu0 0.0
      %980 = vmatprep.subr.mxu0 0.0
      %981 = vmatpush1.msra.mxu0 0.0
      %982 = vmatprep.subr.mxu0 0.0
      %983 = vmatpush1.msra.mxu0 0.0
      %984 = vmatprep.subr.mxu0 0.0
      %985 = vmatpush1.msra.mxu0 0.0
      %986 = vmatprep.subr.mxu0 0.0
      %987 = vmatpush1.msra.mxu0 0.0
      %988 = vmatprep.subr.mxu0 0.0
      %989 = vmatpush1.msra.mxu0 0.0
      %990 = vmatprep.subr.mxu0 0.0
      %991 = vmatpush1.msra.mxu0 0.0
      %992 = vmatprep.subr.mxu0 0.0
      %993 = vmatpush1.msra.mxu0 0.0
      %994 = vmatprep.subr.mxu0 0.0
      %995 = vmatpush1.msra.mxu0 0.0
      %996 = vmatprep.subr.mxu0 0.0
      %997 = vmatpush1.msra.mxu0 0.0
      %998 = vmatprep.subr.mxu0 0.0
      %999 = vmatpush1.msra.mxu0 0.0
      %1000 = vmatprep.subr.mxu0 0.0
      %1001 = vmatpush1.msra.mxu0 0.0
      %1002 = vmatprep.subr.mxu0 0.0
      %1003 = vmatpush1.msra.mxu0 0.0
      %1004 = vmatprep.subr.mxu0 0.0
      %1005 = vmatpush1.msra.mxu0 0.0
      %1006 = vmatprep.subr.mxu0 0.0
      %1007 = vmatpush1.msra.mxu0 0.0
      %1008 = vmatprep.subr.mxu0 0.0
      %1009 = vmatpush1.msra.mxu0 0.0
      %1010 = vmatprep.subr.mxu0 0.0
      %1011 = vmatpush1.msra.mxu0 0.0
      %1012 = vmatprep.subr.mxu0 0.0
      %1013 = vmatpush1.msra.mxu0 0.0
      %1014 = vmatprep.subr.mxu0 0.0
      %1015 = vmatpush1.msra.mxu0 0.0
      %1016 = vmatprep.subr.mxu0 0.0
      %1017 = vmatpush1.msra.mxu0 0.0
      %1018 = vmatprep.mubr.f32.mxu0 0.0
      %1019 = vmatmul.mubr.f32.gmra.mrb[0].mxu0 %v952
      %v1020 = vpop.f32.mrb[0].mxu0
      %v1021 = vadd.f32 0.0, %v1020
      %v1022 = vpop.f32.mrb[0].mxu0
      %1023 = vdwg.mxu0
      %1025 = vrot.lane.b32.xlu0 %v1021, 16
      %v1026 = vpop.permute.xlu0 %1025
      %vm1028 = vcmask 195712
      %1029 = vst.msk [vmem:[#allocation2] sm:$0xff] %vm1028, %v1026
      %1030 = vrot.lane.b32.xlu0 %v519, 104
      %v1031 = vpop.permute.xlu0 %1030
      %1032 = vrot.lane.b32.xlu0 %v519, 72
      %v1033 = vpop.permute.xlu0 %1032
      %v1034 = vsel %vm525, %v1031, 0
      %v1036 = vsel %vm525, %v1033, 0
      %1038 = vmatprep.subr.mxu0 0.0
      %1039 = vmatpush1.xpose.msra.mxu0 %v1036
      %1040 = vmatprep.subr.mxu0 0.0
      %1041 = vmatpush1.xpose.msra.mxu0 0.0
      %1042 = vmatprep.subr.mxu0 0.0
      %1043 = vmatpush1.xpose.msra.mxu0 0.0
      %1044 = vmatprep.subr.mxu0 0.0
      %1045 = vmatpush1.xpose.msra.mxu0 0.0
      %1046 = vmatprep.subr.mxu0 0.0
      %1047 = vmatpush1.xpose.msra.mxu0 0.0
      %1048 = vmatprep.subr.mxu0 0.0
      %1049 = vmatpush1.xpose.msra.mxu0 0.0
      %1050 = vmatprep.subr.mxu0 0.0
      %1051 = vmatpush1.xpose.msra.mxu0 0.0
      %1052 = vmatprep.subr.mxu0 0.0
      %1053 = vmatpush1.xpose.msra.mxu0 0.0
      %1054 = vmatprep.subr.mxu0 0.0
      %1055 = vmatpush1.xpose.msra.mxu0 0.0
      %1056 = vmatprep.subr.mxu0 0.0
      %1057 = vmatpush1.xpose.msra.mxu0 0.0
      %1058 = vmatprep.subr.mxu0 0.0
      %1059 = vmatpush1.xpose.msra.mxu0 0.0
      %1060 = vmatprep.subr.mxu0 0.0
      %1061 = vmatpush1.xpose.msra.mxu0 0.0
      %1062 = vmatprep.subr.mxu0 0.0
      %1063 = vmatpush1.xpose.msra.mxu0 0.0
      %1064 = vmatprep.subr.mxu0 0.0
      %1065 = vmatpush1.xpose.msra.mxu0 0.0
      %1066 = vmatprep.subr.mxu0 0.0
      %1067 = vmatpush1.xpose.msra.mxu0 0.0
      %1068 = vmatprep.subr.mxu0 0.0
      %1069 = vmatpush1.xpose.msra.mxu0 0.0
      %1070 = vmatprep.subr.mxu0 0.0
      %1071 = vmatpush1.xpose.msra.mxu0 0.0
      %1072 = vmatprep.subr.mxu0 0.0
      %1073 = vmatpush1.xpose.msra.mxu0 0.0
      %1074 = vmatprep.subr.mxu0 0.0
      %1075 = vmatpush1.xpose.msra.mxu0 0.0
      %1076 = vmatprep.subr.mxu0 0.0
      %1077 = vmatpush1.xpose.msra.mxu0 0.0
      %1078 = vmatprep.subr.mxu0 0.0
      %1079 = vmatpush1.xpose.msra.mxu0 0.0
      %1080 = vmatprep.subr.mxu0 0.0
      %1081 = vmatpush1.xpose.msra.mxu0 0.0
      %1082 = vmatprep.subr.mxu0 0.0
      %1083 = vmatpush1.xpose.msra.mxu0 0.0
      %1084 = vmatprep.subr.mxu0 0.0
      %1085 = vmatpush1.xpose.msra.mxu0 0.0
      %1086 = vmatprep.subr.mxu0 0.0
      %1087 = vmatpush1.xpose.msra.mxu0 0.0
      %1088 = vmatprep.subr.mxu0 0.0
      %1089 = vmatpush1.xpose.msra.mxu0 0.0
      %1090 = vmatprep.subr.mxu0 0.0
      %1091 = vmatpush1.xpose.msra.mxu0 0.0
      %1092 = vmatprep.subr.mxu0 0.0
      %1093 = vmatpush1.xpose.msra.mxu0 0.0
      %1094 = vmatprep.subr.mxu0 0.0
      %1095 = vmatpush1.xpose.msra.mxu0 0.0
      %1096 = vmatprep.subr.mxu0 0.0
      %1097 = vmatpush1.xpose.msra.mxu0 0.0
      %1098 = vmatprep.subr.mxu0 0.0
      %1099 = vmatpush1.xpose.msra.mxu0 0.0
      %1100 = vmatprep.subr.mxu0 0.0
      %1101 = vmatpush1.xpose.msra.mxu0 0.0
      %1102 = vmatprep.mubr.f32.mxu0 0.0
      %1103 = vmatmul.mubr.f32.gmra.mrb[0].mxu0 %v1034
      %v1104 = vpop.f32.mrb[0].mxu0
      %v1105 = vadd.f32 0.0, %v1104
      %v1106 = vpop.f32.mrb[0].mxu0
      %1107 = vdwg.mxu0
      %v1108 = vsel %vm525, %v1105, -inf
      %1109 = vmax.xlane.f32.xlu0 %v1108
      %v1110 = vpop.xlane.xlu0 %1109
      %v1111 = vsub.f32 %v1105, %v1110
      %v1112 = vmul.f32 %v1111, 1.442695
      %v1113 = vpow.pop %v1112
      %v1114 = vsel %vm525, %v1113, 0.0
      %1115 = vadd.xlane.f32.xlu0 %v1114
      %v1116 = vpop.xlane.xlu0 %1115
      %v1117 = vrcp.pop %v1116
      %v1118 = vmul.f32 %v1113, %v1117
      %1119 = vrot.lane.b32.xlu0 %v519, 40
      %v1120 = vpop.permute.xlu0 %1119
      %v1123 = vsel %vm525, %v1118, 0
      %1125 = vmatprep.subr.mxu0 0.0
      %1126 = vmatpush1.msra.mxu0 %v1120
      %1127 = vmatprep.subr.mxu0 0.0
      %1128 = vmatpush1.msra.mxu0 0.0
      %1129 = vmatprep.subr.mxu0 0.0
      %1130 = vmatpush1.msra.mxu0 0.0
      %1131 = vmatprep.subr.mxu0 0.0
      %1132 = vmatpush1.msra.mxu0 0.0
      %1133 = vmatprep.subr.mxu0 0.0
      %1134 = vmatpush1.msra.mxu0 0.0
      %1135 = vmatprep.subr.mxu0 0.0
      %1136 = vmatpush1.msra.mxu0 0.0
      %1137 = vmatprep.subr.mxu0 0.0
      %1138 = vmatpush1.msra.mxu0 0.0
      %1139 = vmatprep.subr.mxu0 0.0
      %1140 = vmatpush1.msra.mxu0 0.0
      %1141 = vmatprep.subr.mxu0 0.0
      %1142 = vmatpush1.msra.mxu0 0.0
      %1143 = vmatprep.subr.mxu0 0.0
      %1144 = vmatpush1.msra.mxu0 0.0
      %1145 = vmatprep.subr.mxu0 0.0
      %1146 = vmatpush1.msra.mxu0 0.0
      %1147 = vmatprep.subr.mxu0 0.0
      %1148 = vmatpush1.msra.mxu0 0.0
      %1149 = vmatprep.subr.mxu0 0.0
      %1150 = vmatpush1.msra.mxu0 0.0
      %1151 = vmatprep.subr.mxu0 0.0
      %1152 = vmatpush1.msra.mxu0 0.0
      %1153 = vmatprep.subr.mxu0 0.0
      %1154 = vmatpush1.msra.mxu0 0.0
      %1155 = vmatprep.subr.mxu0 0.0
      %1156 = vmatpush1.msra.mxu0 0.0
      %1157 = vmatprep.subr.mxu0 0.0
      %1158 = vmatpush1.msra.mxu0 0.0
      %1159 = vmatprep.subr.mxu0 0.0
      %1160 = vmatpush1.msra.mxu0 0.0
      %1161 = vmatprep.subr.mxu0 0.0
      %1162 = vmatpush1.msra.mxu0 0.0
      %1163 = vmatprep.subr.mxu0 0.0
      %1164 = vmatpush1.msra.mxu0 0.0
      %1165 = vmatprep.subr.mxu0 0.0
      %1166 = vmatpush1.msra.mxu0 0.0
      %1167 = vmatprep.subr.mxu0 0.0
      %1168 = vmatpush1.msra.mxu0 0.0
      %1169 = vmatprep.subr.mxu0 0.0
      %1170 = vmatpush1.msra.mxu0 0.0
      %1171 = vmatprep.subr.mxu0 0.0
      %1172 = vmatpush1.msra.mxu0 0.0
      %1173 = vmatprep.subr.mxu0 0.0
      %1174 = vmatpush1.msra.mxu0 0.0
      %1175 = vmatprep.subr.mxu0 0.0
      %1176 = vmatpush1.msra.mxu0 0.0
      %1177 = vmatprep.subr.mxu0 0.0
      %1178 = vmatpush1.msra.mxu0 0.0
      %1179 = vmatprep.subr.mxu0 0.0
      %1180 = vmatpush1.msra.mxu0 0.0
      %1181 = vmatprep.subr.mxu0 0.0
      %1182 = vmatpush1.msra.mxu0 0.0
      %1183 = vmatprep.subr.mxu0 0.0
      %1184 = vmatpush1.msra.mxu0 0.0
      %1185 = vmatprep.subr.mxu0 0.0
      %1186 = vmatpush1.msra.mxu0 0.0
      %1187 = vmatprep.subr.mxu0 0.0
      %1188 = vmatpush1.msra.mxu0 0.0
      %1189 = vmatprep.mubr.f32.mxu0 0.0
      %1190 = vmatmul.mubr.f32.gmra.mrb[0].mxu0 %v1123
      %v1191 = vpop.f32.mrb[0].mxu0
      %v1192 = vadd.f32 0.0, %v1191
      %v1193 = vpop.f32.mrb[0].mxu0
      %1194 = vdwg.mxu0
      %1196 = vrot.lane.b32.xlu0 %v1192, 24
      %v1197 = vpop.permute.xlu0 %1196
      %vm1199 = vcmask 261312
      %1200 = vst.msk [vmem:[#allocation2] sm:$0xff] %vm1199, %v1197
      %v1201 = vld [vmem:[#allocation2] sm:$0xff]
      %v1202 = vld [vmem:[%s3] sm:$0xff]
      %v1203 = vld [vmem:[%s3 + $0x8] sm:$0xff]
      %v1204 = vld [vmem:[%s3 + $0x10] sm:$0xff]
      %v1205 = vld [vmem:[%s3 + $0x18] sm:$0xff]
      %v1206 = vld [vmem:[%s4] sm:$0x1]
      %v1208 = vlaneseq
      %v1209 = vshrl.u32 %v1208, 7
      %v1210 = vsub.s32 0, %v1209
      %v1211 = vrot.slane %v1206, %v1210
      %v1214 = vsel %vm448, %v1201, 0
      %1216 = vmatprep.subr.mxu0 0.0
      %1217 = vmatpush1.msra.mxu0 %v1202
      %1218 = vmatprep.subr.mxu0 0.0
      %1219 = vmatpush1.msra.mxu0 %v1203
      %1220 = vmatprep.subr.mxu0 0.0
      %1221 = vmatpush1.msra.mxu0 %v1204
      %1222 = vmatprep.subr.mxu0 0.0
      %1223 = vmatpush1.msra.mxu0 %v1205
      %1224 = vmatprep.subr.mxu0 0.0
      %1225 = vmatpush1.msra.mxu0 0.0
      %1226 = vmatprep.subr.mxu0 0.0
      %1227 = vmatpush1.msra.mxu0 0.0
      %1228 = vmatprep.subr.mxu0 0.0
      %1229 = vmatpush1.msra.mxu0 0.0
      %1230 = vmatprep.subr.mxu0 0.0
      %1231 = vmatpush1.msra.mxu0 0.0
      %1232 = vmatprep.subr.mxu0 0.0
      %1233 = vmatpush1.msra.mxu0 0.0
      %1234 = vmatprep.subr.mxu0 0.0
      %1235 = vmatpush1.msra.mxu0 0.0
      %1236 = vmatprep.subr.mxu0 0.0
      %1237 = vmatpush1.msra.mxu0 0.0
      %1238 = vmatprep.subr.mxu0 0.0
      %1239 = vmatpush1.msra.mxu0 0.0
      %1240 = vmatprep.subr.mxu0 0.0
      %1241 = vmatpush1.msra.mxu0 0.0
      %1242 = vmatprep.subr.mxu0 0.0
      %1243 = vmatpush1.msra.mxu0 0.0
      %1244 = vmatprep.subr.mxu0 0.0
      %1245 = vmatpush1.msra.mxu0 0.0
      %1246 = vmatprep.subr.mxu0 0.0
      %1247 = vmatpush1.msra.mxu0 0.0
      %1248 = vmatprep.subr.mxu0 0.0
      %1249 = vmatpush1.msra.mxu0 0.0
      %1250 = vmatprep.subr.mxu0 0.0
      %1251 = vmatpush1.msra.mxu0 0.0
      %1252 = vmatprep.subr.mxu0 0.0
      %1253 = vmatpush1.msra.mxu0 0.0
      %1254 = vmatprep.subr.mxu0 0.0
      %1255 = vmatpush1.msra.mxu0 0.0
      %1256 = vmatprep.subr.mxu0 0.0
      %1257 = vmatpush1.msra.mxu0 0.0
      %1258 = vmatprep.subr.mxu0 0.0
      %1259 = vmatpush1.msra.mxu0 0.0
      %1260 = vmatprep.subr.mxu0 0.0
      %1261 = vmatpush1.msra.mxu0 0.0
      %1262 = vmatprep.subr.mxu0 0.0
      %1263 = vmatpush1.msra.mxu0 0.0
      %1264 = vmatprep.subr.mxu0 0.0
      %1265 = vmatpush1.msra.mxu0 0.0
      %1266 = vmatprep.subr.mxu0 0.0
      %1267 = vmatpush1.msra.mxu0 0.0
      %1268 = vmatprep.subr.mxu0 0.0
      %1269 = vmatpush1.msra.mxu0 0.0
      %1270 = vmatprep.subr.mxu0 0.0
      %1271 = vmatpush1.msra.mxu0 0.0
      %1272 = vmatprep.subr.mxu0 0.0
      %1273 = vmatpush1.msra.mxu0 0.0
      %1274 = vmatprep.subr.mxu0 0.0
      %1275 = vmatpush1.msra.mxu0 0.0
      %1276 = vmatprep.subr.mxu0 0.0
      %1277 = vmatpush1.msra.mxu0 0.0
      %1278 = vmatprep.subr.mxu0 0.0
      %1279 = vmatpush1.msra.mxu0 0.0
      %1280 = vmatprep.mubr.f32.mxu0 0.0
      %1281 = vmatmul.mubr.f32.gmra.mrb[0].mxu0 %v1214
      %v1282 = vpop.f32.mrb[0].mxu0
      %v1283 = vadd.f32 %v1211, %v1282
      %v1284 = vpop.f32.mrb[0].mxu0
      %1285 = vdwg.mxu0
      %v1286 = vadd.f32 %v436, %v1283
      %v1287 = vld [vmem:[%s5] sm:$0x1]
      %v1288 = vld [vmem:[%s6] sm:$0x1]
      %v1289 = vsel %vm448, %v1286, 0.0
      %1290 = vadd.xlane.f32.xlu0 %v1289
      %v1291 = vpop.xlane.xlu0 %1290
      %v1292 = vrcp.pop 32.0
      %v1293 = vmul.f32 %v1291, %v1292
      %v1294 = vsub.f32 %v1286, %v1293
      %v1295 = vmul.f32 %v1294, %v1294
      %v1296 = vsel %vm448, %v1295, 0.0
      %1297 = vadd.xlane.f32.xlu0 %v1296
      %v1298 = vpop.xlane.xlu0 %1297
      %v1299 = vmul.f32 %v1298, %v1292
      %v1300 = vadd.f32 %v1299, 1e-05
      %v1301 = vrsqrt.pop %v1300
      %v1302 = vmul.f32 %v1294, %v1301
      %v1304 = vlaneseq
      %v1305 = vshrl.u32 %v1304, 7
      %v1306 = vsub.s32 0, %v1305
      %v1307 = vrot.slane %v1287, %v1306
      %v1309 = vmul.f32 %v1302, %v1307
      %v1311 = vlaneseq
      %v1312 = vshrl.u32 %v1311, 7
      %v1313 = vsub.s32 0, %v1312
      %v1314 = vrot.slane %v1288, %v1313
      %v1316 = vadd.f32 %v1309, %v1314
      %v1317 = vld [vmem:[%s7] sm:$0xff]
      %v1318 = vld [vmem:[%s7 + $0x8] sm:$0xff]
      %v1319 = vld [vmem:[%s7 + $0x10] sm:$0xff]
      %v1320 = vld [vmem:[%s7 + $0x18] sm:$0xff]
      %v1321 = vld [vmem:[%s8] sm:$0x1]
      %v1323 = vlaneseq
      %v1324 = vshrl.u32 %v1323, 7
      %v1325 = vsub.s32 0, %v1324
      %v1326 = vrot.slane %v1321, %v1325
      %v1329 = vsel %vm448, %v1316, 0
      %1331 = vmatprep.subr.mxu0 0.0
      %1332 = vmatpush1.msra.mxu0 %v1317
      %1333 = vmatprep.subr.mxu0 0.0
      %1334 = vmatpush1.msra.mxu0 %v1318
      %1335 = vmatprep.subr.mxu0 0.0
      %1336 = vmatpush1.msra.mxu0 %v1319
      %1337 = vmatprep.subr.mxu0 0.0
      %1338 = vmatpush1.msra.mxu0 %v1320
      %1339 = vmatprep.subr.mxu0 0.0
      %1340 = vmatpush1.msra.mxu0 0.0
      %1341 = vmatprep.subr.mxu0 0.0
      %1342 = vmatpush1.msra.mxu0 0.0
      %1343 = vmatprep.subr.mxu0 0.0
      %1344 = vmatpush1.msra.mxu0 0.0
      %1345 = vmatprep.subr.mxu0 0.0
      %1346 = vmatpush1.msra.mxu0 0.0
      %1347 = vmatprep.subr.mxu0 0.0
      %1348 = vmatpush1.msra.mxu0 0.0
      %1349 = vmatprep.subr.mxu0 0.0
      %1350 = vmatpush1.msra.mxu0 0.0
      %1351 = vmatprep.subr.mxu0 0.0
      %1352 = vmatpush1.msra.mxu0 0.0
      %1353 = vmatprep.subr.mxu0 0.0
      %1354 = vmatpush1.msra.mxu0 0.0
      %1355 = vmatprep.subr.mxu0 0.0
      %1356 = vmatpush1.msra.mxu0 0.0
      %1357 = vmatprep.subr.mxu0 0.0
      %1358 = vmatpush1.msra.mxu0 0.0
      %1359 = vmatprep.subr.mxu0 0.0
      %1360 = vmatpush1.msra.mxu0 0.0
      %1361 = vmatprep.subr.mxu0 0.0
      %1362 = vmatpush1.msra.mxu0 0.0
      %1363 = vmatprep.subr.mxu0 0.0
      %1364 = vmatpush1.msra.mxu0 0.0
      %1365 = vmatprep.subr.mxu0 0.0
      %1366 = vmatpush1.msra.mxu0 0.0
      %1367 = vmatprep.subr.mxu0 0.0
      %1368 = vmatpush1.msra.mxu0 0.0
      %1369 = vmatprep.subr.mxu0 0.0
      %1370 = vmatpush1.msra.mxu0 0.0
      %1371 = vmatprep.subr.mxu0 0.0
      %1372 = vmatpush1.msra.mxu0 0.0
      %1373 = vmatprep.subr.mxu0 0.0
      %1374 = vmatpush1.msra.mxu0 0.0
      %1375 = vmatprep.subr.mxu0 0.0
      %1376 = vmatpush1.msra.mxu0 0.0
      %1377 = vmatprep.subr.mxu0 0.0
      %1378 = vmatpush1.msra.mxu0 0.0
      %1379 = vmatprep.subr.mxu0 0.0
      %1380 = vmatpush1.msra.mxu0 0.0
      %1381 = vmatprep.subr.mxu0 0.0
      %1382 = vmatpush1.msra.mxu0 0.0
      %1383 = vmatprep.subr.mxu0 0.0
      %1384 = vmatpush1.msra.mxu0 0.0
      %1385 = vmatprep.subr.mxu0 0.0
      %1386 = vmatpush1.msra.mxu0 0.0
      %1387 = vmatprep.subr.mxu0 0.0
      %1388 = vmatpush1.msra.mxu0 0.0
      %1389 = vmatprep.subr.mxu0 0.0
      %1390 = vmatpush1.msra.mxu0 0.0
      %1391 = vmatprep.subr.mxu0 0.0
      %1392 = vmatpush1.msra.mxu0 0.0
      %1393 = vmatprep.subr.mxu0 0.0
      %1394 = vmatpush1.msra.mxu0 0.0
      %1395 = vmatprep.mubr.f32.mxu0 0.0
      %1396 = vmatmul.mubr.f32.gmra.mrb[0].mxu0 %v1329
      %v1397 = vpop.f32.mrb[0].mxu0
      %v1398 = vadd.f32 %v1326, %v1397
      %v1399 = vpop.f32.mrb[0].mxu0
      %1400 = vdwg.mxu0
      %v1401 = vmax.f32 %v1398, 0.0
      %v1402 = vld [vmem:[%s9] sm:$0xff]
      %v1403 = vld [vmem:[%s9 + $0x8] sm:$0xff]
      %v1404 = vld [vmem:[%s9 + $0x10] sm:$0xff]
      %v1405 = vld [vmem:[%s9 + $0x18] sm:$0xff]
      %v1406 = vld [vmem:[%s9 + $0x20] sm:$0xff]
      %v1407 = vld [vmem:[%s9 + $0x28] sm:$0xff]
      %v1408 = vld [vmem:[%s9 + $0x30] sm:$0xff]
      %v1409 = vld [vmem:[%s9 + $0x38] sm:$0xff]
      %v1410 = vld [vmem:[%s10] sm:$0x1]
      %v1412 = vlaneseq
      %v1413 = vshrl.u32 %v1412, 7
      %v1414 = vsub.s32 0, %v1413
      %v1415 = vrot.slane %v1410, %v1414
      %vm1417 = vcmask 523264
      %v1419 = vsel %vm1417, %v1401, 0
      %1421 = vmatprep.subr.mxu0 0.0
      %1422 = vmatpush1.msra.mxu0 %v1402
      %1423 = vmatprep.subr.mxu0 0.0
      %1424 = vmatpush1.msra.mxu0 %v1403
      %1425 = vmatprep.subr.mxu0 0.0
      %1426 = vmatpush1.msra.mxu0 %v1404
      %1427 = vmatprep.subr.mxu0 0.0
      %1428 = vmatpush1.msra.mxu0 %v1405
      %1429 = vmatprep.subr.mxu0 0.0
      %1430 = vmatpush1.msra.mxu0 %v1406
      %1431 = vmatprep.subr.mxu0 0.0
      %1432 = vmatpush1.msra.mxu0 %v1407
      %1433 = vmatprep.subr.mxu0 0.0
      %1434 = vmatpush1.msra.mxu0 %v1408
      %1435 = vmatprep.subr.mxu0 0.0
      %1436 = vmatpush1.msra.mxu0 %v1409
      %1437 = vmatprep.subr.mxu0 0.0
      %1438 = vmatpush1.msra.mxu0 0.0
      %1439 = vmatprep.subr.mxu0 0.0
      %1440 = vmatpush1.msra.mxu0 0.0
      %1441 = vmatprep.subr.mxu0 0.0
      %1442 = vmatpush1.msra.mxu0 0.0
      %1443 = vmatprep.subr.mxu0 0.0
      %1444 = vmatpush1.msra.mxu0 0.0
      %1445 = vmatprep.subr.mxu0 0.0
      %1446 = vmatpush1.msra.mxu0 0.0
      %1447 = vmatprep.subr.mxu0 0.0
      %1448 = vmatpush1.msra.mxu0 0.0
      %1449 = vmatprep.subr.mxu0 0.0
      %1450 = vmatpush1.msra.mxu0 0.0
      %1451 = vmatprep.subr.mxu0 0.0
      %1452 = vmatpush1.msra.mxu0 0.0
      %1453 = vmatprep.subr.mxu0 0.0
      %1454 = vmatpush1.msra.mxu0 0.0
      %1455 = vmatprep.subr.mxu0 0.0
      %1456 = vmatpush1.msra.mxu0 0.0
      %1457 = vmatprep.subr.mxu0 0.0
      %1458 = vmatpush1.msra.mxu0 0.0
      %1459 = vmatprep.subr.mxu0 0.0
      %1460 = vmatpush1.msra.mxu0 0.0
      %1461 = vmatprep.subr.mxu0 0.0
      %1462 = vmatpush1.msra.mxu0 0.0
      %1463 = vmatprep.subr.mxu0 0.0
      %1464 = vmatpush1.msra.mxu0 0.0
      %1465 = vmatprep.subr.mxu0 0.0
      %1466 = vmatpush1.msra.mxu0 0.0
      %1467 = vmatprep.subr.mxu0 0.0
      %1468 = vmatpush1.msra.mxu0 0.0
      %1469 = vmatprep.subr.mxu0 0.0
      %1470 = vmatpush1.msra.mxu0 0.0
      %1471 = vmatprep.subr.mxu0 0.0
      %1472 = vmatpush1.msra.mxu0 0.0
      %1473 = vmatprep.subr.mxu0 0.0
      %1474 = vmatpush1.msra.mxu0 0.0
      %1475 = vmatprep.subr.mxu0 0.0
      %1476 = vmatpush1.msra.mxu0 0.0
      %1477 = vmatprep.subr.mxu0 0.0
      %1478 = vmatpush1.msra.mxu0 0.0
      %1479 = vmatprep.subr.mxu0 0.0
      %1480 = vmatpush1.msra.mxu0 0.0
      %1481 = vmatprep.subr.mxu0 0.0
      %1482 = vmatpush1.msra.mxu0 0.0
      %1483 = vmatprep.subr.mxu0 0.0
      %1484 = vmatpush1.msra.mxu0 0.0
      %1485 = vmatprep.mubr.f32.mxu0 0.0
      %1486 = vmatmul.mubr.f32.gmra.mrb[0].mxu0 %v1419
      %v1487 = vpop.f32.mrb[0].mxu0
      %v1488 = vadd.f32 %v1415, %v1487
      %v1489 = vpop.f32.mrb[0].mxu0
      %1490 = vdwg.mxu0
      %v1491 = vadd.f32 %v1316, %v1488
      %v1492 = vld [vmem:[%s11] sm:$0x1]
      %v1493 = vld [vmem:[%s12] sm:$0x1]
      %v1494 = vsel %vm448, %v1491, 0.0
      %1495 = vadd.xlane.f32.xlu0 %v1494
      %v1496 = vpop.xlane.xlu0 %1495
      %v1497 = vmul.f32 %v1496, %v1292
      %v1498 = vsub.f32 %v1491, %v1497
      %v1499 = vmul.f32 %v1498, %v1498
      %v1500 = vsel %vm448, %v1499, 0.0
      %1501 = vadd.xlane.f32.xlu0 %v1500
      %v1502 = vpop.xlane.xlu0 %1501
      %v1503 = vmul.f32 %v1502, %v1292
      %v1504 = vadd.f32 %v1503, 1e-05
      %v1505 = vrsqrt.pop %v1504
      %v1506 = vmul.f32 %v1498, %v1505
      %v1508 = vlaneseq
      %v1509 = vshrl.u32 %v1508, 7
      %v1510 = vsub.s32 0, %v1509
      %v1511 = vrot.slane %v1492, %v1510
      %v1513 = vmul.f32 %v1506, %v1511
      %v1515 = vlaneseq
      %v1516 = vshrl.u32 %v1515, 7
      %v1517 = vsub.s32 0, %v1516
      %v1518 = vrot.slane %v1493, %v1517
      %v1520 = vadd.f32 %v1513, %v1518
      %1521 = vst.msk [vmem:[%s435] sm:$0xff] %vm448, %v1520
      %p1522 = scmp.lt.s32.totalorder %s24, 1
      %s1523 = scalar_select %p1522, %s24, 1
      %s1524 = smul.addr %s1523, 8
      %s1525 = scalar_lea.vmem %s13, %s1524
      // Predicated region
      $region73: #{forward.4} parent=71 // pred_check
        %p1526 = pneg %p320
      $region74: #{forward.4} parent=71 // pred_check_branch
        %1528 = sbr.rel (%p1526) target = $region76
      $region75: #{forward.4} parent=71 // pred_region
        _
      $region76: #{forward.4} parent=71 // pred_fallthru
        _
    $region72: #{forward.4} parent=5 // pred_fallthru
      _
    %p1529 = scmp.le.s32.totalorder 2, %s19
    // Predicated region
    $region77: #{forward.4} parent=5 // pred_check
      %p1530 = pneg %p1529
    $region78: #{forward.4} parent=5 // pred_check_branch
      %1532 = sbr.rel (%p1530) target = $region80
    $region79: #{forward.4} parent=5 // pred_region
      %s1533 = ssub.s32 %s19, 2
      // Predicated region
      $region81: #{forward.4} parent=79 // pred_check
        %p1534 = pneg %p326
      $region82: #{forward.4} parent=79 // pred_check_branch
        %1536 = sbr.rel (%p1534) target = $region84
      $region83: #{forward.4} parent=79 // pred_region
        %p1537 = scmp.lt.s32.totalorder %s25, 1
        %s1538 = scalar_select %p1537, %s25, 1
        %s1539 = smul.addr %s1538, 8
        %s1540 = scalar_lea.vmem %s13, %s1539
      $region84: #{forward.4} parent=79 // pred_fallthru
        _
    $region80: #{forward.4} parent=5 // pred_fallthru
      _
  $region6: #{forward.4} parent=0 // loop_footer
    %s23 = sadd.s32 1, %s19
  $region7: #{forward.4} parent=0 // loop_footer_branch
    %18 = sbr.rel target = $region3
  $region8: #{forward.4} parent=0 // loop_exit
    _

// kernel: forward.3
$region0: #{forward.3}
  #allocation0 [shape = 'u32[]', space=smem, size = 0x4, offset = 0x4, fixed_abs, tag = 'smem constant byte address 0x4 - core index']
  #allocation1 [shape = 'u32[144,128]{1,0:T(1,128)}', space=vmem, size = 0x12000, scoped, tag = 'internal scratch']
  #allocation2 [shape = 'f32[8,32]{1,0:T(8,128)}', space=vmem, size = 0x1000, scoped, tag = 'scratch operand']
  %s0 = inlined_call_operand.vmem [shape: f32[2,8,32], index: 0, kind: input, shape index: {}]
  %s1 = inlined_call_operand.vmem [shape: f32[8,32], index: 1, kind: input, shape index: {}]
  %s2 = inlined_call_operand.vmem [shape: f32[32,96], index: 2, kind: input, shape index: {}]
  %s3 = inlined_call_operand.vmem [shape: f32[1,96], index: 3, kind: input, shape index: {}]
  %s4 = inlined_call_operand.vmem [shape: f32[32,32], index: 4, kind: input, shape index: {}]
  %s5 = inlined_call_operand.vmem [shape: f32[1,32], index: 5, kind: input, shape index: {}]
  %s6 = inlined_call_operand.vmem [shape: f32[1,32], index: 6, kind: input, shape index: {}]
  %s7 = inlined_call_operand.vmem [shape: f32[1,32], index: 7, kind: input, shape index: {}]
  %s8 = inlined_call_operand.vmem [shape: f32[32,64], index: 8, kind: input, shape index: {}]
  %s9 = inlined_call_operand.vmem [shape: f32[1,64], index: 9, kind: input, shape index: {}]
  %s10 = inlined_call_operand.vmem [shape: f32[64,32], index: 10, kind: input, shape index: {}]
  %s11 = inlined_call_operand.vmem [shape: f32[1,32], index: 11, kind: input, shape index: {}]
  %s12 = inlined_call_operand.vmem [shape: f32[1,32], index: 12, kind: input, shape index: {}]
  %s13 = inlined_call_operand.vmem [shape: f32[1,32], index: 13, kind: input, shape index: {}]
  %s14 = inlined_call_operand.vmem [shape: f32[2,8,32], index: 14, kind: output, shape index: {}]
  %s15 = sld [smem:[#allocation0]]
  $region89: #{forward.3} parent=0
    _
  %s17 = ssub.s32 1, %s15
  %s18 = scalar_select 0, %s17, %s15
  loop: start=0, step=1, limit=4
  $region2: #{forward.3} parent=0 // loop_pre_header
    _
  $region3: #{forward.3} parent=0 // loop_header
    %s20 = sphi 0, %s24
    %p21 = scmp.ge.s32.totalorder %s20, 4
    %s30 = sphi 0, %s32
    %s33 = sphi 0, %s30
    %s34 = sphi 0, %s33
    %s50 = sphi 0, %s34
    %s54 = sphi 0, %s54
    %s56 = sphi 0, %s54
    %s57 = sphi 0, %s56
    %s71 = sphi 0, %s57
    %s75 = sphi 0, %s75
    %s77 = sphi 0, %s75
    %s78 = sphi 0, %s77
    %s92 = sphi 0, %s78
    %s96 = sphi 0, %s96
    %s98 = sphi 0, %s96
    %s99 = sphi 0, %s98
    %s113 = sphi 0, %s99
    %s117 = sphi 0, %s117
    %s119 = sphi 0, %s117
    %s120 = sphi 0, %s119
    %s134 = sphi 0, %s120
    %s138 = sphi 0, %s138
    %s140 = sphi 0, %s138
    %s141 = sphi 0, %s140
    %s155 = sphi 0, %s141
    %s159 = sphi 0, %s159
    %s161 = sphi 0, %s159
    %s162 = sphi 0, %s161
    %s176 = sphi 0, %s162
    %s180 = sphi 0, %s180
    %s182 = sphi 0, %s180
    %s183 = sphi 0, %s182
    %s197 = sphi 0, %s183
    %s201 = sphi 0, %s201
    %s203 = sphi 0, %s201
    %s204 = sphi 0, %s203
    %s218 = sphi 0, %s204
    %s222 = sphi 0, %s222
    %s224 = sphi 0, %s222
    %s225 = sphi 0, %s224
    %s239 = sphi 0, %s225
    %s243 = sphi 0, %s243
    %s245 = sphi 0, %s243
    %s246 = sphi 0, %s245
    %s260 = sphi 0, %s246
    %s264 = sphi 0, %s264
    %s266 = sphi 0, %s264
    %s267 = sphi 0, %s266
    %s281 = sphi 0, %s267
    %s285 = sphi 0, %s285
    %s287 = sphi 0, %s285
    %s288 = sphi 0, %s287
    %s302 = sphi 0, %s288
    %s306 = sphi 0, %s306
    %s308 = sphi 0, %s306
    %s309 = sphi 0, %s308
    %s323 = sphi 0, %s309
    %s329 = sphi 0, %s331
    %s332 = sphi 0, %s329
    %s333 = sphi 0, %s332
    %s349 = sphi 0, %s333
  $region4: #{forward.3} parent=0 // loop_header_branch
    %23 = sbr.rel (%p21) target = $region8
  $region5: #{forward.3} parent=0 // loop_body
    %s25 = ssub.s32 %s20, 1
    %s26 = ssub.s32 %s20, 2
    %s27 = sadd.s32 %s20, 1
    %s28 = ssub.s32 %s20, %s27
    %p29 = scmp.eq.s32.totalorder %s28, 0
    %s31 = sadd.s32 %s30, 1
    %s32 = scalar_select %p29, %s30, %s31
    %p35 = pneg %p29
    %p36 = scmp.eq.s32.totalorder %s20, 1
    %p37 = por %p35, %p36
    %p38 = scmp.ne.s32.totalorder %s30, %s33
    %p39 = scmp.eq.s32.totalorder %s20, 0
    %p40 = por %p38, %p39
    %p41 = scmp.ne.s32.totalorder %s30, %s33
    %p42 = scmp.eq.s32.totalorder %s25, 1
    %p43 = por %p41, %p42
    %p44 = scmp.ne.s32.totalorder %s33, %s34
    %p45 = scmp.eq.s32.totalorder %s25, 0
    %p46 = por %p44, %p45
    %p47 = scmp.ne.s32.totalorder %s33, %s34
    %p48 = scmp.eq.s32.totalorder %s26, 1
    %p49 = por %p47, %p48
    %p51 = scmp.ne.s32.totalorder %s34, %s50
    %p52 = scmp.eq.s32.totalorder %s26, 0
    %p53 = por %p51, %p52
    %s55 = sadd.s32 %s54, 1
    %p58 = scmp.eq.s32.totalorder %s20, 1
    %p59 = scmp.ne.s32.totalorder %s54, %s56
    %p60 = scmp.eq.s32.totalorder %s20, 0
    %p61 = por %p59, %p60
    %p62 = scmp.ne.s32.totalorder %s54, %s56
    %p63 = scmp.eq.s32.totalorder %s25, 1
    %p64 = por %p62, %p63
    %p65 = scmp.ne.s32.totalorder %s56, %s57
    %p66 = scmp.eq.s32.totalorder %s25, 0
    %p67 = por %p65, %p66
    %p68 = scmp.ne.s32.totalorder %s56, %s57
    %p69 = scmp.eq.s32.totalorder %s26, 1
    %p70 = por %p68, %p69
    %p72 = scmp.ne.s32.totalorder %s57, %s71
    %p73 = scmp.eq.s32.totalorder %s26, 0
    %p74 = por %p72, %p73
    %s76 = sadd.s32 %s75, 1
    %p79 = scmp.eq.s32.totalorder %s20, 1
    %p80 = scmp.ne.s32.totalorder %s75, %s77
    %p81 = scmp.eq.s32.totalorder %s20, 0
    %p82 = por %p80, %p81
    %p83 = scmp.ne.s32.totalorder %s75, %s77
    %p84 = scmp.eq.s32.totalorder %s25, 1
    %p85 = por %p83, %p84
    %p86 = scmp.ne.s32.totalorder %s77, %s78
    %p87 = scmp.eq.s32.totalorder %s25, 0
    %p88 = por %p86, %p87
    %p89 = scmp.ne.s32.totalorder %s77, %s78
    %p90 = scmp.eq.s32.totalorder %s26, 1
    %p91 = por %p89, %p90
    %p93 = scmp.ne.s32.totalorder %s78, %s92
    %p94 = scmp.eq.s32.totalorder %s26, 0
    %p95 = por %p93, %p94
    %s97 = sadd.s32 %s96, 1
    %p100 = scmp.eq.s32.totalorder %s20, 1
    %p101 = scmp.ne.s32.totalorder %s96, %s98
    %p102 = scmp.eq.s32.totalorder %s20, 0
    %p103 = por %p101, %p102
    %p104 = scmp.ne.s32.totalorder %s96, %s98
    %p105 = scmp.eq.s32.totalorder %s25, 1
    %p106 = por %p104, %p105
    %p107 = scmp.ne.s32.totalorder %s98, %s99
    %p108 = scmp.eq.s32.totalorder %s25, 0
    %p109 = por %p107, %p108
    %p110 = scmp.ne.s32.totalorder %s98, %s99
    %p111 = scmp.eq.s32.totalorder %s26, 1
    %p112 = por %p110, %p111
    %p114 = scmp.ne.s32.totalorder %s99, %s113
    %p115 = scmp.eq.s32.totalorder %s26, 0
    %p116 = por %p114, %p115
    %s118 = sadd.s32 %s117, 1
    %p121 = scmp.eq.s32.totalorder %s20, 1
    %p122 = scmp.ne.s32.totalorder %s117, %s119
    %p123 = scmp.eq.s32.totalorder %s20, 0
    %p124 = por %p122, %p123
    %p125 = scmp.ne.s32.totalorder %s117, %s119
    %p126 = scmp.eq.s32.totalorder %s25, 1
    %p127 = por %p125, %p126
    %p128 = scmp.ne.s32.totalorder %s119, %s120
    %p129 = scmp.eq.s32.totalorder %s25, 0
    %p130 = por %p128, %p129
    %p131 = scmp.ne.s32.totalorder %s119, %s120
    %p132 = scmp.eq.s32.totalorder %s26, 1
    %p133 = por %p131, %p132
    %p135 = scmp.ne.s32.totalorder %s120, %s134
    %p136 = scmp.eq.s32.totalorder %s26, 0
    %p137 = por %p135, %p136
    %s139 = sadd.s32 %s138, 1
    %p142 = scmp.eq.s32.totalorder %s20, 1
    %p143 = scmp.ne.s32.totalorder %s138, %s140
    %p144 = scmp.eq.s32.totalorder %s20, 0
    %p145 = por %p143, %p144
    %p146 = scmp.ne.s32.totalorder %s138, %s140
    %p147 = scmp.eq.s32.totalorder %s25, 1
    %p148 = por %p146, %p147
    %p149 = scmp.ne.s32.totalorder %s140, %s141
    %p150 = scmp.eq.s32.totalorder %s25, 0
    %p151 = por %p149, %p150
    %p152 = scmp.ne.s32.totalorder %s140, %s141
    %p153 = scmp.eq.s32.totalorder %s26, 1
    %p154 = por %p152, %p153
    %p156 = scmp.ne.s32.totalorder %s141, %s155
    %p157 = scmp.eq.s32.totalorder %s26, 0
    %p158 = por %p156, %p157
    %s160 = sadd.s32 %s159, 1
    %p163 = scmp.eq.s32.totalorder %s20, 1
    %p164 = scmp.ne.s32.totalorder %s159, %s161
    %p165 = scmp.eq.s32.totalorder %s20, 0
    %p166 = por %p164, %p165
    %p167 = scmp.ne.s32.totalorder %s159, %s161
    %p168 = scmp.eq.s32.totalorder %s25, 1
    %p169 = por %p167, %p168
    %p170 = scmp.ne.s32.totalorder %s161, %s162
    %p171 = scmp.eq.s32.totalorder %s25, 0
    %p172 = por %p170, %p171
    %p173 = scmp.ne.s32.totalorder %s161, %s162
    %p174 = scmp.eq.s32.totalorder %s26, 1
    %p175 = por %p173, %p174
    %p177 = scmp.ne.s32.totalorder %s162, %s176
    %p178 = scmp.eq.s32.totalorder %s26, 0
    %p179 = por %p177, %p178
    %s181 = sadd.s32 %s180, 1
    %p184 = scmp.eq.s32.totalorder %s20, 1
    %p185 = scmp.ne.s32.totalorder %s180, %s182
    %p186 = scmp.eq.s32.totalorder %s20, 0
    %p187 = por %p185, %p186
    %p188 = scmp.ne.s32.totalorder %s180, %s182
    %p189 = scmp.eq.s32.totalorder %s25, 1
    %p190 = por %p188, %p189
    %p191 = scmp.ne.s32.totalorder %s182, %s183
    %p192 = scmp.eq.s32.totalorder %s25, 0
    %p193 = por %p191, %p192
    %p194 = scmp.ne.s32.totalorder %s182, %s183
    %p195 = scmp.eq.s32.totalorder %s26, 1
    %p196 = por %p194, %p195
    %p198 = scmp.ne.s32.totalorder %s183, %s197
    %p199 = scmp.eq.s32.totalorder %s26, 0
    %p200 = por %p198, %p199
    %s202 = sadd.s32 %s201, 1
    %p205 = scmp.eq.s32.totalorder %s20, 1
    %p206 = scmp.ne.s32.totalorder %s201, %s203
    %p207 = scmp.eq.s32.totalorder %s20, 0
    %p208 = por %p206, %p207
    %p209 = scmp.ne.s32.totalorder %s201, %s203
    %p210 = scmp.eq.s32.totalorder %s25, 1
    %p211 = por %p209, %p210
    %p212 = scmp.ne.s32.totalorder %s203, %s204
    %p213 = scmp.eq.s32.totalorder %s25, 0
    %p214 = por %p212, %p213
    %p215 = scmp.ne.s32.totalorder %s203, %s204
    %p216 = scmp.eq.s32.totalorder %s26, 1
    %p217 = por %p215, %p216
    %p219 = scmp.ne.s32.totalorder %s204, %s218
    %p220 = scmp.eq.s32.totalorder %s26, 0
    %p221 = por %p219, %p220
    %s223 = sadd.s32 %s222, 1
    %p226 = scmp.eq.s32.totalorder %s20, 1
    %p227 = scmp.ne.s32.totalorder %s222, %s224
    %p228 = scmp.eq.s32.totalorder %s20, 0
    %p229 = por %p227, %p228
    %p230 = scmp.ne.s32.totalorder %s222, %s224
    %p231 = scmp.eq.s32.totalorder %s25, 1
    %p232 = por %p230, %p231
    %p233 = scmp.ne.s32.totalorder %s224, %s225
    %p234 = scmp.eq.s32.totalorder %s25, 0
    %p235 = por %p233, %p234
    %p236 = scmp.ne.s32.totalorder %s224, %s225
    %p237 = scmp.eq.s32.totalorder %s26, 1
    %p238 = por %p236, %p237
    %p240 = scmp.ne.s32.totalorder %s225, %s239
    %p241 = scmp.eq.s32.totalorder %s26, 0
    %p242 = por %p240, %p241
    %s244 = sadd.s32 %s243, 1
    %p247 = scmp.eq.s32.totalorder %s20, 1
    %p248 = scmp.ne.s32.totalorder %s243, %s245
    %p249 = scmp.eq.s32.totalorder %s20, 0
    %p250 = por %p248, %p249
    %p251 = scmp.ne.s32.totalorder %s243, %s245
    %p252 = scmp.eq.s32.totalorder %s25, 1
    %p253 = por %p251, %p252
    %p254 = scmp.ne.s32.totalorder %s245, %s246
    %p255 = scmp.eq.s32.totalorder %s25, 0
    %p256 = por %p254, %p255
    %p257 = scmp.ne.s32.totalorder %s245, %s246
    %p258 = scmp.eq.s32.totalorder %s26, 1
    %p259 = por %p257, %p258
    %p261 = scmp.ne.s32.totalorder %s246, %s260
    %p262 = scmp.eq.s32.totalorder %s26, 0
    %p263 = por %p261, %p262
    %s265 = sadd.s32 %s264, 1
    %p268 = scmp.eq.s32.totalorder %s20, 1
    %p269 = scmp.ne.s32.totalorder %s264, %s266
    %p270 = scmp.eq.s32.totalorder %s20, 0
    %p271 = por %p269, %p270
    %p272 = scmp.ne.s32.totalorder %s264, %s266
    %p273 = scmp.eq.s32.totalorder %s25, 1
    %p274 = por %p272, %p273
    %p275 = scmp.ne.s32.totalorder %s266, %s267
    %p276 = scmp.eq.s32.totalorder %s25, 0
    %p277 = por %p275, %p276
    %p278 = scmp.ne.s32.totalorder %s266, %s267
    %p279 = scmp.eq.s32.totalorder %s26, 1
    %p280 = por %p278, %p279
    %p282 = scmp.ne.s32.totalorder %s267, %s281
    %p283 = scmp.eq.s32.totalorder %s26, 0
    %p284 = por %p282, %p283
    %s286 = sadd.s32 %s285, 1
    %p289 = scmp.eq.s32.totalorder %s20, 1
    %p290 = scmp.ne.s32.totalorder %s285, %s287
    %p291 = scmp.eq.s32.totalorder %s20, 0
    %p292 = por %p290, %p291
    %p293 = scmp.ne.s32.totalorder %s285, %s287
    %p294 = scmp.eq.s32.totalorder %s25, 1
    %p295 = por %p293, %p294
    %p296 = scmp.ne.s32.totalorder %s287, %s288
    %p297 = scmp.eq.s32.totalorder %s25, 0
    %p298 = por %p296, %p297
    %p299 = scmp.ne.s32.totalorder %s287, %s288
    %p300 = scmp.eq.s32.totalorder %s26, 1
    %p301 = por %p299, %p300
    %p303 = scmp.ne.s32.totalorder %s288, %s302
    %p304 = scmp.eq.s32.totalorder %s26, 0
    %p305 = por %p303, %p304
    %s307 = sadd.s32 %s306, 1
    %p310 = scmp.eq.s32.totalorder %s20, 1
    %p311 = scmp.ne.s32.totalorder %s306, %s308
    %p312 = scmp.eq.s32.totalorder %s20, 0
    %p313 = por %p311, %p312
    %p314 = scmp.ne.s32.totalorder %s306, %s308
    %p315 = scmp.eq.s32.totalorder %s25, 1
    %p316 = por %p314, %p315
    %p317 = scmp.ne.s32.totalorder %s308, %s309
    %p318 = scmp.eq.s32.totalorder %s25, 0
    %p319 = por %p317, %p318
    %p320 = scmp.ne.s32.totalorder %s308, %s309
    %p321 = scmp.eq.s32.totalorder %s26, 1
    %p322 = por %p320, %p321
    %p324 = scmp.ne.s32.totalorder %s309, %s323
    %p325 = scmp.eq.s32.totalorder %s26, 0
    %p326 = por %p324, %p325
    %s327 = ssub.s32 %s20, %s27
    %p328 = scmp.eq.s32.totalorder %s327, 0
    %s330 = sadd.s32 %s329, 1
    %s331 = scalar_select %p328, %s329, %s330
    %p334 = pneg %p328
    %p335 = scmp.eq.s32.totalorder %s20, 1
    %p336 = por %p334, %p335
    %p337 = scmp.ne.s32.totalorder %s329, %s332
    %p338 = scmp.eq.s32.totalorder %s20, 0
    %p339 = por %p337, %p338
    %p340 = scmp.ne.s32.totalorder %s329, %s332
    %p341 = scmp.eq.s32.totalorder %s25, 1
    %p342 = por %p340, %p341
    %p343 = scmp.ne.s32.totalorder %s332, %s333
    %p344 = scmp.eq.s32.totalorder %s25, 0
    %p345 = por %p343, %p344
    %p346 = scmp.ne.s32.totalorder %s332, %s333
    %p347 = scmp.eq.s32.totalorder %s26, 1
    %p348 = por %p346, %p347
    %p350 = scmp.ne.s32.totalorder %s333, %s349
    %p351 = scmp.eq.s32.totalorder %s26, 0
    %p352 = por %p350, %p351
    %p353 = scmp.le.s32.totalorder 1, %s20
    %p354 = scmp.lt.s32.totalorder %s20, 3
    %p355 = pnand %p353, %p354
    %p356 = pneg %p355
    // Predicated region
    $region9: #{forward.3} parent=5 // pred_check
      _
    $region10: #{forward.3} parent=5 // pred_check_branch
      %358 = sbr.rel (%p355) target = $region12
    $region11: #{forward.3} parent=5 // pred_region
      %s359 = ssub.s32 %s20, 1
      // Predicated region
      $region13: #{forward.3} parent=11 // pred_check
        %p360 = pneg %p67
      $region14: #{forward.3} parent=11 // pred_check_branch
        %362 = sbr.rel (%p360) target = $region16
      $region15: #{forward.3} parent=11 // pred_region
        _
      $region16: #{forward.3} parent=11 // pred_fallthru
        _
      // Predicated region
      $region17: #{forward.3} parent=11 // pred_check
        %p363 = pneg %p88
      $region18: #{forward.3} parent=11 // pred_check_branch
        %365 = sbr.rel (%p363) target = $region20
      $region19: #{forward.3} parent=11 // pred_region
        _
      $region20: #{forward.3} parent=11 // pred_fallthru
        _
      // Predicated region
      $region21: #{forward.3} parent=11 // pred_check
        %p366 = pneg %p109
      $region22: #{forward.3} parent=11 // pred_check_branch
        %368 = sbr.rel (%p366) target = $region24
      $region23: #{forward.3} parent=11 // pred_region
        _
      $region24: #{forward.3} parent=11 // pred_fallthru
        _
      // Predicated region
      $region25: #{forward.3} parent=11 // pred_check
        %p369 = pneg %p130
      $region26: #{forward.3} parent=11 // pred_check_branch
        %371 = sbr.rel (%p369) target = $region28
      $region27: #{forward.3} parent=11 // pred_region
        _
      $region28: #{forward.3} parent=11 // pred_fallthru
        _
      // Predicated region
      $region29: #{forward.3} parent=11 // pred_check
        %p372 = pneg %p151
      $region30: #{forward.3} parent=11 // pred_check_branch
        %374 = sbr.rel (%p372) target = $region32
      $region31: #{forward.3} parent=11 // pred_region
        _
      $region32: #{forward.3} parent=11 // pred_fallthru
        _
      // Predicated region
      $region33: #{forward.3} parent=11 // pred_check
        %p375 = pneg %p172
      $region34: #{forward.3} parent=11 // pred_check_branch
        %377 = sbr.rel (%p375) target = $region36
      $region35: #{forward.3} parent=11 // pred_region
        _
      $region36: #{forward.3} parent=11 // pred_fallthru
        _
      // Predicated region
      $region37: #{forward.3} parent=11 // pred_check
        %p378 = pneg %p193
      $region38: #{forward.3} parent=11 // pred_check_branch
        %380 = sbr.rel (%p378) target = $region40
      $region39: #{forward.3} parent=11 // pred_region
        _
      $region40: #{forward.3} parent=11 // pred_fallthru
        _
      // Predicated region
      $region41: #{forward.3} parent=11 // pred_check
        %p381 = pneg %p214
      $region42: #{forward.3} parent=11 // pred_check_branch
        %383 = sbr.rel (%p381) target = $region44
      $region43: #{forward.3} parent=11 // pred_region
        _
      $region44: #{forward.3} parent=11 // pred_fallthru
        _
      // Predicated region
      $region45: #{forward.3} parent=11 // pred_check
        %p384 = pneg %p235
      $region46: #{forward.3} parent=11 // pred_check_branch
        %386 = sbr.rel (%p384) target = $region48
      $region47: #{forward.3} parent=11 // pred_region
        _
      $region48: #{forward.3} parent=11 // pred_fallthru
        _
      // Predicated region
      $region49: #{forward.3} parent=11 // pred_check
        %p387 = pneg %p256
      $region50: #{forward.3} parent=11 // pred_check_branch
        %389 = sbr.rel (%p387) target = $region52
      $region51: #{forward.3} parent=11 // pred_region
        _
      $region52: #{forward.3} parent=11 // pred_fallthru
        _
      // Predicated region
      $region53: #{forward.3} parent=11 // pred_check
        %p390 = pneg %p277
      $region54: #{forward.3} parent=11 // pred_check_branch
        %392 = sbr.rel (%p390) target = $region56
      $region55: #{forward.3} parent=11 // pred_region
        _
      $region56: #{forward.3} parent=11 // pred_fallthru
        _
      // Predicated region
      $region57: #{forward.3} parent=11 // pred_check
        %p393 = pneg %p298
      $region58: #{forward.3} parent=11 // pred_check_branch
        %395 = sbr.rel (%p393) target = $region60
      $region59: #{forward.3} parent=11 // pred_region
        _
      $region60: #{forward.3} parent=11 // pred_fallthru
        _
      // Predicated region
      $region61: #{forward.3} parent=11 // pred_check
        %p396 = pneg %p319
      $region62: #{forward.3} parent=11 // pred_check_branch
        %398 = sbr.rel (%p396) target = $region64
      $region63: #{forward.3} parent=11 // pred_region
        _
      $region64: #{forward.3} parent=11 // pred_fallthru
        _
    $region12: #{forward.3} parent=5 // pred_fallthru
      _
    %p399 = scmp.lt.s32.totalorder %s20, 2
    // Predicated region
    $region65: #{forward.3} parent=5 // pred_check
      %p400 = pneg %p399
    $region66: #{forward.3} parent=5 // pred_check_branch
      %402 = sbr.rel (%p400) target = $region68
    $region67: #{forward.3} parent=5 // pred_region
      // Predicated region
      $region69: #{forward.3} parent=67 // pred_check
        %p403 = pneg %p40
      $region70: #{forward.3} parent=67 // pred_check_branch
        %405 = sbr.rel (%p403) target = $region72
      $region71: #{forward.3} parent=67 // pred_region
        %p406 = scmp.lt.s32.totalorder %s20, 1
        %s407 = scalar_select %p406, %s20, 1
        %s408 = smul.addr %s407, 8
        %s409 = scalar_lea.vmem %s0, %s408
      $region72: #{forward.3} parent=67 // pred_fallthru
        _
    $region68: #{forward.3} parent=5 // pred_fallthru
      _
    %p410 = scmp.le.s32.totalorder 1, %s20
    %p411 = scmp.lt.s32.totalorder %s20, 3
    %p412 = pnand %p410, %p411
    %p413 = pneg %p412
    // Predicated region
    $region73: #{forward.3} parent=5 // pred_check
      _
    $region74: #{forward.3} parent=5 // pred_check_branch
      %415 = sbr.rel (%p412) target = $region76
    $region75: #{forward.3} parent=5 // pred_region
      %s416 = ssub.s32 %s20, 1
      %p417 = scmp.lt.s32.totalorder %s25, 1
      %s418 = scalar_select %p417, %s25, 1
      %s419 = smul.addr %s418, 8
      %s420 = scalar_lea.vmem %s0, %s419
      %p421 = pneg %p46
      %p422 = pneg %p43
      %p423 = pneg %p67
      %p424 = pneg %p64
      %p425 = pneg %p88
      %p426 = pneg %p85
      %p427 = pneg %p109
      %p428 = pneg %p106
      %p429 = pneg %p130
      %p430 = pneg %p127
      %p431 = pneg %p151
      %p432 = pneg %p148
      %p433 = pneg %p172
      %p434 = pneg %p169
      %p435 = pneg %p193
      %p436 = pneg %p190
      %p437 = pneg %p214
      %p438 = pneg %p211
      %p439 = pneg %p235
      %p440 = pneg %p232
      %p441 = pneg %p256
      %p442 = pneg %p253
      %p443 = pneg %p277
      %p444 = pneg %p274
      %p445 = pneg %p298
      %p446 = pneg %p295
      %p447 = pneg %p319
      %p448 = pneg %p316
      %p449 = pneg %p345
      %p450 = pneg %p342
      %p451 = scmp.lt.s32.totalorder %s25, 1
      %s452 = scalar_select %p451, %s25, 1
      %s453 = smul.addr %s452, 8
      %s454 = scalar_lea.vmem %s14, %s453
      %p455 = scmp.lt.s32.totalorder %s25, 1
      %s456 = scalar_select %p455, %s25, 1
      %s457 = smul.addr %s456, 8
      %s458 = scalar_lea.vmem %s0, %s457
      %p459 = scmp.lt.s32.totalorder %s25, 1
      %s460 = scalar_select %p459, %s25, 1
      %s461 = smul.addr %s460, 8
      %s462 = scalar_lea.vmem %s14, %s461
      %v463 = vld [vmem:[%s458] sm:$0xff]
      %v464 = vld [vmem:[%s1] sm:$0xff]
      %v465 = vadd.f32 %v463, %v464
      %v466 = vld [vmem:[%s2] sm:$0xff]
      %v467 = vld [vmem:[%s2 + $0x8] sm:$0xff]
      %v468 = vld [vmem:[%s2 + $0x10] sm:$0xff]
      %v469 = vld [vmem:[%s2 + $0x18] sm:$0xff]
      %v470 = vld [vmem:[%s3] sm:$0x1]
      %v472 = vlaneseq
      %v473 = vshrl.u32 %v472, 7
      %v474 = vsub.s32 0, %v473
      %v475 = vrot.slane %v470, %v474
      %vm477 = vcmask 261120
      %v479 = vsel %vm477, %v465, 0
      %481 = vmatprep.subr.mxu0 0.0
      %482 = vmatpush1.msra.mxu0 %v466
      %483 = vmatprep.subr.mxu0 0.0
      %484 = vmatpush1.msra.mxu0 %v467
      %485 = vmatprep.subr.mxu0 0.0
      %486 = vmatpush1.msra.mxu0 %v468
      %487 = vmatprep.subr.mxu0 0.0
      %488 = vmatpush1.msra.mxu0 %v469
      %489 = vmatprep.subr.mxu0 0.0
      %490 = vmatpush1.msra.mxu0 0.0
      %491 = vmatprep.subr.mxu0 0.0
      %492 = vmatpush1.msra.mxu0 0.0
      %493 = vmatprep.subr.mxu0 0.0
      %494 = vmatpush1.msra.mxu0 0.0
      %495 = vmatprep.subr.mxu0 0.0
      %496 = vmatpush1.msra.mxu0 0.0
      %497 = vmatprep.subr.mxu0 0.0
      %498 = vmatpush1.msra.mxu0 0.0
      %499 = vmatprep.subr.mxu0 0.0
      %500 = vmatpush1.msra.mxu0 0.0
      %501 = vmatprep.subr.mxu0 0.0
      %502 = vmatpush1.msra.mxu0 0.0
      %503 = vmatprep.subr.mxu0 0.0
      %504 = vmatpush1.msra.mxu0 0.0
      %505 = vmatprep.subr.mxu0 0.0
      %506 = vmatpush1.msra.mxu0 0.0
      %507 = vmatprep.subr.mxu0 0.0
      %508 = vmatpush1.msra.mxu0 0.0
      %509 = vmatprep.subr.mxu0 0.0
      %510 = vmatpush1.msra.mxu0 0.0
      %511 = vmatprep.subr.mxu0 0.0
      %512 = vmatpush1.msra.mxu0 0.0
      %513 = vmatprep.subr.mxu0 0.0
      %514 = vmatpush1.msra.mxu0 0.0
      %515 = vmatprep.subr.mxu0 0.0
      %516 = vmatpush1.msra.mxu0 0.0
      %517 = vmatprep.subr.mxu0 0.0
      %518 = vmatpush1.msra.mxu0 0.0
      %519 = vmatprep.subr.mxu0 0.0
      %520 = vmatpush1.msra.mxu0 0.0
      %521 = vmatprep.subr.mxu0 0.0
      %522 = vmatpush1.msra.mxu0 0.0
      %523 = vmatprep.subr.mxu0 0.0
      %524 = vmatpush1.msra.mxu0 0.0
      %525 = vmatprep.subr.mxu0 0.0
      %526 = vmatpush1.msra.mxu0 0.0
      %527 = vmatprep.subr.mxu0 0.0
      %528 = vmatpush1.msra.mxu0 0.0
      %529 = vmatprep.subr.mxu0 0.0
      %530 = vmatpush1.msra.mxu0 0.0
      %531 = vmatprep.subr.mxu0 0.0
      %532 = vmatpush1.msra.mxu0 0.0
      %533 = vmatprep.subr.mxu0 0.0
      %534 = vmatpush1.msra.mxu0 0.0
      %535 = vmatprep.subr.mxu0 0.0
      %536 = vmatpush1.msra.mxu0 0.0
      %537 = vmatprep.subr.mxu0 0.0
      %538 = vmatpush1.msra.mxu0 0.0
      %539 = vmatprep.subr.mxu0 0.0
      %540 = vmatpush1.msra.mxu0 0.0
      %541 = vmatprep.subr.mxu0 0.0
      %542 = vmatpush1.msra.mxu0 0.0
      %543 = vmatprep.subr.mxu0 0.0
      %544 = vmatpush1.msra.mxu0 0.0
      %545 = vmatprep.mubr.f32.mxu0 0.0
      %546 = vmatmul.mubr.f32.gmra.mrb[0].mxu0 %v479
      %v547 = vpop.f32.mrb[0].mxu0
      %v548 = vadd.f32 %v475, %v547
      %v549 = vpop.f32.mrb[0].mxu0
      %550 = vdwg.mxu0
      %552 = vrot.lane.b32.xlu0 %v548, 96
      %v553 = vpop.permute.xlu0 %552
      %vm554 = vcmask 64512
      %v555 = vsel %vm554, %v548, 0
      %v557 = vsel %vm554, %v553, 0
      %559 = vmatprep.subr.mxu0 0.0
      %560 = vmatpush1.xpose.msra.mxu0 %v557
      %561 = vmatprep.subr.mxu0 0.0
      %562 = vmatpush1.xpose.msra.mxu0 0.0
      %563 = vmatprep.subr.mxu0 0.0
      %564 = vmatpush1.xpose.msra.mxu0 0.0
      %565 = vmatprep.subr.mxu0 0.0
      %566 = vmatpush1.xpose.msra.mxu0 0.0
      %567 = vmatprep.subr.mxu0 0.0
      %568 = vmatpush1.xpose.msra.mxu0 0.0
      %569 = vmatprep.subr.mxu0 0.0
      %570 = vmatpush1.xpose.msra.mxu0 0.0
      %571 = vmatprep.subr.mxu0 0.0
      %572 = vmatpush1.xpose.msra.mxu0 0.0
      %573 = vmatprep.subr.mxu0 0.0
      %574 = vmatpush1.xpose.msra.mxu0 0.0
      %575 = vmatprep.subr.mxu0 0.0
      %576 = vmatpush1.xpose.msra.mxu0 0.0
      %577 = vmatprep.subr.mxu0 0.0
      %578 = vmatpush1.xpose.msra.mxu0 0.0
      %579 = vmatprep.subr.mxu0 0.0
      %580 = vmatpush1.xpose.msra.mxu0 0.0
      %581 = vmatprep.subr.mxu0 0.0
      %582 = vmatpush1.xpose.msra.mxu0 0.0
      %583 = vmatprep.subr.mxu0 0.0
      %584 = vmatpush1.xpose.msra.mxu0 0.0
      %585 = vmatprep.subr.mxu0 0.0
      %586 = vmatpush1.xpose.msra.mxu0 0.0
      %587 = vmatprep.subr.mxu0 0.0
      %588 = vmatpush1.xpose.msra.mxu0 0.0
      %589 = vmatprep.subr.mxu0 0.0
      %590 = vmatpush1.xpose.msra.mxu0 0.0
      %591 = vmatprep.subr.mxu0 0.0
      %592 = vmatpush1.xpose.msra.mxu0 0.0
      %593 = vmatprep.subr.mxu0 0.0
      %594 = vmatpush1.xpose.msra.mxu0 0.0
      %595 = vmatprep.subr.mxu0 0.0
      %596 = vmatpush1.xpose.msra.mxu0 0.0
      %597 = vmatprep.subr.mxu0 0.0
      %598 = vmatpush1.xpose.msra.mxu0 0.0
      %599 = vmatprep.subr.mxu0 0.0
      %600 = vmatpush1.xpose.msra.mxu0 0.0
      %601 = vmatprep.subr.mxu0 0.0
      %602 = vmatpush1.xpose.msra.mxu0 0.0
      %603 = vmatprep.subr.mxu0 0.0
      %604 = vmatpush1.xpose.msra.mxu0 0.0
      %605 = vmatprep.subr.mxu0 0.0
      %606 = vmatpush1.xpose.msra.mxu0 0.0
      %607 = vmatprep.subr.mxu0 0.0
      %608 = vmatpush1.xpose.msra.mxu0 0.0
      %609 = vmatprep.subr.mxu0 0.0
      %610 = vmatpush1.xpose.msra.mxu0 0.0
      %611 = vmatprep.subr.mxu0 0.0
      %612 = vmatpush1.xpose.msra.mxu0 0.0
      %613 = vmatprep.subr.mxu0 0.0
      %614 = vmatpush1.xpose.msra.mxu0 0.0
      %615 = vmatprep.subr.mxu0 0.0
      %616 = vmatpush1.xpose.msra.mxu0 0.0
      %617 = vmatprep.subr.mxu0 0.0
      %618 = vmatpush1.xpose.msra.mxu0 0.0
      %619 = vmatprep.subr.mxu0 0.0
      %620 = vmatpush1.xpose.msra.mxu0 0.0
      %621 = vmatprep.subr.mxu0 0.0
      %622 = vmatpush1.xpose.msra.mxu0 0.0
      %623 = vmatprep.mubr.f32.mxu0 0.0
      %624 = vmatmul.mubr.f32.gmra.mrb[0].mxu0 %v555
      %v625 = vpop.f32.mrb[0].mxu0
      %v626 = vadd.f32 0.0, %v625
      %v627 = vpop.f32.mrb[0].mxu0
      %628 = vdwg.mxu0
      %v629 = vsel %vm554, %v626, -inf
      %630 = vmax.xlane.f32.xlu0 %v629
      %v631 = vpop.xlane.xlu0 %630
      %v632 = vsub.f32 %v626, %v631
      %v633 = vmul.f32 %v632, 1.442695
      %v634 = vpow.pop %v633
      %v635 = vsel %vm554, %v634, 0.0
      %636 = vadd.xlane.f32.xlu0 %v635
      %v637 = vpop.xlane.xlu0 %636
      %v638 = vrcp.pop %v637
      %v639 = vmul.f32 %v634, %v638
      %640 = vrot.lane.b32.xlu0 %v548, 64
      %v641 = vpop.permute.xlu0 %640
      %v644 = vsel %vm554, %v639, 0
      %646 = vmatprep.subr.mxu0 0.0
      %647 = vmatpush1.msra.mxu0 %v641
      %648 = vmatprep.subr.mxu0 0.0
      %649 = vmatpush1.msra.mxu0 0.0
      %650 = vmatprep.subr.mxu0 0.0
      %651 = vmatpush1.msra.mxu0 0.0
      %652 = vmatprep.subr.mxu0 0.0
      %653 = vmatpush1.msra.mxu0 0.0
      %654 = vmatprep.subr.mxu0 0.0
      %655 = vmatpush1.msra.mxu0 0.0
      %656 = vmatprep.subr.mxu0 0.0
      %657 = vmatpush1.msra.mxu0 0.0
      %658 = vmatprep.subr.mxu0 0.0
      %659 = vmatpush1.msra.mxu0 0.0
      %660 = vmatprep.subr.mxu0 0.0
      %661 = vmatpush1.msra.mxu0 0.0
      %662 = vmatprep.subr.mxu0 0.0
      %663 = vmatpush1.msra.mxu0 0.0
      %664 = vmatprep.subr.mxu0 0.0
      %665 = vmatpush1.msra.mxu0 0.0
      %666 = vmatprep.subr.mxu0 0.0
      %667 = vmatpush1.msra.mxu0 0.0
      %668 = vmatprep.subr.mxu0 0.0
      %669 = vmatpush1.msra.mxu0 0.0
      %670 = vmatprep.subr.mxu0 0.0
      %671 = vmatpush1.msra.mxu0 0.0
      %672 = vmatprep.subr.mxu0 0.0
      %673 = vmatpush1.msra.mxu0 0.0
      %674 = vmatprep.subr.mxu0 0.0
      %675 = vmatpush1.msra.mxu0 0.0
      %676 = vmatprep.subr.mxu0 0.0
      %677 = vmatpush1.msra.mxu0 0.0
      %678 = vmatprep.subr.mxu0 0.0
      %679 = vmatpush1.msra.mxu0 0.0
      %680 = vmatprep.subr.mxu0 0.0
      %681 = vmatpush1.msra.mxu0 0.0
      %682 = vmatprep.subr.mxu0 0.0
      %683 = vmatpush1.msra.mxu0 0.0
      %684 = vmatprep.subr.mxu0 0.0
      %685 = vmatpush1.msra.mxu0 0.0
      %686 = vmatprep.subr.mxu0 0.0
      %687 = vmatpush1.msra.mxu0 0.0
      %688 = vmatprep.subr.mxu0 0.0
      %689 = vmatpush1.msra.mxu0 0.0
      %690 = vmatprep.subr.mxu0 0.0
      %691 = vmatpush1.msra.mxu0 0.0
      %692 = vmatprep.subr.mxu0 0.0
      %693 = vmatpush1.msra.mxu0 0.0
      %694 = vmatprep.subr.mxu0 0.0
      %695 = vmatpush1.msra.mxu0 0.0
      %696 = vmatprep.subr.mxu0 0.0
      %697 = vmatpush1.msra.mxu0 0.0
      %698 = vmatprep.subr.mxu0 0.0
      %699 = vmatpush1.msra.mxu0 0.0
      %700 = vmatprep.subr.mxu0 0.0
      %701 = vmatpush1.msra.mxu0 0.0
      %702 = vmatprep.subr.mxu0 0.0
      %703 = vmatpush1.msra.mxu0 0.0
      %704 = vmatprep.subr.mxu0 0.0
      %705 = vmatpush1.msra.mxu0 0.0
      %706 = vmatprep.subr.mxu0 0.0
      %707 = vmatpush1.msra.mxu0 0.0
      %708 = vmatprep.subr.mxu0 0.0
      %709 = vmatpush1.msra.mxu0 0.0
      %710 = vmatprep.mubr.f32.mxu0 0.0
      %711 = vmatmul.mubr.f32.gmra.mrb[0].mxu0 %v644
      %v712 = vpop.f32.mrb[0].mxu0
      %v713 = vadd.f32 0.0, %v712
      %v714 = vpop.f32.mrb[0].mxu0
      %715 = vdwg.mxu0
      %716 = vst.msk [vmem:[#allocation2] sm:$0xff] %vm554, %v713
      %717 = vrot.lane.b32.xlu0 %v548, 120
      %v718 = vpop.permute.xlu0 %717
      %719 = vrot.lane.b32.xlu0 %v548, 88
      %v720 = vpop.permute.xlu0 %719
      %v721 = vsel %vm554, %v718, 0
      %v723 = vsel %vm554, %v720, 0
      %725 = vmatprep.subr.mxu0 0.0
      %726 = vmatpush1.xpose.msra.mxu0 %v723
      %727 = vmatprep.subr.mxu0 0.0
      %728 = vmatpush1.xpose.msra.mxu0 0.0
      %729 = vmatprep.subr.mxu0 0.0
      %730 = vmatpush1.xpose.msra.mxu0 0.0
      %731 = vmatprep.subr.mxu0 0.0
      %732 = vmatpush1.xpose.msra.mxu0 0.0
      %733 = vmatprep.subr.mxu0 0.0
      %734 = vmatpush1.xpose.msra.mxu0 0.0
      %735 = vmatprep.subr.mxu0 0.0
      %736 = vmatpush1.xpose.msra.mxu0 0.0
      %737 = vmatprep.subr.mxu0 0.0
      %738 = vmatpush1.xpose.msra.mxu0 0.0
      %739 = vmatprep.subr.mxu0 0.0
      %740 = vmatpush1.xpose.msra.mxu0 0.0
      %741 = vmatprep.subr.mxu0 0.0
      %742 = vmatpush1.xpose.msra.mxu0 0.0
      %743 = vmatprep.subr.mxu0 0.0
      %744 = vmatpush1.xpose.msra.mxu0 0.0
      %745 = vmatprep.subr.mxu0 0.0
      %746 = vmatpush1.xpose.msra.mxu0 0.0
      %747 = vmatprep.subr.mxu0 0.0
      %748 = vmatpush1.xpose.msra.mxu0 0.0
      %749 = vmatprep.subr.mxu0 0.0
      %750 = vmatpush1.xpose.msra.mxu0 0.0
      %751 = vmatprep.subr.mxu0 0.0
      %752 = vmatpush1.xpose.msra.mxu0 0.0
      %753 = vmatprep.subr.mxu0 0.0
      %754 = vmatpush1.xpose.msra.mxu0 0.0
      %755 = vmatprep.subr.mxu0 0.0
      %756 = vmatpush1.xpose.msra.mxu0 0.0
      %757 = vmatprep.subr.mxu0 0.0
      %758 = vmatpush1.xpose.msra.mxu0 0.0
      %759 = vmatprep.subr.mxu0 0.0
      %760 = vmatpush1.xpose.msra.mxu0 0.0
      %761 = vmatprep.subr.mxu0 0.0
      %762 = vmatpush1.xpose.msra.mxu0 0.0
      %763 = vmatprep.subr.mxu0 0.0
      %764 = vmatpush1.xpose.msra.mxu0 0.0
      %765 = vmatprep.subr.mxu0 0.0
      %766 = vmatpush1.xpose.msra.mxu0 0.0
      %767 = vmatprep.subr.mxu0 0.0
      %768 = vmatpush1.xpose.msra.mxu0 0.0
      %769 = vmatprep.subr.mxu0 0.0
      %770 = vmatpush1.xpose.msra.mxu0 0.0
      %771 = vmatprep.subr.mxu0 0.0
      %772 = vmatpush1.xpose.msra.mxu0 0.0
      %773 = vmatprep.subr.mxu0 0.0
      %774 = vmatpush1.xpose.msra.mxu0 0.0
      %775 = vmatprep.subr.mxu0 0.0
      %776 = vmatpush1.xpose.msra.mxu0 0.0
      %777 = vmatprep.subr.mxu0 0.0
      %778 = vmatpush1.xpose.msra.mxu0 0.0
      %779 = vmatprep.subr.mxu0 0.0
      %780 = vmatpush1.xpose.msra.mxu0 0.0
      %781 = vmatprep.subr.mxu0 0.0
      %782 = vmatpush1.xpose.msra.mxu0 0.0
      %783 = vmatprep.subr.mxu0 0.0
      %784 = vmatpush1.xpose.msra.mxu0 0.0
      %785 = vmatprep.subr.mxu0 0.0
      %786 = vmatpush1.xpose.msra.mxu0 0.0
      %787 = vmatprep.subr.mxu0 0.0
      %788 = vmatpush1.xpose.msra.mxu0 0.0
      %789 = vmatprep.mubr.f32.mxu0 0.0
      %790 = vmatmul.mubr.f32.gmra.mrb[0].mxu0 %v721
      %v791 = vpop.f32.mrb[0].mxu0
      %v792 = vadd.f32 0.0, %v791
      %v793 = vpop.f32.mrb[0].mxu0
      %794 = vdwg.mxu0
      %v795 = vsel %vm554, %v792, -inf
      %796 = vmax.xlane.f32.xlu0 %v795
      %v797 = vpop.xlane.xlu0 %796
      %v798 = vsub.f32 %v792, %v797
      %v799 = vmul.f32 %v798, 1.442695
      %v800 = vpow.pop %v799
      %v801 = vsel %vm554, %v800, 0.0
      %802 = vadd.xlane.f32.xlu0 %v801
      %v803 = vpop.xlane.xlu0 %802
      %v804 = vrcp.pop %v803
      %v805 = vmul.f32 %v800, %v804
      %806 = vrot.lane.b32.xlu0 %v548, 56
      %v807 = vpop.permute.xlu0 %806
      %v810 = vsel %vm554, %v805, 0
      %812 = vmatprep.subr.mxu0 0.0
      %813 = vmatpush1.msra.mxu0 %v807
      %814 = vmatprep.subr.mxu0 0.0
      %815 = vmatpush1.msra.mxu0 0.0
      %816 = vmatprep.subr.mxu0 0.0
      %817 = vmatpush1.msra.mxu0 0.0
      %818 = vmatprep.subr.mxu0 0.0
      %819 = vmatpush1.msra.mxu0 0.0
      %820 = vmatprep.subr.mxu0 0.0
      %821 = vmatpush1.msra.mxu0 0.0
      %822 = vmatprep.subr.mxu0 0.0
      %823 = vmatpush1.msra.mxu0 0.0
      %824 = vmatprep.subr.mxu0 0.0
      %825 = vmatpush1.msra.mxu0 0.0
      %826 = vmatprep.subr.mxu0 0.0
      %827 = vmatpush1.msra.mxu0 0.0
      %828 = vmatprep.subr.mxu0 0.0
      %829 = vmatpush1.msra.mxu0 0.0
      %830 = vmatprep.subr.mxu0 0.0
      %831 = vmatpush1.msra.mxu0 0.0
      %832 = vmatprep.subr.mxu0 0.0
      %833 = vmatpush1.msra.mxu0 0.0
      %834 = vmatprep.subr.mxu0 0.0
      %835 = vmatpush1.msra.mxu0 0.0
      %836 = vmatprep.subr.mxu0 0.0
      %837 = vmatpush1.msra.mxu0 0.0
      %838 = vmatprep.subr.mxu0 0.0
      %839 = vmatpush1.msra.mxu0 0.0
      %840 = vmatprep.subr.mxu0 0.0
      %841 = vmatpush1.msra.mxu0 0.0
      %842 = vmatprep.subr.mxu0 0.0
      %843 = vmatpush1.msra.mxu0 0.0
      %844 = vmatprep.subr.mxu0 0.0
      %845 = vmatpush1.msra.mxu0 0.0
      %846 = vmatprep.subr.mxu0 0.0
      %847 = vmatpush1.msra.mxu0 0.0
      %848 = vmatprep.subr.mxu0 0.0
      %849 = vmatpush1.msra.mxu0 0.0
      %850 = vmatprep.subr.mxu0 0.0
      %851 = vmatpush1.msra.mxu0 0.0
      %852 = vmatprep.subr.mxu0 0.0
      %853 = vmatpush1.msra.mxu0 0.0
      %854 = vmatprep.subr.mxu0 0.0
      %855 = vmatpush1.msra.mxu0 0.0
      %856 = vmatprep.subr.mxu0 0.0
      %857 = vmatpush1.msra.mxu0 0.0
      %858 = vmatprep.subr.mxu0 0.0
      %859 = vmatpush1.msra.mxu0 0.0
      %860 = vmatprep.subr.mxu0 0.0
      %861 = vmatpush1.msra.mxu0 0.0
      %862 = vmatprep.subr.mxu0 0.0
      %863 = vmatpush1.msra.mxu0 0.0
      %864 = vmatprep.subr.mxu0 0.0
      %865 = vmatpush1.msra.mxu0 0.0
      %866 = vmatprep.subr.mxu0 0.0
      %867 = vmatpush1.msra.mxu0 0.0
      %868 = vmatprep.subr.mxu0 0.0
      %869 = vmatpush1.msra.mxu0 0.0
      %870 = vmatprep.subr.mxu0 0.0
      %871 = vmatpush1.msra.mxu0 0.0
      %872 = vmatprep.subr.mxu0 0.0
      %873 = vmatpush1.msra.mxu0 0.0
      %874 = vmatprep.subr.mxu0 0.0
      %875 = vmatpush1.msra.mxu0 0.0
      %876 = vmatprep.mubr.f32.mxu0 0.0
      %877 = vmatmul.mubr.f32.gmra.mrb[0].mxu0 %v810
      %v878 = vpop.f32.mrb[0].mxu0
      %v879 = vadd.f32 0.0, %v878
      %v880 = vpop.f32.mrb[0].mxu0
      %881 = vdwg.mxu0
      %883 = vrot.lane.b32.xlu0 %v879, 8
      %v884 = vpop.permute.xlu0 %883
      %vm886 = vcmask 130112
      %887 = vst.msk [vmem:[#allocation2] sm:$0xff] %vm886, %v884
      %888 = vrot.lane.b32.xlu0 %v548, 112
      %v889 = vpop.permute.xlu0 %888
      %890 = vrot.lane.b32.xlu0 %v548, 80
      %v891 = vpop.permute.xlu0 %890
      %v892 = vsel %vm554, %v889, 0
      %v894 = vsel %vm554, %v891, 0
      %896 = vmatprep.subr.mxu0 0.0
      %897 = vmatpush1.xpose.msra.mxu0 %v894
      %898 = vmatprep.subr.mxu0 0.0
      %899 = vmatpush1.xpose.msra.mxu0 0.0
      %900 = vmatprep.subr.mxu0 0.0
      %901 = vmatpush1.xpose.msra.mxu0 0.0
      %902 = vmatprep.subr.mxu0 0.0
      %903 = vmatpush1.xpose.msra.mxu0 0.0
      %904 = vmatprep.subr.mxu0 0.0
      %905 = vmatpush1.xpose.msra.mxu0 0.0
      %906 = vmatprep.subr.mxu0 0.0
      %907 = vmatpush1.xpose.msra.mxu0 0.0
      %908 = vmatprep.subr.mxu0 0.0
      %909 = vmatpush1.xpose.msra.mxu0 0.0
      %910 = vmatprep.subr.mxu0 0.0
      %911 = vmatpush1.xpose.msra.mxu0 0.0
      %912 = vmatprep.subr.mxu0 0.0
      %913 = vmatpush1.xpose.msra.mxu0 0.0
      %914 = vmatprep.subr.mxu0 0.0
      %915 = vmatpush1.xpose.msra.mxu0 0.0
      %916 = vmatprep.subr.mxu0 0.0
      %917 = vmatpush1.xpose.msra.mxu0 0.0
      %918 = vmatprep.subr.mxu0 0.0
      %919 = vmatpush1.xpose.msra.mxu0 0.0
      %920 = vmatprep.subr.mxu0 0.0
      %921 = vmatpush1.xpose.msra.mxu0 0.0
      %922 = vmatprep.subr.mxu0 0.0
      %923 = vmatpush1.xpose.msra.mxu0 0.0
      %924 = vmatprep.subr.mxu0 0.0
      %925 = vmatpush1.xpose.msra.mxu0 0.0
      %926 = vmatprep.subr.mxu0 0.0
      %927 = vmatpush1.xpose.msra.mxu0 0.0
      %928 = vmatprep.subr.mxu0 0.0
      %929 = vmatpush1.xpose.msra.mxu0 0.0
      %930 = vmatprep.subr.mxu0 0.0
      %931 = vmatpush1.xpose.msra.mxu0 0.0
      %932 = vmatprep.subr.mxu0 0.0
      %933 = vmatpush1.xpose.msra.mxu0 0.0
      %934 = vmatprep.subr.mxu0 0.0
      %935 = vmatpush1.xpose.msra.mxu0 0.0
      %936 = vmatprep.subr.mxu0 0.0
      %937 = vmatpush1.xpose.msra.mxu0 0.0
      %938 = vmatprep.subr.mxu0 0.0
      %939 = vmatpush1.xpose.msra.mxu0 0.0
      %940 = vmatprep.subr.mxu0 0.0
      %941 = vmatpush1.xpose.msra.mxu0 0.0
      %942 = vmatprep.subr.mxu0 0.0
      %943 = vmatpush1.xpose.msra.mxu0 0.0
      %944 = vmatprep.subr.mxu0 0.0
      %945 = vmatpush1.xpose.msra.mxu0 0.0
      %946 = vmatprep.subr.mxu0 0.0
      %947 = vmatpush1.xpose.msra.mxu0 0.0
      %948 = vmatprep.subr.mxu0 0.0
      %949 = vmatpush1.xpose.msra.mxu0 0.0
      %950 = vmatprep.subr.mxu0 0.0
      %951 = vmatpush1.xpose.msra.mxu0 0.0
      %952 = vmatprep.subr.mxu0 0.0
      %953 = vmatpush1.xpose.msra.mxu0 0.0
      %954 = vmatprep.subr.mxu0 0.0
      %955 = vmatpush1.xpose.msra.mxu0 0.0
      %956 = vmatprep.subr.mxu0 0.0
      %957 = vmatpush1.xpose.msra.mxu0 0.0
      %958 = vmatprep.subr.mxu0 0.0
      %959 = vmatpush1.xpose.msra.mxu0 0.0
      %960 = vmatprep.mubr.f32.mxu0 0.0
      %961 = vmatmul.mubr.f32.gmra.mrb[0].mxu0 %v892
      %v962 = vpop.f32.mrb[0].mxu0
      %v963 = vadd.f32 0.0, %v962
      %v964 = vpop.f32.mrb[0].mxu0
      %965 = vdwg.mxu0
      %v966 = vsel %vm554, %v963, -inf
      %967 = vmax.xlane.f32.xlu0 %v966
      %v968 = vpop.xlane.xlu0 %967
      %v969 = vsub.f32 %v963, %v968
      %v970 = vmul.f32 %v969, 1.442695
      %v971 = vpow.pop %v970
      %v972 = vsel %vm554, %v971, 0.0
      %973 = vadd.xlane.f32.xlu0 %v972
      %v974 = vpop.xlane.xlu0 %973
      %v975 = vrcp.pop %v974
      %v976 = vmul.f32 %v971, %v975
      %977 = vrot.lane.b32.xlu0 %v548, 48
      %v978 = vpop.permute.xlu0 %977
      %v981 = vsel %vm554, %v976, 0
      %983 = vmatprep.subr.mxu0 0.0
      %984 = vmatpush1.msra.mxu0 %v978
      %985 = vmatprep.subr.mxu0 0.0
      %986 = vmatpush1.msra.mxu0 0.0
      %987 = vmatprep.subr.mxu0 0.0
      %988 = vmatpush1.msra.mxu0 0.0
      %989 = vmatprep.subr.mxu0 0.0
      %990 = vmatpush1.msra.mxu0 0.0
      %991 = vmatprep.subr.mxu0 0.0
      %992 = vmatpush1.msra.mxu0 0.0
      %993 = vmatprep.subr.mxu0 0.0
      %994 = vmatpush1.msra.mxu0 0.0
      %995 = vmatprep.subr.mxu0 0.0
      %996 = vmatpush1.msra.mxu0 0.0
      %997 = vmatprep.subr.mxu0 0.0
      %998 = vmatpush1.msra.mxu0 0.0
      %999 = vmatprep.subr.mxu0 0.0
      %1000 = vmatpush1.msra.mxu0 0.0
      %1001 = vmatprep.subr.mxu0 0.0
      %1002 = vmatpush1.msra.mxu0 0.0
      %1003 = vmatprep.subr.mxu0 0.0
      %1004 = vmatpush1.msra.mxu0 0.0
      %1005 = vmatprep.subr.mxu0 0.0
      %1006 = vmatpush1.msra.mxu0 0.0
      %1007 = vmatprep.subr.mxu0 0.0
      %1008 = vmatpush1.msra.mxu0 0.0
      %1009 = vmatprep.subr.mxu0 0.0
      %1010 = vmatpush1.msra.mxu0 0.0
      %1011 = vmatprep.subr.mxu0 0.0
      %1012 = vmatpush1.msra.mxu0 0.0
      %1013 = vmatprep.subr.mxu0 0.0
      %1014 = vmatpush1.msra.mxu0 0.0
      %1015 = vmatprep.subr.mxu0 0.0
      %1016 = vmatpush1.msra.mxu0 0.0
      %1017 = vmatprep.subr.mxu0 0.0
      %1018 = vmatpush1.msra.mxu0 0.0
      %1019 = vmatprep.subr.mxu0 0.0
      %1020 = vmatpush1.msra.mxu0 0.0
      %1021 = vmatprep.subr.mxu0 0.0
      %1022 = vmatpush1.msra.mxu0 0.0
      %1023 = vmatprep.subr.mxu0 0.0
      %1024 = vmatpush1.msra.mxu0 0.0
      %1025 = vmatprep.subr.mxu0 0.0
      %1026 = vmatpush1.msra.mxu0 0.0
      %1027 = vmatprep.subr.mxu0 0.0
      %1028 = vmatpush1.msra.mxu0 0.0
      %1029 = vmatprep.subr.mxu0 0.0
      %1030 = vmatpush1.msra.mxu0 0.0
      %1031 = vmatprep.subr.mxu0 0.0
      %1032 = vmatpush1.msra.mxu0 0.0
      %1033 = vmatprep.subr.mxu0 0.0
      %1034 = vmatpush1.msra.mxu0 0.0
      %1035 = vmatprep.subr.mxu0 0.0
      %1036 = vmatpush1.msra.mxu0 0.0
      %1037 = vmatprep.subr.mxu0 0.0
      %1038 = vmatpush1.msra.mxu0 0.0
      %1039 = vmatprep.subr.mxu0 0.0
      %1040 = vmatpush1.msra.mxu0 0.0
      %1041 = vmatprep.subr.mxu0 0.0
      %1042 = vmatpush1.msra.mxu0 0.0
      %1043 = vmatprep.subr.mxu0 0.0
      %1044 = vmatpush1.msra.mxu0 0.0
      %1045 = vmatprep.subr.mxu0 0.0
      %1046 = vmatpush1.msra.mxu0 0.0
      %1047 = vmatprep.mubr.f32.mxu0 0.0
      %1048 = vmatmul.mubr.f32.gmra.mrb[0].mxu0 %v981
      %v1049 = vpop.f32.mrb[0].mxu0
      %v1050 = vadd.f32 0.0, %v1049
      %v1051 = vpop.f32.mrb[0].mxu0
      %1052 = vdwg.mxu0
      %1054 = vrot.lane.b32.xlu0 %v1050, 16
      %v1055 = vpop.permute.xlu0 %1054
      %vm1057 = vcmask 195712
      %1058 = vst.msk [vmem:[#allocation2] sm:$0xff] %vm1057, %v1055
      %1059 = vrot.lane.b32.xlu0 %v548, 104
      %v1060 = vpop.permute.xlu0 %1059
      %1061 = vrot.lane.b32.xlu0 %v548, 72
      %v1062 = vpop.permute.xlu0 %1061
      %v1063 = vsel %vm554, %v1060, 0
      %v1065 = vsel %vm554, %v1062, 0
      %1067 = vmatprep.subr.mxu0 0.0
      %1068 = vmatpush1.xpose.msra.mxu0 %v1065
      %1069 = vmatprep.subr.mxu0 0.0
      %1070 = vmatpush1.xpose.msra.mxu0 0.0
      %1071 = vmatprep.subr.mxu0 0.0
      %1072 = vmatpush1.xpose.msra.mxu0 0.0
      %1073 = vmatprep.subr.mxu0 0.0
      %1074 = vmatpush1.xpose.msra.mxu0 0.0
      %1075 = vmatprep.subr.mxu0 0.0
      %1076 = vmatpush1.xpose.msra.mxu0 0.0
      %1077 = vmatprep.subr.mxu0 0.0
      %1078 = vmatpush1.xpose.msra.mxu0 0.0
      %1079 = vmatprep.subr.mxu0 0.0
      %1080 = vmatpush1.xpose.msra.mxu0 0.0
      %1081 = vmatprep.subr.mxu0 0.0
      %1082 = vmatpush1.xpose.msra.mxu0 0.0
      %1083 = vmatprep.subr.mxu0 0.0
      %1084 = vmatpush1.xpose.msra.mxu0 0.0
      %1085 = vmatprep.subr.mxu0 0.0
      %1086 = vmatpush1.xpose.msra.mxu0 0.0
      %1087 = vmatprep.subr.mxu0 0.0
      %1088 = vmatpush1.xpose.msra.mxu0 0.0
      %1089 = vmatprep.subr.mxu0 0.0
      %1090 = vmatpush1.xpose.msra.mxu0 0.0
      %1091 = vmatprep.subr.mxu0 0.0
      %1092 = vmatpush1.xpose.msra.mxu0 0.0
      %1093 = vmatprep.subr.mxu0 0.0
      %1094 = vmatpush1.xpose.msra.mxu0 0.0
      %1095 = vmatprep.subr.mxu0 0.0
      %1096 = vmatpush1.xpose.msra.mxu0 0.0
      %1097 = vmatprep.subr.mxu0 0.0
      %1098 = vmatpush1.xpose.msra.mxu0 0.0
      %1099 = vmatprep.subr.mxu0 0.0
      %1100 = vmatpush1.xpose.msra.mxu0 0.0
      %1101 = vmatprep.subr.mxu0 0.0
      %1102 = vmatpush1.xpose.msra.mxu0 0.0
      %1103 = vmatprep.subr.mxu0 0.0
      %1104 = vmatpush1.xpose.msra.mxu0 0.0
      %1105 = vmatprep.subr.mxu0 0.0
      %1106 = vmatpush1.xpose.msra.mxu0 0.0
      %1107 = vmatprep.subr.mxu0 0.0
      %1108 = vmatpush1.xpose.msra.mxu0 0.0
      %1109 = vmatprep.subr.mxu0 0.0
      %1110 = vmatpush1.xpose.msra.mxu0 0.0
      %1111 = vmatprep.subr.mxu0 0.0
      %1112 = vmatpush1.xpose.msra.mxu0 0.0
      %1113 = vmatprep.subr.mxu0 0.0
      %1114 = vmatpush1.xpose.msra.mxu0 0.0
      %1115 = vmatprep.subr.mxu0 0.0
      %1116 = vmatpush1.xpose.msra.mxu0 0.0
      %1117 = vmatprep.subr.mxu0 0.0
      %1118 = vmatpush1.xpose.msra.mxu0 0.0
      %1119 = vmatprep.subr.mxu0 0.0
      %1120 = vmatpush1.xpose.msra.mxu0 0.0
      %1121 = vmatprep.subr.mxu0 0.0
      %1122 = vmatpush1.xpose.msra.mxu0 0.0
      %1123 = vmatprep.subr.mxu0 0.0
      %1124 = vmatpush1.xpose.msra.mxu0 0.0
      %1125 = vmatprep.subr.mxu0 0.0
      %1126 = vmatpush1.xpose.msra.mxu0 0.0
      %1127 = vmatprep.subr.mxu0 0.0
      %1128 = vmatpush1.xpose.msra.mxu0 0.0
      %1129 = vmatprep.subr.mxu0 0.0
      %1130 = vmatpush1.xpose.msra.mxu0 0.0
      %1131 = vmatprep.mubr.f32.mxu0 0.0
      %1132 = vmatmul.mubr.f32.gmra.mrb[0].mxu0 %v1063
      %v1133 = vpop.f32.mrb[0].mxu0
      %v1134 = vadd.f32 0.0, %v1133
      %v1135 = vpop.f32.mrb[0].mxu0
      %1136 = vdwg.mxu0
      %v1137 = vsel %vm554, %v1134, -inf
      %1138 = vmax.xlane.f32.xlu0 %v1137
      %v1139 = vpop.xlane.xlu0 %1138
      %v1140 = vsub.f32 %v1134, %v1139
      %v1141 = vmul.f32 %v1140, 1.442695
      %v1142 = vpow.pop %v1141
      %v1143 = vsel %vm554, %v1142, 0.0
      %1144 = vadd.xlane.f32.xlu0 %v1143
      %v1145 = vpop.xlane.xlu0 %1144
      %v1146 = vrcp.pop %v1145
      %v1147 = vmul.f32 %v1142, %v1146
      %1148 = vrot.lane.b32.xlu0 %v548, 40
      %v1149 = vpop.permute.xlu0 %1148
      %v1152 = vsel %vm554, %v1147, 0
      %1154 = vmatprep.subr.mxu0 0.0
      %1155 = vmatpush1.msra.mxu0 %v1149
      %1156 = vmatprep.subr.mxu0 0.0
      %1157 = vmatpush1.msra.mxu0 0.0
      %1158 = vmatprep.subr.mxu0 0.0
      %1159 = vmatpush1.msra.mxu0 0.0
      %1160 = vmatprep.subr.mxu0 0.0
      %1161 = vmatpush1.msra.mxu0 0.0
      %1162 = vmatprep.subr.mxu0 0.0
      %1163 = vmatpush1.msra.mxu0 0.0
      %1164 = vmatprep.subr.mxu0 0.0
      %1165 = vmatpush1.msra.mxu0 0.0
      %1166 = vmatprep.subr.mxu0 0.0
      %1167 = vmatpush1.msra.mxu0 0.0
      %1168 = vmatprep.subr.mxu0 0.0
      %1169 = vmatpush1.msra.mxu0 0.0
      %1170 = vmatprep.subr.mxu0 0.0
      %1171 = vmatpush1.msra.mxu0 0.0
      %1172 = vmatprep.subr.mxu0 0.0
      %1173 = vmatpush1.msra.mxu0 0.0
      %1174 = vmatprep.subr.mxu0 0.0
      %1175 = vmatpush1.msra.mxu0 0.0
      %1176 = vmatprep.subr.mxu0 0.0
      %1177 = vmatpush1.msra.mxu0 0.0
      %1178 = vmatprep.subr.mxu0 0.0
      %1179 = vmatpush1.msra.mxu0 0.0
      %1180 = vmatprep.subr.mxu0 0.0
      %1181 = vmatpush1.msra.mxu0 0.0
      %1182 = vmatprep.subr.mxu0 0.0
      %1183 = vmatpush1.msra.mxu0 0.0
      %1184 = vmatprep.subr.mxu0 0.0
      %1185 = vmatpush1.msra.mxu0 0.0
      %1186 = vmatprep.subr.mxu0 0.0
      %1187 = vmatpush1.msra.mxu0 0.0
      %1188 = vmatprep.subr.mxu0 0.0
      %1189 = vmatpush1.msra.mxu0 0.0
      %1190 = vmatprep.subr.mxu0 0.0
      %1191 = vmatpush1.msra.mxu0 0.0
      %1192 = vmatprep.subr.mxu0 0.0
      %1193 = vmatpush1.msra.mxu0 0.0
      %1194 = vmatprep.subr.mxu0 0.0
      %1195 = vmatpush1.msra.mxu0 0.0
      %1196 = vmatprep.subr.mxu0 0.0
      %1197 = vmatpush1.msra.mxu0 0.0
      %1198 = vmatprep.subr.mxu0 0.0
      %1199 = vmatpush1.msra.mxu0 0.0
      %1200 = vmatprep.subr.mxu0 0.0
      %1201 = vmatpush1.msra.mxu0 0.0
      %1202 = vmatprep.subr.mxu0 0.0
      %1203 = vmatpush1.msra.mxu0 0.0
      %1204 = vmatprep.subr.mxu0 0.0
      %1205 = vmatpush1.msra.mxu0 0.0
      %1206 = vmatprep.subr.mxu0 0.0
      %1207 = vmatpush1.msra.mxu0 0.0
      %1208 = vmatprep.subr.mxu0 0.0
      %1209 = vmatpush1.msra.mxu0 0.0
      %1210 = vmatprep.subr.mxu0 0.0
      %1211 = vmatpush1.msra.mxu0 0.0
      %1212 = vmatprep.subr.mxu0 0.0
      %1213 = vmatpush1.msra.mxu0 0.0
      %1214 = vmatprep.subr.mxu0 0.0
      %1215 = vmatpush1.msra.mxu0 0.0
      %1216 = vmatprep.subr.mxu0 0.0
      %1217 = vmatpush1.msra.mxu0 0.0
      %1218 = vmatprep.mubr.f32.mxu0 0.0
      %1219 = vmatmul.mubr.f32.gmra.mrb[0].mxu0 %v1152
      %v1220 = vpop.f32.mrb[0].mxu0
      %v1221 = vadd.f32 0.0, %v1220
      %v1222 = vpop.f32.mrb[0].mxu0
      %1223 = vdwg.mxu0
      %1225 = vrot.lane.b32.xlu0 %v1221, 24
      %v1226 = vpop.permute.xlu0 %1225
      %vm1228 = vcmask 261312
      %1229 = vst.msk [vmem:[#allocation2] sm:$0xff] %vm1228, %v1226
      %v1230 = vld [vmem:[#allocation2] sm:$0xff]
      %v1231 = vld [vmem:[%s4] sm:$0xff]
      %v1232 = vld [vmem:[%s4 + $0x8] sm:$0xff]
      %v1233 = vld [vmem:[%s4 + $0x10] sm:$0xff]
      %v1234 = vld [vmem:[%s4 + $0x18] sm:$0xff]
      %v1235 = vld [vmem:[%s5] sm:$0x1]
      %v1237 = vlaneseq
      %v1238 = vshrl.u32 %v1237, 7
      %v1239 = vsub.s32 0, %v1238
      %v1240 = vrot.slane %v1235, %v1239
      %v1243 = vsel %vm477, %v1230, 0
      %1245 = vmatprep.subr.mxu0 0.0
      %1246 = vmatpush1.msra.mxu0 %v1231
      %1247 = vmatprep.subr.mxu0 0.0
      %1248 = vmatpush1.msra.mxu0 %v1232
      %1249 = vmatprep.subr.mxu0 0.0
      %1250 = vmatpush1.msra.mxu0 %v1233
      %1251 = vmatprep.subr.mxu0 0.0
      %1252 = vmatpush1.msra.mxu0 %v1234
      %1253 = vmatprep.subr.mxu0 0.0
      %1254 = vmatpush1.msra.mxu0 0.0
      %1255 = vmatprep.subr.mxu0 0.0
      %1256 = vmatpush1.msra.mxu0 0.0
      %1257 = vmatprep.subr.mxu0 0.0
      %1258 = vmatpush1.msra.mxu0 0.0
      %1259 = vmatprep.subr.mxu0 0.0
      %1260 = vmatpush1.msra.mxu0 0.0
      %1261 = vmatprep.subr.mxu0 0.0
      %1262 = vmatpush1.msra.mxu0 0.0
      %1263 = vmatprep.subr.mxu0 0.0
      %1264 = vmatpush1.msra.mxu0 0.0
      %1265 = vmatprep.subr.mxu0 0.0
      %1266 = vmatpush1.msra.mxu0 0.0
      %1267 = vmatprep.subr.mxu0 0.0
      %1268 = vmatpush1.msra.mxu0 0.0
      %1269 = vmatprep.subr.mxu0 0.0
      %1270 = vmatpush1.msra.mxu0 0.0
      %1271 = vmatprep.subr.mxu0 0.0
      %1272 = vmatpush1.msra.mxu0 0.0
      %1273 = vmatprep.subr.mxu0 0.0
      %1274 = vmatpush1.msra.mxu0 0.0
      %1275 = vmatprep.subr.mxu0 0.0
      %1276 = vmatpush1.msra.mxu0 0.0
      %1277 = vmatprep.subr.mxu0 0.0
      %1278 = vmatpush1.msra.mxu0 0.0
      %1279 = vmatprep.subr.mxu0 0.0
      %1280 = vmatpush1.msra.mxu0 0.0
      %1281 = vmatprep.subr.mxu0 0.0
      %1282 = vmatpush1.msra.mxu0 0.0
      %1283 = vmatprep.subr.mxu0 0.0
      %1284 = vmatpush1.msra.mxu0 0.0
      %1285 = vmatprep.subr.mxu0 0.0
      %1286 = vmatpush1.msra.mxu0 0.0
      %1287 = vmatprep.subr.mxu0 0.0
      %1288 = vmatpush1.msra.mxu0 0.0
      %1289 = vmatprep.subr.mxu0 0.0
      %1290 = vmatpush1.msra.mxu0 0.0
      %1291 = vmatprep.subr.mxu0 0.0
      %1292 = vmatpush1.msra.mxu0 0.0
      %1293 = vmatprep.subr.mxu0 0.0
      %1294 = vmatpush1.msra.mxu0 0.0
      %1295 = vmatprep.subr.mxu0 0.0
      %1296 = vmatpush1.msra.mxu0 0.0
      %1297 = vmatprep.subr.mxu0 0.0
      %1298 = vmatpush1.msra.mxu0 0.0
      %1299 = vmatprep.subr.mxu0 0.0
      %1300 = vmatpush1.msra.mxu0 0.0
      %1301 = vmatprep.subr.mxu0 0.0
      %1302 = vmatpush1.msra.mxu0 0.0
      %1303 = vmatprep.subr.mxu0 0.0
      %1304 = vmatpush1.msra.mxu0 0.0
      %1305 = vmatprep.subr.mxu0 0.0
      %1306 = vmatpush1.msra.mxu0 0.0
      %1307 = vmatprep.subr.mxu0 0.0
      %1308 = vmatpush1.msra.mxu0 0.0
      %1309 = vmatprep.mubr.f32.mxu0 0.0
      %1310 = vmatmul.mubr.f32.gmra.mrb[0].mxu0 %v1243
      %v1311 = vpop.f32.mrb[0].mxu0
      %v1312 = vadd.f32 %v1240, %v1311
      %v1313 = vpop.f32.mrb[0].mxu0
      %1314 = vdwg.mxu0
      %v1315 = vadd.f32 %v465, %v1312
      %v1316 = vld [vmem:[%s6] sm:$0x1]
      %v1317 = vld [vmem:[%s7] sm:$0x1]
      %v1318 = vsel %vm477, %v1315, 0.0
      %1319 = vadd.xlane.f32.xlu0 %v1318
      %v1320 = vpop.xlane.xlu0 %1319
      %v1321 = vrcp.pop 32.0
      %v1322 = vmul.f32 %v1320, %v1321
      %v1323 = vsub.f32 %v1315, %v1322
      %v1324 = vmul.f32 %v1323, %v1323
      %v1325 = vsel %vm477, %v1324, 0.0
      %1326 = vadd.xlane.f32.xlu0 %v1325
      %v1327 = vpop.xlane.xlu0 %1326
      %v1328 = vmul.f32 %v1327, %v1321
      %v1329 = vadd.f32 %v1328, 1e-05
      %v1330 = vrsqrt.pop %v1329
      %v1331 = vmul.f32 %v1323, %v1330
      %v1333 = vlaneseq
      %v1334 = vshrl.u32 %v1333, 7
      %v1335 = vsub.s32 0, %v1334
      %v1336 = vrot.slane %v1316, %v1335
      %v1338 = vmul.f32 %v1331, %v1336
      %v1340 = vlaneseq
      %v1341 = vshrl.u32 %v1340, 7
      %v1342 = vsub.s32 0, %v1341
      %v1343 = vrot.slane %v1317, %v1342
      %v1345 = vadd.f32 %v1338, %v1343
      %v1346 = vld [vmem:[%s8] sm:$0xff]
      %v1347 = vld [vmem:[%s8 + $0x8] sm:$0xff]
      %v1348 = vld [vmem:[%s8 + $0x10] sm:$0xff]
      %v1349 = vld [vmem:[%s8 + $0x18] sm:$0xff]
      %v1350 = vld [vmem:[%s9] sm:$0x1]
      %v1352 = vlaneseq
      %v1353 = vshrl.u32 %v1352, 7
      %v1354 = vsub.s32 0, %v1353
      %v1355 = vrot.slane %v1350, %v1354
      %v1358 = vsel %vm477, %v1345, 0
      %1360 = vmatprep.subr.mxu0 0.0
      %1361 = vmatpush1.msra.mxu0 %v1346
      %1362 = vmatprep.subr.mxu0 0.0
      %1363 = vmatpush1.msra.mxu0 %v1347
      %1364 = vmatprep.subr.mxu0 0.0
      %1365 = vmatpush1.msra.mxu0 %v1348
      %1366 = vmatprep.subr.mxu0 0.0
      %1367 = vmatpush1.msra.mxu0 %v1349
      %1368 = vmatprep.subr.mxu0 0.0
      %1369 = vmatpush1.msra.mxu0 0.0
      %1370 = vmatprep.subr.mxu0 0.0
      %1371 = vmatpush1.msra.mxu0 0.0
      %1372 = vmatprep.subr.mxu0 0.0
      %1373 = vmatpush1.msra.mxu0 0.0
      %1374 = vmatprep.subr.mxu0 0.0
      %1375 = vmatpush1.msra.mxu0 0.0
      %1376 = vmatprep.subr.mxu0 0.0
      %1377 = vmatpush1.msra.mxu0 0.0
      %1378 = vmatprep.subr.mxu0 0.0
      %1379 = vmatpush1.msra.mxu0 0.0
      %1380 = vmatprep.subr.mxu0 0.0
      %1381 = vmatpush1.msra.mxu0 0.0
      %1382 = vmatprep.subr.mxu0 0.0
      %1383 = vmatpush1.msra.mxu0 0.0
      %1384 = vmatprep.subr.mxu0 0.0
      %1385 = vmatpush1.msra.mxu0 0.0
      %1386 = vmatprep.subr.mxu0 0.0
      %1387 = vmatpush1.msra.mxu0 0.0
      %1388 = vmatprep.subr.mxu0 0.0
      %1389 = vmatpush1.msra.mxu0 0.0
      %1390 = vmatprep.subr.mxu0 0.0
      %1391 = vmatpush1.msra.mxu0 0.0
      %1392 = vmatprep.subr.mxu0 0.0
      %1393 = vmatpush1.msra.mxu0 0.0
      %1394 = vmatprep.subr.mxu0 0.0
      %1395 = vmatpush1.msra.mxu0 0.0
      %1396 = vmatprep.subr.mxu0 0.0
      %1397 = vmatpush1.msra.mxu0 0.0
      %1398 = vmatprep.subr.mxu0 0.0
      %1399 = vmatpush1.msra.mxu0 0.0
      %1400 = vmatprep.subr.mxu0 0.0
      %1401 = vmatpush1.msra.mxu0 0.0
      %1402 = vmatprep.subr.mxu0 0.0
      %1403 = vmatpush1.msra.mxu0 0.0
      %1404 = vmatprep.subr.mxu0 0.0
      %1405 = vmatpush1.msra.mxu0 0.0
      %1406 = vmatprep.subr.mxu0 0.0
      %1407 = vmatpush1.msra.mxu0 0.0
      %1408 = vmatprep.subr.mxu0 0.0
      %1409 = vmatpush1.msra.mxu0 0.0
      %1410 = vmatprep.subr.mxu0 0.0
      %1411 = vmatpush1.msra.mxu0 0.0
      %1412 = vmatprep.subr.mxu0 0.0
      %1413 = vmatpush1.msra.mxu0 0.0
      %1414 = vmatprep.subr.mxu0 0.0
      %1415 = vmatpush1.msra.mxu0 0.0
      %1416 = vmatprep.subr.mxu0 0.0
      %1417 = vmatpush1.msra.mxu0 0.0
      %1418 = vmatprep.subr.mxu0 0.0
      %1419 = vmatpush1.msra.mxu0 0.0
      %1420 = vmatprep.subr.mxu0 0.0
      %1421 = vmatpush1.msra.mxu0 0.0
      %1422 = vmatprep.subr.mxu0 0.0
      %1423 = vmatpush1.msra.mxu0 0.0
      %1424 = vmatprep.mubr.f32.mxu0 0.0
      %1425 = vmatmul.mubr.f32.gmra.mrb[0].mxu0 %v1358
      %v1426 = vpop.f32.mrb[0].mxu0
      %v1427 = vadd.f32 %v1355, %v1426
      %v1428 = vpop.f32.mrb[0].mxu0
      %1429 = vdwg.mxu0
      %v1430 = vmax.f32 %v1427, 0.0
      %v1431 = vld [vmem:[%s10] sm:$0xff]
      %v1432 = vld [vmem:[%s10 + $0x8] sm:$0xff]
      %v1433 = vld [vmem:[%s10 + $0x10] sm:$0xff]
      %v1434 = vld [vmem:[%s10 + $0x18] sm:$0xff]
      %v1435 = vld [vmem:[%s10 + $0x20] sm:$0xff]
      %v1436 = vld [vmem:[%s10 + $0x28] sm:$0xff]
      %v1437 = vld [vmem:[%s10 + $0x30] sm:$0xff]
      %v1438 = vld [vmem:[%s10 + $0x38] sm:$0xff]
      %v1439 = vld [vmem:[%s11] sm:$0x1]
      %v1441 = vlaneseq
      %v1442 = vshrl.u32 %v1441, 7
      %v1443 = vsub.s32 0, %v1442
      %v1444 = vrot.slane %v1439, %v1443
      %vm1446 = vcmask 523264
      %v1448 = vsel %vm1446, %v1430, 0
      %1450 = vmatprep.subr.mxu0 0.0
      %1451 = vmatpush1.msra.mxu0 %v1431
      %1452 = vmatprep.subr.mxu0 0.0
      %1453 = vmatpush1.msra.mxu0 %v1432
      %1454 = vmatprep.subr.mxu0 0.0
      %1455 = vmatpush1.msra.mxu0 %v1433
      %1456 = vmatprep.subr.mxu0 0.0
      %1457 = vmatpush1.msra.mxu0 %v1434
      %1458 = vmatprep.subr.mxu0 0.0
      %1459 = vmatpush1.msra.mxu0 %v1435
      %1460 = vmatprep.subr.mxu0 0.0
      %1461 = vmatpush1.msra.mxu0 %v1436
      %1462 = vmatprep.subr.mxu0 0.0
      %1463 = vmatpush1.msra.mxu0 %v1437
      %1464 = vmatprep.subr.mxu0 0.0
      %1465 = vmatpush1.msra.mxu0 %v1438
      %1466 = vmatprep.subr.mxu0 0.0
      %1467 = vmatpush1.msra.mxu0 0.0
      %1468 = vmatprep.subr.mxu0 0.0
      %1469 = vmatpush1.msra.mxu0 0.0
      %1470 = vmatprep.subr.mxu0 0.0
      %1471 = vmatpush1.msra.mxu0 0.0
      %1472 = vmatprep.subr.mxu0 0.0
      %1473 = vmatpush1.msra.mxu0 0.0
      %1474 = vmatprep.subr.mxu0 0.0
      %1475 = vmatpush1.msra.mxu0 0.0
      %1476 = vmatprep.subr.mxu0 0.0
      %1477 = vmatpush1.msra.mxu0 0.0
      %1478 = vmatprep.subr.mxu0 0.0
      %1479 = vmatpush1.msra.mxu0 0.0
      %1480 = vmatprep.subr.mxu0 0.0
      %1481 = vmatpush1.msra.mxu0 0.0
      %1482 = vmatprep.subr.mxu0 0.0
      %1483 = vmatpush1.msra.mxu0 0.0
      %1484 = vmatprep.subr.mxu0 0.0
      %1485 = vmatpush1.msra.mxu0 0.0
      %1486 = vmatprep.subr.mxu0 0.0
      %1487 = vmatpush1.msra.mxu0 0.0
      %1488 = vmatprep.subr.mxu0 0.0
      %1489 = vmatpush1.msra.mxu0 0.0
      %1490 = vmatprep.subr.mxu0 0.0
      %1491 = vmatpush1.msra.mxu0 0.0
      %1492 = vmatprep.subr.mxu0 0.0
      %1493 = vmatpush1.msra.mxu0 0.0
      %1494 = vmatprep.subr.mxu0 0.0
      %1495 = vmatpush1.msra.mxu0 0.0
      %1496 = vmatprep.subr.mxu0 0.0
      %1497 = vmatpush1.msra.mxu0 0.0
      %1498 = vmatprep.subr.mxu0 0.0
      %1499 = vmatpush1.msra.mxu0 0.0
      %1500 = vmatprep.subr.mxu0 0.0
      %1501 = vmatpush1.msra.mxu0 0.0
      %1502 = vmatprep.subr.mxu0 0.0
      %1503 = vmatpush1.msra.mxu0 0.0
      %1504 = vmatprep.subr.mxu0 0.0
      %1505 = vmatpush1.msra.mxu0 0.0
      %1506 = vmatprep.subr.mxu0 0.0
      %1507 = vmatpush1.msra.mxu0 0.0
      %1508 = vmatprep.subr.mxu0 0.0
      %1509 = vmatpush1.msra.mxu0 0.0
      %1510 = vmatprep.subr.mxu0 0.0
      %1511 = vmatpush1.msra.mxu0 0.0
      %1512 = vmatprep.subr.mxu0 0.0
      %1513 = vmatpush1.msra.mxu0 0.0
      %1514 = vmatprep.mubr.f32.mxu0 0.0
      %1515 = vmatmul.mubr.f32.gmra.mrb[0].mxu0 %v1448
      %v1516 = vpop.f32.mrb[0].mxu0
      %v1517 = vadd.f32 %v1444, %v1516
      %v1518 = vpop.f32.mrb[0].mxu0
      %1519 = vdwg.mxu0
      %v1520 = vadd.f32 %v1345, %v1517
      %v1521 = vld [vmem:[%s12] sm:$0x1]
      %v1522 = vld [vmem:[%s13] sm:$0x1]
      %v1523 = vsel %vm477, %v1520, 0.0
      %1524 = vadd.xlane.f32.xlu0 %v1523
      %v1525 = vpop.xlane.xlu0 %1524
      %v1526 = vmul.f32 %v1525, %v1321
      %v1527 = vsub.f32 %v1520, %v1526
      %v1528 = vmul.f32 %v1527, %v1527
      %v1529 = vsel %vm477, %v1528, 0.0
      %1530 = vadd.xlane.f32.xlu0 %v1529
      %v1531 = vpop.xlane.xlu0 %1530
      %v1532 = vmul.f32 %v1531, %v1321
      %v1533 = vadd.f32 %v1532, 1e-05
      %v1534 = vrsqrt.pop %v1533
      %v1535 = vmul.f32 %v1527, %v1534
      %v1537 = vlaneseq
      %v1538 = vshrl.u32 %v1537, 7
      %v1539 = vsub.s32 0, %v1538
      %v1540 = vrot.slane %v1521, %v1539
      %v1542 = vmul.f32 %v1535, %v1540
      %v1544 = vlaneseq
      %v1545 = vshrl.u32 %v1544, 7
      %v1546 = vsub.s32 0, %v1545
      %v1547 = vrot.slane %v1522, %v1546
      %v1549 = vadd.f32 %v1542, %v1547
      %1550 = vst.msk [vmem:[%s462] sm:$0xff] %vm477, %v1549
      %p1551 = scmp.lt.s32.totalorder %s25, 1
      %s1552 = scalar_select %p1551, %s25, 1
      %s1553 = smul.addr %s1552, 8
      %s1554 = scalar_lea.vmem %s14, %s1553
      // Predicated region
      $region77: #{forward.3} parent=75 // pred_check
        %p1555 = pneg %p342
      $region78: #{forward.3} parent=75 // pred_check_branch
        %1557 = sbr.rel (%p1555) target = $region80
      $region79: #{forward.3} parent=75 // pred_region
        _
      $region80: #{forward.3} parent=75 // pred_fallthru
        _
    $region76: #{forward.3} parent=5 // pred_fallthru
      _
    %p1558 = scmp.le.s32.totalorder 2, %s20
    // Predicated region
    $region81: #{forward.3} parent=5 // pred_check
      %p1559 = pneg %p1558
    $region82: #{forward.3} parent=5 // pred_check_branch
      %1561 = sbr.rel (%p1559) target = $region84
    $region83: #{forward.3} parent=5 // pred_region
      %s1562 = ssub.s32 %s20, 2
      // Predicated region
      $region85: #{forward.3} parent=83 // pred_check
        %p1563 = pneg %p348
      $region86: #{forward.3} parent=83 // pred_check_branch
        %1565 = sbr.rel (%p1563) target = $region88
      $region87: #{forward.3} parent=83 // pred_region
        %p1566 = scmp.lt.s32.totalorder %s26, 1
        %s1567 = scalar_select %p1566, %s26, 1
        %s1568 = smul.addr %s1567, 8
        %s1569 = scalar_lea.vmem %s14, %s1568
      $region88: #{forward.3} parent=83 // pred_fallthru
        _
    $region84: #{forward.3} parent=5 // pred_fallthru
      _
  $region6: #{forward.3} parent=0 // loop_footer
    %s24 = sadd.s32 1, %s20
  $region7: #{forward.3} parent=0 // loop_footer_branch
    %19 = sbr.rel target = $region3
  $region8: #{forward.3} parent=0 // loop_exit
    _

</llo_original>
